<compile_context>
chip_gen: v7x
topology: tpu7x:2x2x1
jax: 0.10.0
libtpu: 0.0.40
codegen_flags: <defaults>
</compile_context>

<pallas_src>
import numpy as np
import jax
import jax.numpy as jnp
from jax import lax
from jax.experimental import pallas as pl
from jax.experimental.pallas import tpu as pltpu


# ----------------------------------------------------------------------------
# Weight-only preprocessing (batch independent, runs in XLA outside the kernel)
# ----------------------------------------------------------------------------
def _conv_band(w, w_in, ow):
    """w: (Cout, Cin, KH, KW) -> band matrices (KH, Cin*w_in, Cout*ow) with
    B[i][ci*w_in + ow_ + j, co*ow + ow_] = w[co, ci, i, j]."""
    Cout, Cin, KH, KW = w.shape
    eye = jnp.stack([jnp.eye(w_in, ow, k=-j, dtype=w.dtype) for j in range(KW)])
    band = jnp.einsum("ocij,jrw->icrow", w, eye)      # (KH, Cin, w_in, Cout, ow)
    return band.reshape(KH, Cin * w_in, Cout * ow)


def _pool_col_selectors(C, W):
    """Even/odd column pickers for lane-packed (rows, C*W) -> (rows, C*(W//2))."""
    Wp = W // 2
    se = np.zeros((C * W, C * Wp), np.float32)
    so = np.zeros((C * W, C * Wp), np.float32)
    for c in range(C):
        for p in range(Wp):
            se[c * W + 2 * p, c * Wp + p] = 1.0
            so[c * W + 2 * p + 1, c * Wp + p] = 1.0
    return jnp.asarray(se), jnp.asarray(so)


def _pool_row_selectors(H):
    """Even/odd row pickers: (H//2, H) left-multipliers."""
    Hp = H // 2
    re_ = np.zeros((Hp, H), np.float32)
    ro = np.zeros((Hp, H), np.float32)
    re_[np.arange(Hp), 2 * np.arange(Hp)] = 1.0
    ro[np.arange(Hp), 2 * np.arange(Hp) + 1] = 1.0
    return jnp.asarray(re_), jnp.asarray(ro)


def _const_spec(a):
    zeros = (0,) * a.ndim
    return pl.BlockSpec(a.shape, lambda b, _z=zeros: _z)


# ----------------------------------------------------------------------------
# The fused LeNet kernel (one grid step == one batch sample)
# ----------------------------------------------------------------------------
def _lenet_kernel(x_ref, b1band_ref, b1row_ref, s1e_ref, s1o_ref, r1e_ref,
                  r1o_ref, b2band_ref, b2row_ref, s2e_ref, s2o_ref, r2e_ref,
                  r2o_ref, w1r_ref, bfc1_ref, wfc2_ref, bfc2_ref, wfc3_ref,
                  bfc3_ref, out_ref):
    f32 = jnp.float32

    # ---- conv1: sum over KH of (28,32) @ (32, 6*28) banded matmuls ----------
    y1 = jnp.dot(x_ref[0, 0, pl.ds(0, 28), :], b1band_ref[0],
                 preferred_element_type=f32)
    for i in range(1, 5):
        y1 = y1 + jnp.dot(x_ref[0, 0, pl.ds(i, 28), :], b1band_ref[i],
                          preferred_element_type=f32)
    y1 = jnp.maximum(y1 + b1row_ref[...], 0.0)                  # (28, 168)

    # ---- maxpool 2x2 via even/odd selection matmuls -> (14, 6*14) -----------
    z1 = jnp.maximum(jnp.dot(y1, s1e_ref[...], preferred_element_type=f32),
                     jnp.dot(y1, s1o_ref[...], preferred_element_type=f32))
    p1 = jnp.maximum(jnp.dot(r1e_ref[...], z1, preferred_element_type=f32),
                     jnp.dot(r1o_ref[...], z1, preferred_element_type=f32))

    # ---- conv2: sum over KH of (10,84) @ (84, 16*10) banded matmuls ---------
    # p1 stays a live value; static row slices are just sublane shifts.
    y2 = jnp.dot(p1[0:10, :], b2band_ref[0], preferred_element_type=f32)
    for i in range(1, 5):
        y2 = y2 + jnp.dot(p1[i:i + 10, :], b2band_ref[i],
                          preferred_element_type=f32)
    y2 = jnp.maximum(y2 + b2row_ref[...], 0.0)                  # (10, 160)

    # ---- maxpool 2x2 -> (5, 16*5) -------------------------------------------
    z2 = jnp.maximum(jnp.dot(y2, s2e_ref[...], preferred_element_type=f32),
                     jnp.dot(y2, s2o_ref[...], preferred_element_type=f32))
    p2 = jnp.maximum(jnp.dot(r2e_ref[...], z2, preferred_element_type=f32),
                     jnp.dot(r2o_ref[...], z2, preferred_element_type=f32))

    # ---- fc1 (PyTorch CHW flatten folded into weight layout) + relu ---------
    h1 = jnp.dot(p2[0:1, :], w1r_ref[0], preferred_element_type=f32)
    for ph in range(1, 5):
        h1 = h1 + jnp.dot(p2[ph:ph + 1, :], w1r_ref[ph],
                          preferred_element_type=f32)
    h1 = jnp.maximum(h1 + bfc1_ref[...], 0.0)                   # (1, 120)

    # ---- fc2 + relu, fc3 (128-lane padded -> unmasked lane-dense store) -----
    h2 = jnp.maximum(
        jnp.dot(h1, wfc2_ref[...], preferred_element_type=f32) + bfc2_ref[...],
        0.0)
    h3 = jnp.dot(h2, wfc3_ref[...], preferred_element_type=f32) + bfc3_ref[...]
    out_ref[0] = h3                                             # (1, 128)


# ----------------------------------------------------------------------------
# Forward pass wrapper
# ----------------------------------------------------------------------------
def net_forward(x, params):
    """Exact forward semantics of the PyTorch `Net`. x: (B, 1, 32, 32) f32."""
    f32 = jnp.float32
    B = x.shape[0]

    w1 = params["conv1_w"].astype(f32)
    w2 = params["conv2_w"].astype(f32)

    b1band = _conv_band(w1, 32, 28)                      # (5, 32, 168)
    b2band = _conv_band(w2, 14, 10)                      # (5, 84, 160)
    b1row = jnp.repeat(params["conv1_b"].astype(f32), 28)[None, :]   # (1, 168)
    b2row = jnp.repeat(params["conv2_b"].astype(f32), 10)[None, :]   # (1, 160)

    s1e, s1o = _pool_col_selectors(6, 28)                # (168, 84)
    r1e, r1o = _pool_row_selectors(28)                   # (14, 28)
    s2e, s2o = _pool_col_selectors(16, 10)               # (160, 80)
    r2e, r2o = _pool_row_selectors(10)                   # (5, 10)

    # fc1 weight with the PyTorch (C, H, W) flatten folded in:
    # W1r[ph, c*5+pw, n] = fc1_w[n, c*25 + ph*5 + pw]
    w1r = (params["fc1_w"].astype(f32)
           .reshape(120, 16, 5, 5)
           .transpose(2, 1, 3, 0)
           .reshape(5, 80, 120))
    bfc1 = params["fc1_b"].astype(f32)[None, :]          # (1, 120)
    wfc2 = params["fc2_w"].astype(f32).T                 # (120, 84)
    bfc2 = params["fc2_b"].astype(f32)[None, :]

    # fc3 padded to 128 output lanes so the final store is lane-dense
    # (unmasked vst); the wrapper slices back to the 10 real logits.
    wfc3 = jnp.zeros((84, 128), f32).at[:, :10].set(
        params["fc3_w"].astype(f32).T)
    bfc3 = jnp.zeros((1, 128), f32).at[:, :10].set(
        params["fc3_b"].astype(f32))

    ins = (x.astype(f32), b1band, b1row, s1e, s1o, r1e, r1o,
           b2band, b2row, s2e, s2o, r2e, r2o,
           w1r, bfc1, wfc2, bfc2, wfc3, bfc3)

    in_specs = [pl.BlockSpec((1, 1, 32, 32), lambda b: (b, 0, 0, 0))]
    in_specs += [_const_spec(a) for a in ins[1:]]

    out = pl.pallas_call(
        _lenet_kernel,
        out_shape=jax.ShapeDtypeStruct((B, 1, 128), f32),
        grid_spec=pltpu.PrefetchScalarGridSpec(
            num_scalar_prefetch=0,
            grid=(B,),
            in_specs=in_specs,
            out_specs=pl.BlockSpec((1, 1, 128), lambda b: (b, 0, 0)),
        ),
        compiler_params=pltpu.CompilerParams(
            dimension_semantics=("parallel",)),
    )(*ins)
    return out[:, 0, :10]


# ----------------------------------------------------------------------------
# Pure-JAX reference (independent path: lax.conv + reshape-max pooling)
# ----------------------------------------------------------------------------
def ref_forward(x, params):
    def conv(x, w, b):
        y = lax.conv_general_dilated(
            x, w, window_strides=(1, 1), padding="VALID",
            dimension_numbers=("NCHW", "OIHW", "NCHW"))
        return jax.nn.relu(y + b[None, :, None, None])

    def pool(x):
        B, C, H, W = x.shape
        return x.reshape(B, C, H // 2, 2, W // 2, 2).max(axis=(3, 5))

    y = pool(conv(x, params["conv1_w"], params["conv1_b"]))
    y = pool(conv(y, params["conv2_w"], params["conv2_b"]))
    y = y.reshape(y.shape[0], -1)
    y = jax.nn.relu(y @ params["fc1_w"].T + params["fc1_b"])
    y = jax.nn.relu(y @ params["fc2_w"].T + params["fc2_b"])
    return y @ params["fc3_w"].T + params["fc3_b"]


# ----------------------------------------------------------------------------
# Deterministic parameter init (PyTorch-default-style uniform(-1/sqrt(fan_in)))
# ----------------------------------------------------------------------------
def init_params(key):
    def unif(k, shape, fan_in):
        bound = 1.0 / np.sqrt(fan_in)
        return jax.random.uniform(k, shape, jnp.float32, -bound, bound)

    ks = jax.random.split(key, 10)
    return {
        "conv1_w": unif(ks[0], (6, 1, 5, 5), 1 * 5 * 5),
        "conv1_b": unif(ks[1], (6,), 1 * 5 * 5),
        "conv2_w": unif(ks[2], (16, 6, 5, 5), 6 * 5 * 5),
        "conv2_b": unif(ks[3], (16,), 6 * 5 * 5),
        "fc1_w": unif(ks[4], (120, 400), 400),
        "fc1_b": unif(ks[5], (120,), 400),
        "fc2_w": unif(ks[6], (84, 120), 120),
        "fc2_b": unif(ks[7], (84,), 120),
        "fc3_w": unif(ks[8], (10, 84), 84),
        "fc3_b": unif(ks[9], (10,), 84),
    }


if __name__ == "__main__":
    key = jax.random.PRNGKey(0)
    pkey, xkey = jax.random.split(key)
    params = init_params(pkey)
    # LeNet forward implies a 32x32 single-channel input (16*5*5 flatten).
    x = jax.random.normal(xkey, (2, 1, 32, 32), jnp.float32)

    out = jax.jit(net_forward)(x, params)
    out = jax.block_until_ready(out)
    assert out.shape == (2, 10) and out.dtype == jnp.float32

    ref = jax.block_until_ready(ref_forward(x, params))
    np.testing.assert_allclose(np.asarray(out), np.asarray(ref),
                               rtol=1e-2, atol=1e-2)
    print("KERNEL_OK")
</pallas_src>

<mosaic_0001>
module attributes {stable_mosaic.version = 11 : i64} {
  func.func @_lenet_kernel(%arg0: i32, %arg1: memref<1x1x32x32xf32, #tpu.memory_space<vmem>>, %arg2: memref<5x32x168xf32, #tpu.memory_space<vmem>>, %arg3: memref<1x168xf32, #tpu.memory_space<vmem>>, %arg4: memref<168x84xf32, #tpu.memory_space<vmem>>, %arg5: memref<168x84xf32, #tpu.memory_space<vmem>>, %arg6: memref<14x28xf32, #tpu.memory_space<vmem>>, %arg7: memref<14x28xf32, #tpu.memory_space<vmem>>, %arg8: memref<5x84x160xf32, #tpu.memory_space<vmem>>, %arg9: memref<1x160xf32, #tpu.memory_space<vmem>>, %arg10: memref<160x80xf32, #tpu.memory_space<vmem>>, %arg11: memref<160x80xf32, #tpu.memory_space<vmem>>, %arg12: memref<5x10xf32, #tpu.memory_space<vmem>>, %arg13: memref<5x10xf32, #tpu.memory_space<vmem>>, %arg14: memref<5x80x120xf32, #tpu.memory_space<vmem>>, %arg15: memref<1x120xf32, #tpu.memory_space<vmem>>, %arg16: memref<120x84xf32, #tpu.memory_space<vmem>>, %arg17: memref<1x84xf32, #tpu.memory_space<vmem>>, %arg18: memref<84x128xf32, #tpu.memory_space<vmem>>, %arg19: memref<1x128xf32, #tpu.memory_space<vmem>>, %arg20: memref<1x1x128xf32, #tpu.memory_space<vmem>>) attributes {dimension_semantics = [#tpu.dimension_semantics<parallel>], iteration_bounds = array<i64: 2>, scalar_prefetch = 0 : i64, scratch_operands = 0 : i64, tpu.core_type = #tpu.core_type<tc>, window_params = [{transform_indices = @transform_0, window_bounds = array<i64: 1, 1, 32, 32>}, {pipeline_mode = #tpu.pipeline_mode<synchronous>, transform_indices = @transform_1, window_bounds = array<i64: 5, 32, 168>}, {pipeline_mode = #tpu.pipeline_mode<synchronous>, transform_indices = @transform_2, window_bounds = array<i64: 1, 168>}, {pipeline_mode = #tpu.pipeline_mode<synchronous>, transform_indices = @transform_3, window_bounds = array<i64: 168, 84>}, {pipeline_mode = #tpu.pipeline_mode<synchronous>, transform_indices = @transform_4, window_bounds = array<i64: 168, 84>}, {pipeline_mode = #tpu.pipeline_mode<synchronous>, transform_indices = @transform_5, window_bounds = array<i64: 14, 28>}, {pipeline_mode = #tpu.pipeline_mode<synchronous>, transform_indices = @transform_6, window_bounds = array<i64: 14, 28>}, {pipeline_mode = #tpu.pipeline_mode<synchronous>, transform_indices = @transform_7, window_bounds = array<i64: 5, 84, 160>}, {pipeline_mode = #tpu.pipeline_mode<synchronous>, transform_indices = @transform_8, window_bounds = array<i64: 1, 160>}, {pipeline_mode = #tpu.pipeline_mode<synchronous>, transform_indices = @transform_9, window_bounds = array<i64: 160, 80>}, {pipeline_mode = #tpu.pipeline_mode<synchronous>, transform_indices = @transform_10, window_bounds = array<i64: 160, 80>}, {pipeline_mode = #tpu.pipeline_mode<synchronous>, transform_indices = @transform_11, window_bounds = array<i64: 5, 10>}, {pipeline_mode = #tpu.pipeline_mode<synchronous>, transform_indices = @transform_12, window_bounds = array<i64: 5, 10>}, {pipeline_mode = #tpu.pipeline_mode<synchronous>, transform_indices = @transform_13, window_bounds = array<i64: 5, 80, 120>}, {pipeline_mode = #tpu.pipeline_mode<synchronous>, transform_indices = @transform_14, window_bounds = array<i64: 1, 120>}, {pipeline_mode = #tpu.pipeline_mode<synchronous>, transform_indices = @transform_15, window_bounds = array<i64: 120, 84>}, {pipeline_mode = #tpu.pipeline_mode<synchronous>, transform_indices = @transform_16, window_bounds = array<i64: 1, 84>}, {pipeline_mode = #tpu.pipeline_mode<synchronous>, transform_indices = @transform_17, window_bounds = array<i64: 84, 128>}, {pipeline_mode = #tpu.pipeline_mode<synchronous>, transform_indices = @transform_18, window_bounds = array<i64: 1, 128>}, {transform_indices = @transform_19, window_bounds = array<i64: 1, 1, 128>}]} {
    %c0 = arith.constant 0 : index
    %c0_0 = arith.constant 0 : index
    %c0_1 = arith.constant 0 : index
    %c0_2 = arith.constant 0 : index
    %0 = vector.load %arg1[%c0, %c0_0, %c0_1, %c0_2] : memref<1x1x32x32xf32, #tpu.memory_space<vmem>>, vector<1x1x28x32xf32>
    %1 = vector.shape_cast %0 : vector<1x1x28x32xf32> to vector<28x32xf32>
    %c0_3 = arith.constant 0 : index
    %c0_4 = arith.constant 0 : index
    %c0_5 = arith.constant 0 : index
    %2 = vector.load %arg2[%c0_3, %c0_4, %c0_5] : memref<5x32x168xf32, #tpu.memory_space<vmem>>, vector<1x32x168xf32>
    %3 = vector.shape_cast %2 : vector<1x32x168xf32> to vector<32x168xf32>
    %cst = arith.constant dense<0.000000e+00> : vector<28x168xf32>
    %4 = tpu.matmul %1, %3, %cst {dimension_numbers = #tpu.dot_dimension_numbers<[1], [0], [0], [1], [0, 0, 1, 1], [], []>} : vector<28x32xf32>, vector<32x168xf32>, vector<28x168xf32> -> vector<28x168xf32>
    %c0_6 = arith.constant 0 : index
    %c0_7 = arith.constant 0 : index
    %c1 = arith.constant 1 : index
    %c0_8 = arith.constant 0 : index
    %5 = vector.load %arg1[%c0_6, %c0_7, %c1, %c0_8] : memref<1x1x32x32xf32, #tpu.memory_space<vmem>>, vector<1x1x28x32xf32>
    %6 = vector.shape_cast %5 : vector<1x1x28x32xf32> to vector<28x32xf32>
    %c1_9 = arith.constant 1 : index
    %c0_10 = arith.constant 0 : index
    %c0_11 = arith.constant 0 : index
    %7 = vector.load %arg2[%c1_9, %c0_10, %c0_11] : memref<5x32x168xf32, #tpu.memory_space<vmem>>, vector<1x32x168xf32>
    %8 = vector.shape_cast %7 : vector<1x32x168xf32> to vector<32x168xf32>
    %cst_12 = arith.constant dense<0.000000e+00> : vector<28x168xf32>
    %9 = tpu.matmul %6, %8, %cst_12 {dimension_numbers = #tpu.dot_dimension_numbers<[1], [0], [0], [1], [0, 0, 1, 1], [], []>} : vector<28x32xf32>, vector<32x168xf32>, vector<28x168xf32> -> vector<28x168xf32>
    %10 = arith.addf %4, %9 : vector<28x168xf32>
    %c0_13 = arith.constant 0 : index
    %c0_14 = arith.constant 0 : index
    %c2 = arith.constant 2 : index
    %c0_15 = arith.constant 0 : index
    %11 = vector.load %arg1[%c0_13, %c0_14, %c2, %c0_15] : memref<1x1x32x32xf32, #tpu.memory_space<vmem>>, vector<1x1x28x32xf32>
    %12 = vector.shape_cast %11 : vector<1x1x28x32xf32> to vector<28x32xf32>
    %c2_16 = arith.constant 2 : index
    %c0_17 = arith.constant 0 : index
    %c0_18 = arith.constant 0 : index
    %13 = vector.load %arg2[%c2_16, %c0_17, %c0_18] : memref<5x32x168xf32, #tpu.memory_space<vmem>>, vector<1x32x168xf32>
    %14 = vector.shape_cast %13 : vector<1x32x168xf32> to vector<32x168xf32>
    %cst_19 = arith.constant dense<0.000000e+00> : vector<28x168xf32>
    %15 = tpu.matmul %12, %14, %cst_19 {dimension_numbers = #tpu.dot_dimension_numbers<[1], [0], [0], [1], [0, 0, 1, 1], [], []>} : vector<28x32xf32>, vector<32x168xf32>, vector<28x168xf32> -> vector<28x168xf32>
    %16 = arith.addf %10, %15 : vector<28x168xf32>
    %c0_20 = arith.constant 0 : index
    %c0_21 = arith.constant 0 : index
    %c3 = arith.constant 3 : index
    %c0_22 = arith.constant 0 : index
    %17 = vector.load %arg1[%c0_20, %c0_21, %c3, %c0_22] : memref<1x1x32x32xf32, #tpu.memory_space<vmem>>, vector<1x1x28x32xf32>
    %18 = vector.shape_cast %17 : vector<1x1x28x32xf32> to vector<28x32xf32>
    %c3_23 = arith.constant 3 : index
    %c0_24 = arith.constant 0 : index
    %c0_25 = arith.constant 0 : index
    %19 = vector.load %arg2[%c3_23, %c0_24, %c0_25] : memref<5x32x168xf32, #tpu.memory_space<vmem>>, vector<1x32x168xf32>
    %20 = vector.shape_cast %19 : vector<1x32x168xf32> to vector<32x168xf32>
    %cst_26 = arith.constant dense<0.000000e+00> : vector<28x168xf32>
    %21 = tpu.matmul %18, %20, %cst_26 {dimension_numbers = #tpu.dot_dimension_numbers<[1], [0], [0], [1], [0, 0, 1, 1], [], []>} : vector<28x32xf32>, vector<32x168xf32>, vector<28x168xf32> -> vector<28x168xf32>
    %22 = arith.addf %16, %21 : vector<28x168xf32>
    %c0_27 = arith.constant 0 : index
    %c0_28 = arith.constant 0 : index
    %c4 = arith.constant 4 : index
    %c0_29 = arith.constant 0 : index
    %23 = vector.load %arg1[%c0_27, %c0_28, %c4, %c0_29] : memref<1x1x32x32xf32, #tpu.memory_space<vmem>>, vector<1x1x28x32xf32>
    %24 = vector.shape_cast %23 : vector<1x1x28x32xf32> to vector<28x32xf32>
    %c4_30 = arith.constant 4 : index
    %c0_31 = arith.constant 0 : index
    %c0_32 = arith.constant 0 : index
    %25 = vector.load %arg2[%c4_30, %c0_31, %c0_32] : memref<5x32x168xf32, #tpu.memory_space<vmem>>, vector<1x32x168xf32>
    %26 = vector.shape_cast %25 : vector<1x32x168xf32> to vector<32x168xf32>
    %cst_33 = arith.constant dense<0.000000e+00> : vector<28x168xf32>
    %27 = tpu.matmul %24, %26, %cst_33 {dimension_numbers = #tpu.dot_dimension_numbers<[1], [0], [0], [1], [0, 0, 1, 1], [], []>} : vector<28x32xf32>, vector<32x168xf32>, vector<28x168xf32> -> vector<28x168xf32>
    %28 = arith.addf %22, %27 : vector<28x168xf32>
    %c0_34 = arith.constant 0 : index
    %c0_35 = arith.constant 0 : index
    %29 = vector.load %arg3[%c0_34, %c0_35] : memref<1x168xf32, #tpu.memory_space<vmem>>, vector<1x168xf32>
    %30 = vector.broadcast %29 : vector<1x168xf32> to vector<28x168xf32>
    %31 = arith.addf %28, %30 : vector<28x168xf32>
    %cst_36 = arith.constant 0.000000e+00 : f32
    %32 = vector.broadcast %cst_36 : f32 to vector<28x168xf32>
    %33 = arith.maximumf %31, %32 : vector<28x168xf32>
    %c0_37 = arith.constant 0 : index
    %c0_38 = arith.constant 0 : index
    %34 = vector.load %arg4[%c0_37, %c0_38] : memref<168x84xf32, #tpu.memory_space<vmem>>, vector<168x84xf32>
    %cst_39 = arith.constant dense<0.000000e+00> : vector<28x84xf32>
    %35 = tpu.matmul %33, %34, %cst_39 {dimension_numbers = #tpu.dot_dimension_numbers<[1], [0], [0], [1], [0, 0, 1, 1], [], []>} : vector<28x168xf32>, vector<168x84xf32>, vector<28x84xf32> -> vector<28x84xf32>
    %c0_40 = arith.constant 0 : index
    %c0_41 = arith.constant 0 : index
    %36 = vector.load %arg5[%c0_40, %c0_41] : memref<168x84xf32, #tpu.memory_space<vmem>>, vector<168x84xf32>
    %cst_42 = arith.constant dense<0.000000e+00> : vector<28x84xf32>
    %37 = tpu.matmul %33, %36, %cst_42 {dimension_numbers = #tpu.dot_dimension_numbers<[1], [0], [0], [1], [0, 0, 1, 1], [], []>} : vector<28x168xf32>, vector<168x84xf32>, vector<28x84xf32> -> vector<28x84xf32>
    %38 = arith.maximumf %35, %37 : vector<28x84xf32>
    %c0_43 = arith.constant 0 : index
    %c0_44 = arith.constant 0 : index
    %39 = vector.load %arg6[%c0_43, %c0_44] : memref<14x28xf32, #tpu.memory_space<vmem>>, vector<14x28xf32>
    %cst_45 = arith.constant dense<0.000000e+00> : vector<14x84xf32>
    %40 = tpu.matmul %39, %38, %cst_45 {dimension_numbers = #tpu.dot_dimension_numbers<[1], [0], [0], [1], [0, 0, 1, 1], [], []>} : vector<14x28xf32>, vector<28x84xf32>, vector<14x84xf32> -> vector<14x84xf32>
    %c0_46 = arith.constant 0 : index
    %c0_47 = arith.constant 0 : index
    %41 = vector.load %arg7[%c0_46, %c0_47] : memref<14x28xf32, #tpu.memory_space<vmem>>, vector<14x28xf32>
    %cst_48 = arith.constant dense<0.000000e+00> : vector<14x84xf32>
    %42 = tpu.matmul %41, %38, %cst_48 {dimension_numbers = #tpu.dot_dimension_numbers<[1], [0], [0], [1], [0, 0, 1, 1], [], []>} : vector<14x28xf32>, vector<28x84xf32>, vector<14x84xf32> -> vector<14x84xf32>
    %43 = arith.maximumf %40, %42 : vector<14x84xf32>
    %44 = vector.extract_strided_slice %43 {offsets = [0, 0], sizes = [10, 84], strides = [1, 1]} : vector<14x84xf32> to vector<10x84xf32>
    %c0_49 = arith.constant 0 : index
    %c0_50 = arith.constant 0 : index
    %c0_51 = arith.constant 0 : index
    %45 = vector.load %arg8[%c0_49, %c0_50, %c0_51] : memref<5x84x160xf32, #tpu.memory_space<vmem>>, vector<1x84x160xf32>
    %46 = vector.shape_cast %45 : vector<1x84x160xf32> to vector<84x160xf32>
    %cst_52 = arith.constant dense<0.000000e+00> : vector<10x160xf32>
    %47 = tpu.matmul %44, %46, %cst_52 {dimension_numbers = #tpu.dot_dimension_numbers<[1], [0], [0], [1], [0, 0, 1, 1], [], []>} : vector<10x84xf32>, vector<84x160xf32>, vector<10x160xf32> -> vector<10x160xf32>
    %48 = vector.extract_strided_slice %43 {offsets = [1, 0], sizes = [10, 84], strides = [1, 1]} : vector<14x84xf32> to vector<10x84xf32>
    %c1_53 = arith.constant 1 : index
    %c0_54 = arith.constant 0 : index
    %c0_55 = arith.constant 0 : index
    %49 = vector.load %arg8[%c1_53, %c0_54, %c0_55] : memref<5x84x160xf32, #tpu.memory_space<vmem>>, vector<1x84x160xf32>
    %50 = vector.shape_cast %49 : vector<1x84x160xf32> to vector<84x160xf32>
    %cst_56 = arith.constant dense<0.000000e+00> : vector<10x160xf32>
    %51 = tpu.matmul %48, %50, %cst_56 {dimension_numbers = #tpu.dot_dimension_numbers<[1], [0], [0], [1], [0, 0, 1, 1], [], []>} : vector<10x84xf32>, vector<84x160xf32>, vector<10x160xf32> -> vector<10x160xf32>
    %52 = arith.addf %47, %51 : vector<10x160xf32>
    %53 = vector.extract_strided_slice %43 {offsets = [2, 0], sizes = [10, 84], strides = [1, 1]} : vector<14x84xf32> to vector<10x84xf32>
    %c2_57 = arith.constant 2 : index
    %c0_58 = arith.constant 0 : index
    %c0_59 = arith.constant 0 : index
    %54 = vector.load %arg8[%c2_57, %c0_58, %c0_59] : memref<5x84x160xf32, #tpu.memory_space<vmem>>, vector<1x84x160xf32>
    %55 = vector.shape_cast %54 : vector<1x84x160xf32> to vector<84x160xf32>
    %cst_60 = arith.constant dense<0.000000e+00> : vector<10x160xf32>
    %56 = tpu.matmul %53, %55, %cst_60 {dimension_numbers = #tpu.dot_dimension_numbers<[1], [0], [0], [1], [0, 0, 1, 1], [], []>} : vector<10x84xf32>, vector<84x160xf32>, vector<10x160xf32> -> vector<10x160xf32>
    %57 = arith.addf %52, %56 : vector<10x160xf32>
    %58 = vector.extract_strided_slice %43 {offsets = [3, 0], sizes = [10, 84], strides = [1, 1]} : vector<14x84xf32> to vector<10x84xf32>
    %c3_61 = arith.constant 3 : index
    %c0_62 = arith.constant 0 : index
    %c0_63 = arith.constant 0 : index
    %59 = vector.load %arg8[%c3_61, %c0_62, %c0_63] : memref<5x84x160xf32, #tpu.memory_space<vmem>>, vector<1x84x160xf32>
    %60 = vector.shape_cast %59 : vector<1x84x160xf32> to vector<84x160xf32>
    %cst_64 = arith.constant dense<0.000000e+00> : vector<10x160xf32>
    %61 = tpu.matmul %58, %60, %cst_64 {dimension_numbers = #tpu.dot_dimension_numbers<[1], [0], [0], [1], [0, 0, 1, 1], [], []>} : vector<10x84xf32>, vector<84x160xf32>, vector<10x160xf32> -> vector<10x160xf32>
    %62 = arith.addf %57, %61 : vector<10x160xf32>
    %63 = vector.extract_strided_slice %43 {offsets = [4, 0], sizes = [10, 84], strides = [1, 1]} : vector<14x84xf32> to vector<10x84xf32>
    %c4_65 = arith.constant 4 : index
    %c0_66 = arith.constant 0 : index
    %c0_67 = arith.constant 0 : index
    %64 = vector.load %arg8[%c4_65, %c0_66, %c0_67] : memref<5x84x160xf32, #tpu.memory_space<vmem>>, vector<1x84x160xf32>
    %65 = vector.shape_cast %64 : vector<1x84x160xf32> to vector<84x160xf32>
    %cst_68 = arith.constant dense<0.000000e+00> : vector<10x160xf32>
    %66 = tpu.matmul %63, %65, %cst_68 {dimension_numbers = #tpu.dot_dimension_numbers<[1], [0], [0], [1], [0, 0, 1, 1], [], []>} : vector<10x84xf32>, vector<84x160xf32>, vector<10x160xf32> -> vector<10x160xf32>
    %67 = arith.addf %62, %66 : vector<10x160xf32>
    %c0_69 = arith.constant 0 : index
    %c0_70 = arith.constant 0 : index
    %68 = vector.load %arg9[%c0_69, %c0_70] : memref<1x160xf32, #tpu.memory_space<vmem>>, vector<1x160xf32>
    %69 = vector.broadcast %68 : vector<1x160xf32> to vector<10x160xf32>
    %70 = arith.addf %67, %69 : vector<10x160xf32>
    %cst_71 = arith.constant 0.000000e+00 : f32
    %71 = vector.broadcast %cst_71 : f32 to vector<10x160xf32>
    %72 = arith.maximumf %70, %71 : vector<10x160xf32>
    %c0_72 = arith.constant 0 : index
    %c0_73 = arith.constant 0 : index
    %73 = vector.load %arg10[%c0_72, %c0_73] : memref<160x80xf32, #tpu.memory_space<vmem>>, vector<160x80xf32>
    %cst_74 = arith.constant dense<0.000000e+00> : vector<10x80xf32>
    %74 = tpu.matmul %72, %73, %cst_74 {dimension_numbers = #tpu.dot_dimension_numbers<[1], [0], [0], [1], [0, 0, 1, 1], [], []>} : vector<10x160xf32>, vector<160x80xf32>, vector<10x80xf32> -> vector<10x80xf32>
    %c0_75 = arith.constant 0 : index
    %c0_76 = arith.constant 0 : index
    %75 = vector.load %arg11[%c0_75, %c0_76] : memref<160x80xf32, #tpu.memory_space<vmem>>, vector<160x80xf32>
    %cst_77 = arith.constant dense<0.000000e+00> : vector<10x80xf32>
    %76 = tpu.matmul %72, %75, %cst_77 {dimension_numbers = #tpu.dot_dimension_numbers<[1], [0], [0], [1], [0, 0, 1, 1], [], []>} : vector<10x160xf32>, vector<160x80xf32>, vector<10x80xf32> -> vector<10x80xf32>
    %77 = arith.maximumf %74, %76 : vector<10x80xf32>
    %c0_78 = arith.constant 0 : index
    %c0_79 = arith.constant 0 : index
    %78 = vector.load %arg12[%c0_78, %c0_79] : memref<5x10xf32, #tpu.memory_space<vmem>>, vector<5x10xf32>
    %cst_80 = arith.constant dense<0.000000e+00> : vector<5x80xf32>
    %79 = tpu.matmul %78, %77, %cst_80 {dimension_numbers = #tpu.dot_dimension_numbers<[1], [0], [0], [1], [0, 0, 1, 1], [], []>} : vector<5x10xf32>, vector<10x80xf32>, vector<5x80xf32> -> vector<5x80xf32>
    %c0_81 = arith.constant 0 : index
    %c0_82 = arith.constant 0 : index
    %80 = vector.load %arg13[%c0_81, %c0_82] : memref<5x10xf32, #tpu.memory_space<vmem>>, vector<5x10xf32>
    %cst_83 = arith.constant dense<0.000000e+00> : vector<5x80xf32>
    %81 = tpu.matmul %80, %77, %cst_83 {dimension_numbers = #tpu.dot_dimension_numbers<[1], [0], [0], [1], [0, 0, 1, 1], [], []>} : vector<5x10xf32>, vector<10x80xf32>, vector<5x80xf32> -> vector<5x80xf32>
    %82 = arith.maximumf %79, %81 : vector<5x80xf32>
    %83 = vector.extract_strided_slice %82 {offsets = [0, 0], sizes = [1, 80], strides = [1, 1]} : vector<5x80xf32> to vector<1x80xf32>
    %c0_84 = arith.constant 0 : index
    %c0_85 = arith.constant 0 : index
    %c0_86 = arith.constant 0 : index
    %84 = vector.load %arg14[%c0_84, %c0_85, %c0_86] : memref<5x80x120xf32, #tpu.memory_space<vmem>>, vector<1x80x120xf32>
    %85 = vector.shape_cast %84 : vector<1x80x120xf32> to vector<80x120xf32>
    %cst_87 = arith.constant dense<0.000000e+00> : vector<1x120xf32>
    %86 = tpu.matmul %83, %85, %cst_87 {dimension_numbers = #tpu.dot_dimension_numbers<[1], [0], [0], [1], [0, 0, 1, 1], [], []>} : vector<1x80xf32>, vector<80x120xf32>, vector<1x120xf32> -> vector<1x120xf32>
    %87 = vector.extract_strided_slice %82 {offsets = [1, 0], sizes = [1, 80], strides = [1, 1]} : vector<5x80xf32> to vector<1x80xf32>
    %c1_88 = arith.constant 1 : index
    %c0_89 = arith.constant 0 : index
    %c0_90 = arith.constant 0 : index
    %88 = vector.load %arg14[%c1_88, %c0_89, %c0_90] : memref<5x80x120xf32, #tpu.memory_space<vmem>>, vector<1x80x120xf32>
    %89 = vector.shape_cast %88 : vector<1x80x120xf32> to vector<80x120xf32>
    %cst_91 = arith.constant dense<0.000000e+00> : vector<1x120xf32>
    %90 = tpu.matmul %87, %89, %cst_91 {dimension_numbers = #tpu.dot_dimension_numbers<[1], [0], [0], [1], [0, 0, 1, 1], [], []>} : vector<1x80xf32>, vector<80x120xf32>, vector<1x120xf32> -> vector<1x120xf32>
    %91 = arith.addf %86, %90 : vector<1x120xf32>
    %92 = vector.extract_strided_slice %82 {offsets = [2, 0], sizes = [1, 80], strides = [1, 1]} : vector<5x80xf32> to vector<1x80xf32>
    %c2_92 = arith.constant 2 : index
    %c0_93 = arith.constant 0 : index
    %c0_94 = arith.constant 0 : index
    %93 = vector.load %arg14[%c2_92, %c0_93, %c0_94] : memref<5x80x120xf32, #tpu.memory_space<vmem>>, vector<1x80x120xf32>
    %94 = vector.shape_cast %93 : vector<1x80x120xf32> to vector<80x120xf32>
    %cst_95 = arith.constant dense<0.000000e+00> : vector<1x120xf32>
    %95 = tpu.matmul %92, %94, %cst_95 {dimension_numbers = #tpu.dot_dimension_numbers<[1], [0], [0], [1], [0, 0, 1, 1], [], []>} : vector<1x80xf32>, vector<80x120xf32>, vector<1x120xf32> -> vector<1x120xf32>
    %96 = arith.addf %91, %95 : vector<1x120xf32>
    %97 = vector.extract_strided_slice %82 {offsets = [3, 0], sizes = [1, 80], strides = [1, 1]} : vector<5x80xf32> to vector<1x80xf32>
    %c3_96 = arith.constant 3 : index
    %c0_97 = arith.constant 0 : index
    %c0_98 = arith.constant 0 : index
    %98 = vector.load %arg14[%c3_96, %c0_97, %c0_98] : memref<5x80x120xf32, #tpu.memory_space<vmem>>, vector<1x80x120xf32>
    %99 = vector.shape_cast %98 : vector<1x80x120xf32> to vector<80x120xf32>
    %cst_99 = arith.constant dense<0.000000e+00> : vector<1x120xf32>
    %100 = tpu.matmul %97, %99, %cst_99 {dimension_numbers = #tpu.dot_dimension_numbers<[1], [0], [0], [1], [0, 0, 1, 1], [], []>} : vector<1x80xf32>, vector<80x120xf32>, vector<1x120xf32> -> vector<1x120xf32>
    %101 = arith.addf %96, %100 : vector<1x120xf32>
    %102 = vector.extract_strided_slice %82 {offsets = [4, 0], sizes = [1, 80], strides = [1, 1]} : vector<5x80xf32> to vector<1x80xf32>
    %c4_100 = arith.constant 4 : index
    %c0_101 = arith.constant 0 : index
    %c0_102 = arith.constant 0 : index
    %103 = vector.load %arg14[%c4_100, %c0_101, %c0_102] : memref<5x80x120xf32, #tpu.memory_space<vmem>>, vector<1x80x120xf32>
    %104 = vector.shape_cast %103 : vector<1x80x120xf32> to vector<80x120xf32>
    %cst_103 = arith.constant dense<0.000000e+00> : vector<1x120xf32>
    %105 = tpu.matmul %102, %104, %cst_103 {dimension_numbers = #tpu.dot_dimension_numbers<[1], [0], [0], [1], [0, 0, 1, 1], [], []>} : vector<1x80xf32>, vector<80x120xf32>, vector<1x120xf32> -> vector<1x120xf32>
    %106 = arith.addf %101, %105 : vector<1x120xf32>
    %c0_104 = arith.constant 0 : index
    %c0_105 = arith.constant 0 : index
    %107 = vector.load %arg15[%c0_104, %c0_105] : memref<1x120xf32, #tpu.memory_space<vmem>>, vector<1x120xf32>
    %108 = arith.addf %106, %107 : vector<1x120xf32>
    %cst_106 = arith.constant 0.000000e+00 : f32
    %109 = vector.broadcast %cst_106 : f32 to vector<1x120xf32>
    %110 = arith.maximumf %108, %109 : vector<1x120xf32>
    %c0_107 = arith.constant 0 : index
    %c0_108 = arith.constant 0 : index
    %111 = vector.load %arg16[%c0_107, %c0_108] : memref<120x84xf32, #tpu.memory_space<vmem>>, vector<120x84xf32>
    %cst_109 = arith.constant dense<0.000000e+00> : vector<1x84xf32>
    %112 = tpu.matmul %110, %111, %cst_109 {dimension_numbers = #tpu.dot_dimension_numbers<[1], [0], [0], [1], [0, 0, 1, 1], [], []>} : vector<1x120xf32>, vector<120x84xf32>, vector<1x84xf32> -> vector<1x84xf32>
    %c0_110 = arith.constant 0 : index
    %c0_111 = arith.constant 0 : index
    %113 = vector.load %arg17[%c0_110, %c0_111] : memref<1x84xf32, #tpu.memory_space<vmem>>, vector<1x84xf32>
    %114 = arith.addf %112, %113 : vector<1x84xf32>
    %cst_112 = arith.constant 0.000000e+00 : f32
    %115 = vector.broadcast %cst_112 : f32 to vector<1x84xf32>
    %116 = arith.maximumf %114, %115 : vector<1x84xf32>
    %c0_113 = arith.constant 0 : index
    %c0_114 = arith.constant 0 : index
    %117 = vector.load %arg18[%c0_113, %c0_114] : memref<84x128xf32, #tpu.memory_space<vmem>>, vector<84x128xf32>
    %cst_115 = arith.constant dense<0.000000e+00> : vector<1x128xf32>
    %118 = tpu.matmul %116, %117, %cst_115 {dimension_numbers = #tpu.dot_dimension_numbers<[1], [0], [0], [1], [0, 0, 1, 1], [], []>} : vector<1x84xf32>, vector<84x128xf32>, vector<1x128xf32> -> vector<1x128xf32>
    %c0_116 = arith.constant 0 : index
    %c0_117 = arith.constant 0 : index
    %119 = vector.load %arg19[%c0_116, %c0_117] : memref<1x128xf32, #tpu.memory_space<vmem>>, vector<1x128xf32>
    %120 = arith.addf %118, %119 : vector<1x128xf32>
    %c0_118 = arith.constant 0 : index
    %c0_119 = arith.constant 0 : index
    %c0_120 = arith.constant 0 : index
    %121 = vector.load %arg20[%c0_118, %c0_119, %c0_120] : memref<1x1x128xf32, #tpu.memory_space<vmem>>, vector<1x1x128xf32>
    %122 = vector.shape_cast %121 : vector<1x1x128xf32> to vector<1x128xf32>
    %123 = vector.shape_cast %120 : vector<1x128xf32> to vector<1x1x128xf32>
    tpu.vector_store %arg20[%c0_118, %c0_119, %c0_120], %123 {strides = array<i32>} : memref<1x1x128xf32, #tpu.memory_space<vmem>>, vector<1x1x128xf32>,
    return
  }
  func.func @transform_0(%arg0: i32) -> (i32, i32, i32, i32) {
    %c0_i32 = arith.constant 0 : i32
    %c0_i32_0 = arith.constant 0 : i32
    %c0_i32_1 = arith.constant 0 : i32
    %c0_i32_2 = arith.constant 0 : i32
    return %arg0, %c0_i32, %c0_i32_0, %c0_i32_1 : i32, i32, i32, i32
  }
  func.func @transform_1(%arg0: i32) -> (i32, i32, i32) {
    %c0_i32 = arith.constant 0 : i32
    %c0_i32_0 = arith.constant 0 : i32
    %c0_i32_1 = arith.constant 0 : i32
    %c0_i32_2 = arith.constant 0 : i32
    return %c0_i32, %c0_i32_0, %c0_i32_1 : i32, i32, i32
  }
  func.func @transform_2(%arg0: i32) -> (i32, i32) {
    %c0_i32 = arith.constant 0 : i32
    %c0_i32_0 = arith.constant 0 : i32
    %c0_i32_1 = arith.constant 0 : i32
    return %c0_i32, %c0_i32_0 : i32, i32
  }
  func.func @transform_3(%arg0: i32) -> (i32, i32) {
    %c0_i32 = arith.constant 0 : i32
    %c0_i32_0 = arith.constant 0 : i32
    %c0_i32_1 = arith.constant 0 : i32
    return %c0_i32, %c0_i32_0 : i32, i32
  }
  func.func @transform_4(%arg0: i32) -> (i32, i32) {
    %c0_i32 = arith.constant 0 : i32
    %c0_i32_0 = arith.constant 0 : i32
    %c0_i32_1 = arith.constant 0 : i32
    return %c0_i32, %c0_i32_0 : i32, i32
  }
  func.func @transform_5(%arg0: i32) -> (i32, i32) {
    %c0_i32 = arith.constant 0 : i32
    %c0_i32_0 = arith.constant 0 : i32
    %c0_i32_1 = arith.constant 0 : i32
    return %c0_i32, %c0_i32_0 : i32, i32
  }
  func.func @transform_6(%arg0: i32) -> (i32, i32) {
    %c0_i32 = arith.constant 0 : i32
    %c0_i32_0 = arith.constant 0 : i32
    %c0_i32_1 = arith.constant 0 : i32
    return %c0_i32, %c0_i32_0 : i32, i32
  }
  func.func @transform_7(%arg0: i32) -> (i32, i32, i32) {
    %c0_i32 = arith.constant 0 : i32
    %c0_i32_0 = arith.constant 0 : i32
    %c0_i32_1 = arith.constant 0 : i32
    %c0_i32_2 = arith.constant 0 : i32
    return %c0_i32, %c0_i32_0, %c0_i32_1 : i32, i32, i32
  }
  func.func @transform_8(%arg0: i32) -> (i32, i32) {
    %c0_i32 = arith.constant 0 : i32
    %c0_i32_0 = arith.constant 0 : i32
    %c0_i32_1 = arith.constant 0 : i32
    return %c0_i32, %c0_i32_0 : i32, i32
  }
  func.func @transform_9(%arg0: i32) -> (i32, i32) {
    %c0_i32 = arith.constant 0 : i32
    %c0_i32_0 = arith.constant 0 : i32
    %c0_i32_1 = arith.constant 0 : i32
    return %c0_i32, %c0_i32_0 : i32, i32
  }
  func.func @transform_10(%arg0: i32) -> (i32, i32) {
    %c0_i32 = arith.constant 0 : i32
    %c0_i32_0 = arith.constant 0 : i32
    %c0_i32_1 = arith.constant 0 : i32
    return %c0_i32, %c0_i32_0 : i32, i32
  }
  func.func @transform_11(%arg0: i32) -> (i32, i32) {
    %c0_i32 = arith.constant 0 : i32
    %c0_i32_0 = arith.constant 0 : i32
    %c0_i32_1 = arith.constant 0 : i32
    return %c0_i32, %c0_i32_0 : i32, i32
  }
  func.func @transform_12(%arg0: i32) -> (i32, i32) {
    %c0_i32 = arith.constant 0 : i32
    %c0_i32_0 = arith.constant 0 : i32
    %c0_i32_1 = arith.constant 0 : i32
    return %c0_i32, %c0_i32_0 : i32, i32
  }
  func.func @transform_13(%arg0: i32) -> (i32, i32, i32) {
    %c0_i32 = arith.constant 0 : i32
    %c0_i32_0 = arith.constant 0 : i32
    %c0_i32_1 = arith.constant 0 : i32
    %c0_i32_2 = arith.constant 0 : i32
    return %c0_i32, %c0_i32_0, %c0_i32_1 : i32, i32, i32
  }
  func.func @transform_14(%arg0: i32) -> (i32, i32) {
    %c0_i32 = arith.constant 0 : i32
    %c0_i32_0 = arith.constant 0 : i32
    %c0_i32_1 = arith.constant 0 : i32
    return %c0_i32, %c0_i32_0 : i32, i32
  }
  func.func @transform_15(%arg0: i32) -> (i32, i32) {
    %c0_i32 = arith.constant 0 : i32
    %c0_i32_0 = arith.constant 0 : i32
    %c0_i32_1 = arith.constant 0 : i32
    return %c0_i32, %c0_i32_0 : i32, i32
  }
  func.func @transform_16(%arg0: i32) -> (i32, i32) {
    %c0_i32 = arith.constant 0 : i32
    %c0_i32_0 = arith.constant 0 : i32
    %c0_i32_1 = arith.constant 0 : i32
    return %c0_i32, %c0_i32_0 : i32, i32
  }
  func.func @transform_17(%arg0: i32) -> (i32, i32) {
    %c0_i32 = arith.constant 0 : i32
    %c0_i32_0 = arith.constant 0 : i32
    %c0_i32_1 = arith.constant 0 : i32
    return %c0_i32, %c0_i32_0 : i32, i32
  }
  func.func @transform_18(%arg0: i32) -> (i32, i32) {
    %c0_i32 = arith.constant 0 : i32
    %c0_i32_0 = arith.constant 0 : i32
    %c0_i32_1 = arith.constant 0 : i32
    return %c0_i32, %c0_i32_0 : i32, i32
  }
  func.func @transform_19(%arg0: i32) -> (i32, i32, i32) {
    %c0_i32 = arith.constant 0 : i32
    %c0_i32_0 = arith.constant 0 : i32
    %c0_i32_1 = arith.constant 0 : i32
    return %arg0, %c0_i32, %c0_i32_0 : i32, i32, i32
  }
}

</mosaic_0001>

<llo_original>
// kernel: net_forward.1
$region0: #{net_forward.1}
  #allocation0 [shape = 'u32[]', space=smem, size = 0x4, offset = 0x4, fixed_abs, tag = 'smem constant byte address 0x4 - core index']
  #allocation1 [shape = 'u32[144,128]{1,0:T(1,128)}', space=vmem, size = 0x12000, scoped, tag = 'internal scratch']
  %s0 = inlined_call_operand.vmem [shape: f32[2,1,32,32], index: 0, kind: input, shape index: {}]
  %s1 = inlined_call_operand.vmem [shape: f32[5,32,168], index: 1, kind: input, shape index: {}]
  %s2 = inlined_call_operand.vmem [shape: f32[1,168], index: 2, kind: input, shape index: {}]
  %s3 = inlined_call_operand.vmem [shape: f32[168,84], index: 3, kind: input, shape index: {}]
  %s4 = inlined_call_operand.vmem [shape: f32[168,84], index: 4, kind: input, shape index: {}]
  %s5 = inlined_call_operand.vmem [shape: f32[14,28], index: 5, kind: input, shape index: {}]
  %s6 = inlined_call_operand.vmem [shape: f32[14,28], index: 6, kind: input, shape index: {}]
  %s7 = inlined_call_operand.vmem [shape: f32[5,84,160], index: 7, kind: input, shape index: {}]
  %s8 = inlined_call_operand.vmem [shape: f32[1,160], index: 8, kind: input, shape index: {}]
  %s9 = inlined_call_operand.vmem [shape: f32[160,80], index: 9, kind: input, shape index: {}]
  %s10 = inlined_call_operand.vmem [shape: f32[160,80], index: 10, kind: input, shape index: {}]
  %s11 = inlined_call_operand.vmem [shape: f32[5,10], index: 11, kind: input, shape index: {}]
  %s12 = inlined_call_operand.vmem [shape: f32[5,10], index: 12, kind: input, shape index: {}]
  %s13 = inlined_call_operand.vmem [shape: f32[5,80,120], index: 13, kind: input, shape index: {}]
  %s14 = inlined_call_operand.vmem [shape: f32[1,120], index: 14, kind: input, shape index: {}]
  %s15 = inlined_call_operand.vmem [shape: f32[120,84], index: 15, kind: input, shape index: {}]
  %s16 = inlined_call_operand.vmem [shape: f32[1,84], index: 16, kind: input, shape index: {}]
  %s17 = inlined_call_operand.vmem [shape: f32[84,128], index: 17, kind: input, shape index: {}]
  %s18 = inlined_call_operand.vmem [shape: f32[1,128], index: 18, kind: input, shape index: {}]
  %s19 = inlined_call_operand.hbm [shape: f32[2,1,128], index: 19, kind: output, shape index: {}]
  %s20 = sld [smem:[#allocation0]]
  $region109: #{net_forward.1} parent=0
    _
  %s22 = ssub.s32 1, %s20
  %s23 = scalar_select 0, %s22, %s20
  $region1: #{net_forward.1} parent=0
    #allocation2 [shape = 'u8[1024]{0}', space=vmem, size = 0x400, scoped, tag = 'output window, operand 0']
    #allocation3 [shape = 's32[2]{0}', space=sflag, size = 0x8, scoped, tag = 'scoped memory for net_forward.1']
    %24 = vsyncpa [#allocation3], 0
    %s25 = scalar_lea.sflag [#allocation3], 1
    %26 = vsyncpa %s25, 0
    loop: start=0, step=1, limit=4
    $region2: #{net_forward.1} parent=1 // loop_pre_header
      _
    $region3: #{net_forward.1} parent=1 // loop_header
      %s28 = sphi 0, %s32
      %p29 = scmp.ge.s32.totalorder %s28, 4
      %s38 = sphi 0, %s40
      %s41 = sphi 0, %s38
      %s42 = sphi 0, %s41
      %s58 = sphi 0, %s42
      %s62 = sphi 0, %s62
      %s64 = sphi 0, %s62
      %s65 = sphi 0, %s64
      %s79 = sphi 0, %s65
      %s83 = sphi 0, %s83
      %s85 = sphi 0, %s83
      %s86 = sphi 0, %s85
      %s100 = sphi 0, %s86
      %s104 = sphi 0, %s104
      %s106 = sphi 0, %s104
      %s107 = sphi 0, %s106
      %s121 = sphi 0, %s107
      %s125 = sphi 0, %s125
      %s127 = sphi 0, %s125
      %s128 = sphi 0, %s127
      %s142 = sphi 0, %s128
      %s146 = sphi 0, %s146
      %s148 = sphi 0, %s146
      %s149 = sphi 0, %s148
      %s163 = sphi 0, %s149
      %s167 = sphi 0, %s167
      %s169 = sphi 0, %s167
      %s170 = sphi 0, %s169
      %s184 = sphi 0, %s170
      %s188 = sphi 0, %s188
      %s190 = sphi 0, %s188
      %s191 = sphi 0, %s190
      %s205 = sphi 0, %s191
      %s209 = sphi 0, %s209
      %s211 = sphi 0, %s209
      %s212 = sphi 0, %s211
      %s226 = sphi 0, %s212
      %s230 = sphi 0, %s230
      %s232 = sphi 0, %s230
      %s233 = sphi 0, %s232
      %s247 = sphi 0, %s233
      %s251 = sphi 0, %s251
      %s253 = sphi 0, %s251
      %s254 = sphi 0, %s253
      %s268 = sphi 0, %s254
      %s272 = sphi 0, %s272
      %s274 = sphi 0, %s272
      %s275 = sphi 0, %s274
      %s289 = sphi 0, %s275
      %s293 = sphi 0, %s293
      %s295 = sphi 0, %s293
      %s296 = sphi 0, %s295
      %s310 = sphi 0, %s296
      %s314 = sphi 0, %s314
      %s316 = sphi 0, %s314
      %s317 = sphi 0, %s316
      %s331 = sphi 0, %s317
      %s335 = sphi 0, %s335
      %s337 = sphi 0, %s335
      %s338 = sphi 0, %s337
      %s352 = sphi 0, %s338
      %s356 = sphi 0, %s356
      %s358 = sphi 0, %s356
      %s359 = sphi 0, %s358
      %s373 = sphi 0, %s359
      %s377 = sphi 0, %s377
      %s379 = sphi 0, %s377
      %s380 = sphi 0, %s379
      %s394 = sphi 0, %s380
      %s398 = sphi 0, %s398
      %s400 = sphi 0, %s398
      %s401 = sphi 0, %s400
      %s415 = sphi 0, %s401
      %s419 = sphi 0, %s419
      %s421 = sphi 0, %s419
      %s422 = sphi 0, %s421
      %s436 = sphi 0, %s422
      %s442 = sphi 0, %s444
      %s445 = sphi 0, %s442
      %s446 = sphi 0, %s445
      %s462 = sphi 0, %s446
    $region4: #{net_forward.1} parent=1 // loop_header_branch
      %31 = sbr.rel (%p29) target = $region8
    $region5: #{net_forward.1} parent=1 // loop_body
      %s33 = ssub.s32 %s28, 1
      %s34 = ssub.s32 %s28, 2
      %s35 = sadd.s32 %s28, 1
      %s36 = ssub.s32 %s28, %s35
      %p37 = scmp.eq.s32.totalorder %s36, 0
      %s39 = sadd.s32 %s38, 1
      %s40 = scalar_select %p37, %s38, %s39
      %p43 = pneg %p37
      %p44 = scmp.eq.s32.totalorder %s28, 1
      %p45 = por %p43, %p44
      %p46 = scmp.ne.s32.totalorder %s38, %s41
      %p47 = scmp.eq.s32.totalorder %s28, 0
      %p48 = por %p46, %p47
      %p49 = scmp.ne.s32.totalorder %s38, %s41
      %p50 = scmp.eq.s32.totalorder %s33, 1
      %p51 = por %p49, %p50
      %p52 = scmp.ne.s32.totalorder %s41, %s42
      %p53 = scmp.eq.s32.totalorder %s33, 0
      %p54 = por %p52, %p53
      %p55 = scmp.ne.s32.totalorder %s41, %s42
      %p56 = scmp.eq.s32.totalorder %s34, 1
      %p57 = por %p55, %p56
      %p59 = scmp.ne.s32.totalorder %s42, %s58
      %p60 = scmp.eq.s32.totalorder %s34, 0
      %p61 = por %p59, %p60
      %s63 = sadd.s32 %s62, 1
      %p66 = scmp.eq.s32.totalorder %s28, 1
      %p67 = scmp.ne.s32.totalorder %s62, %s64
      %p68 = scmp.eq.s32.totalorder %s28, 0
      %p69 = por %p67, %p68
      %p70 = scmp.ne.s32.totalorder %s62, %s64
      %p71 = scmp.eq.s32.totalorder %s33, 1
      %p72 = por %p70, %p71
      %p73 = scmp.ne.s32.totalorder %s64, %s65
      %p74 = scmp.eq.s32.totalorder %s33, 0
      %p75 = por %p73, %p74
      %p76 = scmp.ne.s32.totalorder %s64, %s65
      %p77 = scmp.eq.s32.totalorder %s34, 1
      %p78 = por %p76, %p77
      %p80 = scmp.ne.s32.totalorder %s65, %s79
      %p81 = scmp.eq.s32.totalorder %s34, 0
      %p82 = por %p80, %p81
      %s84 = sadd.s32 %s83, 1
      %p87 = scmp.eq.s32.totalorder %s28, 1
      %p88 = scmp.ne.s32.totalorder %s83, %s85
      %p89 = scmp.eq.s32.totalorder %s28, 0
      %p90 = por %p88, %p89
      %p91 = scmp.ne.s32.totalorder %s83, %s85
      %p92 = scmp.eq.s32.totalorder %s33, 1
      %p93 = por %p91, %p92
      %p94 = scmp.ne.s32.totalorder %s85, %s86
      %p95 = scmp.eq.s32.totalorder %s33, 0
      %p96 = por %p94, %p95
      %p97 = scmp.ne.s32.totalorder %s85, %s86
      %p98 = scmp.eq.s32.totalorder %s34, 1
      %p99 = por %p97, %p98
      %p101 = scmp.ne.s32.totalorder %s86, %s100
      %p102 = scmp.eq.s32.totalorder %s34, 0
      %p103 = por %p101, %p102
      %s105 = sadd.s32 %s104, 1
      %p108 = scmp.eq.s32.totalorder %s28, 1
      %p109 = scmp.ne.s32.totalorder %s104, %s106
      %p110 = scmp.eq.s32.totalorder %s28, 0
      %p111 = por %p109, %p110
      %p112 = scmp.ne.s32.totalorder %s104, %s106
      %p113 = scmp.eq.s32.totalorder %s33, 1
      %p114 = por %p112, %p113
      %p115 = scmp.ne.s32.totalorder %s106, %s107
      %p116 = scmp.eq.s32.totalorder %s33, 0
      %p117 = por %p115, %p116
      %p118 = scmp.ne.s32.totalorder %s106, %s107
      %p119 = scmp.eq.s32.totalorder %s34, 1
      %p120 = por %p118, %p119
      %p122 = scmp.ne.s32.totalorder %s107, %s121
      %p123 = scmp.eq.s32.totalorder %s34, 0
      %p124 = por %p122, %p123
      %s126 = sadd.s32 %s125, 1
      %p129 = scmp.eq.s32.totalorder %s28, 1
      %p130 = scmp.ne.s32.totalorder %s125, %s127
      %p131 = scmp.eq.s32.totalorder %s28, 0
      %p132 = por %p130, %p131
      %p133 = scmp.ne.s32.totalorder %s125, %s127
      %p134 = scmp.eq.s32.totalorder %s33, 1
      %p135 = por %p133, %p134
      %p136 = scmp.ne.s32.totalorder %s127, %s128
      %p137 = scmp.eq.s32.totalorder %s33, 0
      %p138 = por %p136, %p137
      %p139 = scmp.ne.s32.totalorder %s127, %s128
      %p140 = scmp.eq.s32.totalorder %s34, 1
      %p141 = por %p139, %p140
      %p143 = scmp.ne.s32.totalorder %s128, %s142
      %p144 = scmp.eq.s32.totalorder %s34, 0
      %p145 = por %p143, %p144
      %s147 = sadd.s32 %s146, 1
      %p150 = scmp.eq.s32.totalorder %s28, 1
      %p151 = scmp.ne.s32.totalorder %s146, %s148
      %p152 = scmp.eq.s32.totalorder %s28, 0
      %p153 = por %p151, %p152
      %p154 = scmp.ne.s32.totalorder %s146, %s148
      %p155 = scmp.eq.s32.totalorder %s33, 1
      %p156 = por %p154, %p155
      %p157 = scmp.ne.s32.totalorder %s148, %s149
      %p158 = scmp.eq.s32.totalorder %s33, 0
      %p159 = por %p157, %p158
      %p160 = scmp.ne.s32.totalorder %s148, %s149
      %p161 = scmp.eq.s32.totalorder %s34, 1
      %p162 = por %p160, %p161
      %p164 = scmp.ne.s32.totalorder %s149, %s163
      %p165 = scmp.eq.s32.totalorder %s34, 0
      %p166 = por %p164, %p165
      %s168 = sadd.s32 %s167, 1
      %p171 = scmp.eq.s32.totalorder %s28, 1
      %p172 = scmp.ne.s32.totalorder %s167, %s169
      %p173 = scmp.eq.s32.totalorder %s28, 0
      %p174 = por %p172, %p173
      %p175 = scmp.ne.s32.totalorder %s167, %s169
      %p176 = scmp.eq.s32.totalorder %s33, 1
      %p177 = por %p175, %p176
      %p178 = scmp.ne.s32.totalorder %s169, %s170
      %p179 = scmp.eq.s32.totalorder %s33, 0
      %p180 = por %p178, %p179
      %p181 = scmp.ne.s32.totalorder %s169, %s170
      %p182 = scmp.eq.s32.totalorder %s34, 1
      %p183 = por %p181, %p182
      %p185 = scmp.ne.s32.totalorder %s170, %s184
      %p186 = scmp.eq.s32.totalorder %s34, 0
      %p187 = por %p185, %p186
      %s189 = sadd.s32 %s188, 1
      %p192 = scmp.eq.s32.totalorder %s28, 1
      %p193 = scmp.ne.s32.totalorder %s188, %s190
      %p194 = scmp.eq.s32.totalorder %s28, 0
      %p195 = por %p193, %p194
      %p196 = scmp.ne.s32.totalorder %s188, %s190
      %p197 = scmp.eq.s32.totalorder %s33, 1
      %p198 = por %p196, %p197
      %p199 = scmp.ne.s32.totalorder %s190, %s191
      %p200 = scmp.eq.s32.totalorder %s33, 0
      %p201 = por %p199, %p200
      %p202 = scmp.ne.s32.totalorder %s190, %s191
      %p203 = scmp.eq.s32.totalorder %s34, 1
      %p204 = por %p202, %p203
      %p206 = scmp.ne.s32.totalorder %s191, %s205
      %p207 = scmp.eq.s32.totalorder %s34, 0
      %p208 = por %p206, %p207
      %s210 = sadd.s32 %s209, 1
      %p213 = scmp.eq.s32.totalorder %s28, 1
      %p214 = scmp.ne.s32.totalorder %s209, %s211
      %p215 = scmp.eq.s32.totalorder %s28, 0
      %p216 = por %p214, %p215
      %p217 = scmp.ne.s32.totalorder %s209, %s211
      %p218 = scmp.eq.s32.totalorder %s33, 1
      %p219 = por %p217, %p218
      %p220 = scmp.ne.s32.totalorder %s211, %s212
      %p221 = scmp.eq.s32.totalorder %s33, 0
      %p222 = por %p220, %p221
      %p223 = scmp.ne.s32.totalorder %s211, %s212
      %p224 = scmp.eq.s32.totalorder %s34, 1
      %p225 = por %p223, %p224
      %p227 = scmp.ne.s32.totalorder %s212, %s226
      %p228 = scmp.eq.s32.totalorder %s34, 0
      %p229 = por %p227, %p228
      %s231 = sadd.s32 %s230, 1
      %p234 = scmp.eq.s32.totalorder %s28, 1
      %p235 = scmp.ne.s32.totalorder %s230, %s232
      %p236 = scmp.eq.s32.totalorder %s28, 0
      %p237 = por %p235, %p236
      %p238 = scmp.ne.s32.totalorder %s230, %s232
      %p239 = scmp.eq.s32.totalorder %s33, 1
      %p240 = por %p238, %p239
      %p241 = scmp.ne.s32.totalorder %s232, %s233
      %p242 = scmp.eq.s32.totalorder %s33, 0
      %p243 = por %p241, %p242
      %p244 = scmp.ne.s32.totalorder %s232, %s233
      %p245 = scmp.eq.s32.totalorder %s34, 1
      %p246 = por %p244, %p245
      %p248 = scmp.ne.s32.totalorder %s233, %s247
      %p249 = scmp.eq.s32.totalorder %s34, 0
      %p250 = por %p248, %p249
      %s252 = sadd.s32 %s251, 1
      %p255 = scmp.eq.s32.totalorder %s28, 1
      %p256 = scmp.ne.s32.totalorder %s251, %s253
      %p257 = scmp.eq.s32.totalorder %s28, 0
      %p258 = por %p256, %p257
      %p259 = scmp.ne.s32.totalorder %s251, %s253
      %p260 = scmp.eq.s32.totalorder %s33, 1
      %p261 = por %p259, %p260
      %p262 = scmp.ne.s32.totalorder %s253, %s254
      %p263 = scmp.eq.s32.totalorder %s33, 0
      %p264 = por %p262, %p263
      %p265 = scmp.ne.s32.totalorder %s253, %s254
      %p266 = scmp.eq.s32.totalorder %s34, 1
      %p267 = por %p265, %p266
      %p269 = scmp.ne.s32.totalorder %s254, %s268
      %p270 = scmp.eq.s32.totalorder %s34, 0
      %p271 = por %p269, %p270
      %s273 = sadd.s32 %s272, 1
      %p276 = scmp.eq.s32.totalorder %s28, 1
      %p277 = scmp.ne.s32.totalorder %s272, %s274
      %p278 = scmp.eq.s32.totalorder %s28, 0
      %p279 = por %p277, %p278
      %p280 = scmp.ne.s32.totalorder %s272, %s274
      %p281 = scmp.eq.s32.totalorder %s33, 1
      %p282 = por %p280, %p281
      %p283 = scmp.ne.s32.totalorder %s274, %s275
      %p284 = scmp.eq.s32.totalorder %s33, 0
      %p285 = por %p283, %p284
      %p286 = scmp.ne.s32.totalorder %s274, %s275
      %p287 = scmp.eq.s32.totalorder %s34, 1
      %p288 = por %p286, %p287
      %p290 = scmp.ne.s32.totalorder %s275, %s289
      %p291 = scmp.eq.s32.totalorder %s34, 0
      %p292 = por %p290, %p291
      %s294 = sadd.s32 %s293, 1
      %p297 = scmp.eq.s32.totalorder %s28, 1
      %p298 = scmp.ne.s32.totalorder %s293, %s295
      %p299 = scmp.eq.s32.totalorder %s28, 0
      %p300 = por %p298, %p299
      %p301 = scmp.ne.s32.totalorder %s293, %s295
      %p302 = scmp.eq.s32.totalorder %s33, 1
      %p303 = por %p301, %p302
      %p304 = scmp.ne.s32.totalorder %s295, %s296
      %p305 = scmp.eq.s32.totalorder %s33, 0
      %p306 = por %p304, %p305
      %p307 = scmp.ne.s32.totalorder %s295, %s296
      %p308 = scmp.eq.s32.totalorder %s34, 1
      %p309 = por %p307, %p308
      %p311 = scmp.ne.s32.totalorder %s296, %s310
      %p312 = scmp.eq.s32.totalorder %s34, 0
      %p313 = por %p311, %p312
      %s315 = sadd.s32 %s314, 1
      %p318 = scmp.eq.s32.totalorder %s28, 1
      %p319 = scmp.ne.s32.totalorder %s314, %s316
      %p320 = scmp.eq.s32.totalorder %s28, 0
      %p321 = por %p319, %p320
      %p322 = scmp.ne.s32.totalorder %s314, %s316
      %p323 = scmp.eq.s32.totalorder %s33, 1
      %p324 = por %p322, %p323
      %p325 = scmp.ne.s32.totalorder %s316, %s317
      %p326 = scmp.eq.s32.totalorder %s33, 0
      %p327 = por %p325, %p326
      %p328 = scmp.ne.s32.totalorder %s316, %s317
      %p329 = scmp.eq.s32.totalorder %s34, 1
      %p330 = por %p328, %p329
      %p332 = scmp.ne.s32.totalorder %s317, %s331
      %p333 = scmp.eq.s32.totalorder %s34, 0
      %p334 = por %p332, %p333
      %s336 = sadd.s32 %s335, 1
      %p339 = scmp.eq.s32.totalorder %s28, 1
      %p340 = scmp.ne.s32.totalorder %s335, %s337
      %p341 = scmp.eq.s32.totalorder %s28, 0
      %p342 = por %p340, %p341
      %p343 = scmp.ne.s32.totalorder %s335, %s337
      %p344 = scmp.eq.s32.totalorder %s33, 1
      %p345 = por %p343, %p344
      %p346 = scmp.ne.s32.totalorder %s337, %s338
      %p347 = scmp.eq.s32.totalorder %s33, 0
      %p348 = por %p346, %p347
      %p349 = scmp.ne.s32.totalorder %s337, %s338
      %p350 = scmp.eq.s32.totalorder %s34, 1
      %p351 = por %p349, %p350
      %p353 = scmp.ne.s32.totalorder %s338, %s352
      %p354 = scmp.eq.s32.totalorder %s34, 0
      %p355 = por %p353, %p354
      %s357 = sadd.s32 %s356, 1
      %p360 = scmp.eq.s32.totalorder %s28, 1
      %p361 = scmp.ne.s32.totalorder %s356, %s358
      %p362 = scmp.eq.s32.totalorder %s28, 0
      %p363 = por %p361, %p362
      %p364 = scmp.ne.s32.totalorder %s356, %s358
      %p365 = scmp.eq.s32.totalorder %s33, 1
      %p366 = por %p364, %p365
      %p367 = scmp.ne.s32.totalorder %s358, %s359
      %p368 = scmp.eq.s32.totalorder %s33, 0
      %p369 = por %p367, %p368
      %p370 = scmp.ne.s32.totalorder %s358, %s359
      %p371 = scmp.eq.s32.totalorder %s34, 1
      %p372 = por %p370, %p371
      %p374 = scmp.ne.s32.totalorder %s359, %s373
      %p375 = scmp.eq.s32.totalorder %s34, 0
      %p376 = por %p374, %p375
      %s378 = sadd.s32 %s377, 1
      %p381 = scmp.eq.s32.totalorder %s28, 1
      %p382 = scmp.ne.s32.totalorder %s377, %s379
      %p383 = scmp.eq.s32.totalorder %s28, 0
      %p384 = por %p382, %p383
      %p385 = scmp.ne.s32.totalorder %s377, %s379
      %p386 = scmp.eq.s32.totalorder %s33, 1
      %p387 = por %p385, %p386
      %p388 = scmp.ne.s32.totalorder %s379, %s380
      %p389 = scmp.eq.s32.totalorder %s33, 0
      %p390 = por %p388, %p389
      %p391 = scmp.ne.s32.totalorder %s379, %s380
      %p392 = scmp.eq.s32.totalorder %s34, 1
      %p393 = por %p391, %p392
      %p395 = scmp.ne.s32.totalorder %s380, %s394
      %p396 = scmp.eq.s32.totalorder %s34, 0
      %p397 = por %p395, %p396
      %s399 = sadd.s32 %s398, 1
      %p402 = scmp.eq.s32.totalorder %s28, 1
      %p403 = scmp.ne.s32.totalorder %s398, %s400
      %p404 = scmp.eq.s32.totalorder %s28, 0
      %p405 = por %p403, %p404
      %p406 = scmp.ne.s32.totalorder %s398, %s400
      %p407 = scmp.eq.s32.totalorder %s33, 1
      %p408 = por %p406, %p407
      %p409 = scmp.ne.s32.totalorder %s400, %s401
      %p410 = scmp.eq.s32.totalorder %s33, 0
      %p411 = por %p409, %p410
      %p412 = scmp.ne.s32.totalorder %s400, %s401
      %p413 = scmp.eq.s32.totalorder %s34, 1
      %p414 = por %p412, %p413
      %p416 = scmp.ne.s32.totalorder %s401, %s415
      %p417 = scmp.eq.s32.totalorder %s34, 0
      %p418 = por %p416, %p417
      %s420 = sadd.s32 %s419, 1
      %p423 = scmp.eq.s32.totalorder %s28, 1
      %p424 = scmp.ne.s32.totalorder %s419, %s421
      %p425 = scmp.eq.s32.totalorder %s28, 0
      %p426 = por %p424, %p425
      %p427 = scmp.ne.s32.totalorder %s419, %s421
      %p428 = scmp.eq.s32.totalorder %s33, 1
      %p429 = por %p427, %p428
      %p430 = scmp.ne.s32.totalorder %s421, %s422
      %p431 = scmp.eq.s32.totalorder %s33, 0
      %p432 = por %p430, %p431
      %p433 = scmp.ne.s32.totalorder %s421, %s422
      %p434 = scmp.eq.s32.totalorder %s34, 1
      %p435 = por %p433, %p434
      %p437 = scmp.ne.s32.totalorder %s422, %s436
      %p438 = scmp.eq.s32.totalorder %s34, 0
      %p439 = por %p437, %p438
      %s440 = ssub.s32 %s28, %s35
      %p441 = scmp.eq.s32.totalorder %s440, 0
      %s443 = sadd.s32 %s442, 1
      %s444 = scalar_select %p441, %s442, %s443
      %p447 = pneg %p441
      %p448 = scmp.eq.s32.totalorder %s28, 1
      %p449 = por %p447, %p448
      %p450 = scmp.ne.s32.totalorder %s442, %s445
      %p451 = scmp.eq.s32.totalorder %s28, 0
      %p452 = por %p450, %p451
      %p453 = scmp.ne.s32.totalorder %s442, %s445
      %p454 = scmp.eq.s32.totalorder %s33, 1
      %p455 = por %p453, %p454
      %p456 = scmp.ne.s32.totalorder %s445, %s446
      %p457 = scmp.eq.s32.totalorder %s33, 0
      %p458 = por %p456, %p457
      %p459 = scmp.ne.s32.totalorder %s445, %s446
      %p460 = scmp.eq.s32.totalorder %s34, 1
      %p461 = por %p459, %p460
      %p463 = scmp.ne.s32.totalorder %s446, %s462
      %p464 = scmp.eq.s32.totalorder %s34, 0
      %p465 = por %p463, %p464
      %p466 = scmp.le.s32.totalorder 1, %s28
      %p467 = scmp.lt.s32.totalorder %s28, 3
      %p468 = pnand %p466, %p467
      %p469 = pneg %p468
      // Predicated region
      $region9: #{net_forward.1} parent=5 // pred_check
        _
      $region10: #{net_forward.1} parent=5 // pred_check_branch
        %471 = sbr.rel (%p468) target = $region12
      $region11: #{net_forward.1} parent=5 // pred_region
        %s472 = ssub.s32 %s28, 1
        // Predicated region
        $region13: #{net_forward.1} parent=11 // pred_check
          %p473 = pneg %p75
        $region14: #{net_forward.1} parent=11 // pred_check_branch
          %475 = sbr.rel (%p473) target = $region16
        $region15: #{net_forward.1} parent=11 // pred_region
          _
        $region16: #{net_forward.1} parent=11 // pred_fallthru
          _
        // Predicated region
        $region17: #{net_forward.1} parent=11 // pred_check
          %p476 = pneg %p96
        $region18: #{net_forward.1} parent=11 // pred_check_branch
          %478 = sbr.rel (%p476) target = $region20
        $region19: #{net_forward.1} parent=11 // pred_region
          _
        $region20: #{net_forward.1} parent=11 // pred_fallthru
          _
        // Predicated region
        $region21: #{net_forward.1} parent=11 // pred_check
          %p479 = pneg %p117
        $region22: #{net_forward.1} parent=11 // pred_check_branch
          %481 = sbr.rel (%p479) target = $region24
        $region23: #{net_forward.1} parent=11 // pred_region
          _
        $region24: #{net_forward.1} parent=11 // pred_fallthru
          _
        // Predicated region
        $region25: #{net_forward.1} parent=11 // pred_check
          %p482 = pneg %p138
        $region26: #{net_forward.1} parent=11 // pred_check_branch
          %484 = sbr.rel (%p482) target = $region28
        $region27: #{net_forward.1} parent=11 // pred_region
          _
        $region28: #{net_forward.1} parent=11 // pred_fallthru
          _
        // Predicated region
        $region29: #{net_forward.1} parent=11 // pred_check
          %p485 = pneg %p159
        $region30: #{net_forward.1} parent=11 // pred_check_branch
          %487 = sbr.rel (%p485) target = $region32
        $region31: #{net_forward.1} parent=11 // pred_region
          _
        $region32: #{net_forward.1} parent=11 // pred_fallthru
          _
        // Predicated region
        $region33: #{net_forward.1} parent=11 // pred_check
          %p488 = pneg %p180
        $region34: #{net_forward.1} parent=11 // pred_check_branch
          %490 = sbr.rel (%p488) target = $region36
        $region35: #{net_forward.1} parent=11 // pred_region
          _
        $region36: #{net_forward.1} parent=11 // pred_fallthru
          _
        // Predicated region
        $region37: #{net_forward.1} parent=11 // pred_check
          %p491 = pneg %p201
        $region38: #{net_forward.1} parent=11 // pred_check_branch
          %493 = sbr.rel (%p491) target = $region40
        $region39: #{net_forward.1} parent=11 // pred_region
          _
        $region40: #{net_forward.1} parent=11 // pred_fallthru
          _
        // Predicated region
        $region41: #{net_forward.1} parent=11 // pred_check
          %p494 = pneg %p222
        $region42: #{net_forward.1} parent=11 // pred_check_branch
          %496 = sbr.rel (%p494) target = $region44
        $region43: #{net_forward.1} parent=11 // pred_region
          _
        $region44: #{net_forward.1} parent=11 // pred_fallthru
          _
        // Predicated region
        $region45: #{net_forward.1} parent=11 // pred_check
          %p497 = pneg %p243
        $region46: #{net_forward.1} parent=11 // pred_check_branch
          %499 = sbr.rel (%p497) target = $region48
        $region47: #{net_forward.1} parent=11 // pred_region
          _
        $region48: #{net_forward.1} parent=11 // pred_fallthru
          _
        // Predicated region
        $region49: #{net_forward.1} parent=11 // pred_check
          %p500 = pneg %p264
        $region50: #{net_forward.1} parent=11 // pred_check_branch
          %502 = sbr.rel (%p500) target = $region52
        $region51: #{net_forward.1} parent=11 // pred_region
          _
        $region52: #{net_forward.1} parent=11 // pred_fallthru
          _
        // Predicated region
        $region53: #{net_forward.1} parent=11 // pred_check
          %p503 = pneg %p285
        $region54: #{net_forward.1} parent=11 // pred_check_branch
          %505 = sbr.rel (%p503) target = $region56
        $region55: #{net_forward.1} parent=11 // pred_region
          _
        $region56: #{net_forward.1} parent=11 // pred_fallthru
          _
        // Predicated region
        $region57: #{net_forward.1} parent=11 // pred_check
          %p506 = pneg %p306
        $region58: #{net_forward.1} parent=11 // pred_check_branch
          %508 = sbr.rel (%p506) target = $region60
        $region59: #{net_forward.1} parent=11 // pred_region
          _
        $region60: #{net_forward.1} parent=11 // pred_fallthru
          _
        // Predicated region
        $region61: #{net_forward.1} parent=11 // pred_check
          %p509 = pneg %p327
        $region62: #{net_forward.1} parent=11 // pred_check_branch
          %511 = sbr.rel (%p509) target = $region64
        $region63: #{net_forward.1} parent=11 // pred_region
          _
        $region64: #{net_forward.1} parent=11 // pred_fallthru
          _
        // Predicated region
        $region65: #{net_forward.1} parent=11 // pred_check
          %p512 = pneg %p348
        $region66: #{net_forward.1} parent=11 // pred_check_branch
          %514 = sbr.rel (%p512) target = $region68
        $region67: #{net_forward.1} parent=11 // pred_region
          _
        $region68: #{net_forward.1} parent=11 // pred_fallthru
          _
        // Predicated region
        $region69: #{net_forward.1} parent=11 // pred_check
          %p515 = pneg %p369
        $region70: #{net_forward.1} parent=11 // pred_check_branch
          %517 = sbr.rel (%p515) target = $region72
        $region71: #{net_forward.1} parent=11 // pred_region
          _
        $region72: #{net_forward.1} parent=11 // pred_fallthru
          _
        // Predicated region
        $region73: #{net_forward.1} parent=11 // pred_check
          %p518 = pneg %p390
        $region74: #{net_forward.1} parent=11 // pred_check_branch
          %520 = sbr.rel (%p518) target = $region76
        $region75: #{net_forward.1} parent=11 // pred_region
          _
        $region76: #{net_forward.1} parent=11 // pred_fallthru
          _
        // Predicated region
        $region77: #{net_forward.1} parent=11 // pred_check
          %p521 = pneg %p411
        $region78: #{net_forward.1} parent=11 // pred_check_branch
          %523 = sbr.rel (%p521) target = $region80
        $region79: #{net_forward.1} parent=11 // pred_region
          _
        $region80: #{net_forward.1} parent=11 // pred_fallthru
          _
        // Predicated region
        $region81: #{net_forward.1} parent=11 // pred_check
          %p524 = pneg %p432
        $region82: #{net_forward.1} parent=11 // pred_check_branch
          %526 = sbr.rel (%p524) target = $region84
        $region83: #{net_forward.1} parent=11 // pred_region
          _
        $region84: #{net_forward.1} parent=11 // pred_fallthru
          _
      $region12: #{net_forward.1} parent=5 // pred_fallthru
        _
      %p527 = scmp.lt.s32.totalorder %s28, 2
      // Predicated region
      $region85: #{net_forward.1} parent=5 // pred_check
        %p528 = pneg %p527
      $region86: #{net_forward.1} parent=5 // pred_check_branch
        %530 = sbr.rel (%p528) target = $region88
      $region87: #{net_forward.1} parent=5 // pred_region
        // Predicated region
        $region89: #{net_forward.1} parent=87 // pred_check
          %p531 = pneg %p48
        $region90: #{net_forward.1} parent=87 // pred_check_branch
          %533 = sbr.rel (%p531) target = $region92
        $region91: #{net_forward.1} parent=87 // pred_region
          %p534 = scmp.lt.s32.totalorder %s28, 1
          %s535 = scalar_select %p534, %s28, 1
          %s536 = smul.addr %s535, 4
          %s537 = smul.addr %s536, 8
          %s538 = scalar_lea.vmem %s0, %s537
        $region92: #{net_forward.1} parent=87 // pred_fallthru
          _
      $region88: #{net_forward.1} parent=5 // pred_fallthru
        _
      %p539 = scmp.le.s32.totalorder 1, %s28
      %p540 = scmp.lt.s32.totalorder %s28, 3
      %p541 = pnand %p539, %p540
      %p542 = pneg %p541
      // Predicated region
      $region93: #{net_forward.1} parent=5 // pred_check
        _
      $region94: #{net_forward.1} parent=5 // pred_check_branch
        %544 = sbr.rel (%p541) target = $region96
      $region95: #{net_forward.1} parent=5 // pred_region
        %s545 = ssub.s32 %s28, 1
        %p546 = scmp.lt.s32.totalorder %s33, 1
        %s547 = scalar_select %p546, %s33, 1
        %s548 = smul.addr %s547, 4
        %s549 = smul.addr %s548, 8
        %s550 = scalar_lea.vmem %s0, %s549
        %p551 = pneg %p54
        %p552 = pneg %p51
        %p553 = pneg %p75
        %p554 = pneg %p72
        %p555 = pneg %p96
        %p556 = pneg %p93
        %p557 = pneg %p117
        %p558 = pneg %p114
        %p559 = pneg %p138
        %p560 = pneg %p135
        %p561 = pneg %p159
        %p562 = pneg %p156
        %p563 = pneg %p180
        %p564 = pneg %p177
        %p565 = pneg %p201
        %p566 = pneg %p198
        %p567 = pneg %p222
        %p568 = pneg %p219
        %p569 = pneg %p243
        %p570 = pneg %p240
        %p571 = pneg %p264
        %p572 = pneg %p261
        %p573 = pneg %p285
        %p574 = pneg %p282
        %p575 = pneg %p306
        %p576 = pneg %p303
        %p577 = pneg %p327
        %p578 = pneg %p324
        %p579 = pneg %p348
        %p580 = pneg %p345
        %p581 = pneg %p369
        %p582 = pneg %p366
        %p583 = pneg %p390
        %p584 = pneg %p387
        %p585 = pneg %p411
        %p586 = pneg %p408
        %p587 = pneg %p432
        %p588 = pneg %p429
        %p589 = pneg %p458
        %p590 = pneg %p455
        %s591 = sand.u32 %s445, 1
        %s592 = scalar_lea.sflag [#allocation3], %s591
        %s593 = sand.u32 %s445, 1
        %s594 = scalar_lea.vmem [#allocation2], %s593
        %p595 = scmp.lt.s32.totalorder %s33, 1
        %s596 = scalar_select %p595, %s33, 1
        %s597 = smul.addr %s596, 4
        %s598 = smul.addr %s597, 8
        %s599 = scalar_lea.vmem %s0, %s598
        %v600 = vld [vmem:[%s599] sm:$0xff]
        %v601 = vld [vmem:[%s599 + $0x8] sm:$0xff]
        %v602 = vld [vmem:[%s599 + $0x10] sm:$0xff]
        %v603 = vld [vmem:[%s599 + $0x18] sm:$0xf]
        %v604 = vld [vmem:[%s1] sm:$0xff]
        %v605 = vld [vmem:[%s1 + $0x8] sm:$0xff]
        %v606 = vld [vmem:[%s1 + $0x10] sm:$0xff]
        %v607 = vld [vmem:[%s1 + $0x18] sm:$0xff]
        %v608 = vld [vmem:[%s1 + $0x20] sm:$0xff]
        %v609 = vld [vmem:[%s1 + $0x28] sm:$0xff]
        %v610 = vld [vmem:[%s1 + $0x30] sm:$0xff]
        %v611 = vld [vmem:[%s1 + $0x38] sm:$0xff]
        %v612 = vld [vmem:[%s599 + $0x1] sm:$0xff]
        %v613 = vld [vmem:[%s599 + $0x9] sm:$0xff]
        %v614 = vld [vmem:[%s599 + $0x11] sm:$0xff]
        %v615 = vld [vmem:[%s599 + $0x19] sm:$0xf]
        %s616 = scalar_lea.vmem %s1, 64
        %v617 = vld [vmem:[%s616] sm:$0xff]
        %v618 = vld [vmem:[%s616 + $0x8] sm:$0xff]
        %v619 = vld [vmem:[%s616 + $0x10] sm:$0xff]
        %v620 = vld [vmem:[%s616 + $0x18] sm:$0xff]
        %v621 = vld [vmem:[%s616 + $0x20] sm:$0xff]
        %v622 = vld [vmem:[%s616 + $0x28] sm:$0xff]
        %v623 = vld [vmem:[%s616 + $0x30] sm:$0xff]
        %v624 = vld [vmem:[%s616 + $0x38] sm:$0xff]
        %vm625 = vcmask 261120
        %v627 = vsel %vm625, %v612, 0
        %v630 = vsel %vm625, %v613, 0
        %v633 = vsel %vm625, %v614, 0
        %v636 = vsel %vm625, %v615, 0
        %638 = vmatprep.subr.mxu0 %v618
        %639 = vmatpush1.msra.mxu0 %v617
        %640 = vmatprep.subr.mxu0 %v620
        %641 = vmatpush1.msra.mxu0 %v619
        %642 = vmatprep.subr.mxu0 %v622
        %643 = vmatpush1.msra.mxu0 %v621
        %644 = vmatprep.subr.mxu0 %v624
        %645 = vmatpush1.msra.mxu0 %v623
        %646 = vmatprep.subr.mxu0 0.0
        %647 = vmatpush1.msra.mxu0 0.0
        %648 = vmatprep.subr.mxu0 0.0
        %649 = vmatpush1.msra.mxu0 0.0
        %650 = vmatprep.subr.mxu0 0.0
        %651 = vmatpush1.msra.mxu0 0.0
        %652 = vmatprep.subr.mxu0 0.0
        %653 = vmatpush1.msra.mxu0 0.0
        %654 = vmatprep.subr.mxu0 0.0
        %655 = vmatpush1.msra.mxu0 0.0
        %656 = vmatprep.subr.mxu0 0.0
        %657 = vmatpush1.msra.mxu0 0.0
        %658 = vmatprep.subr.mxu0 0.0
        %659 = vmatpush1.msra.mxu0 0.0
        %660 = vmatprep.subr.mxu0 0.0
        %661 = vmatpush1.msra.mxu0 0.0
        %662 = vmatprep.subr.mxu0 0.0
        %663 = vmatpush1.msra.mxu0 0.0
        %664 = vmatprep.subr.mxu0 0.0
        %665 = vmatpush1.msra.mxu0 0.0
        %666 = vmatprep.subr.mxu0 0.0
        %667 = vmatpush1.msra.mxu0 0.0
        %668 = vmatprep.subr.mxu0 0.0
        %669 = vmatpush1.msra.mxu0 0.0
        %670 = vmatprep.subr.mxu0 0.0
        %671 = vmatpush1.msra.mxu0 0.0
        %672 = vmatprep.subr.mxu0 0.0
        %673 = vmatpush1.msra.mxu0 0.0
        %674 = vmatprep.subr.mxu0 0.0
        %675 = vmatpush1.msra.mxu0 0.0
        %676 = vmatprep.subr.mxu0 0.0
        %677 = vmatpush1.msra.mxu0 0.0
        %678 = vmatprep.subr.mxu0 0.0
        %679 = vmatpush1.msra.mxu0 0.0
        %680 = vmatprep.subr.mxu0 0.0
        %681 = vmatpush1.msra.mxu0 0.0
        %682 = vmatprep.subr.mxu0 0.0
        %683 = vmatpush1.msra.mxu0 0.0
        %684 = vmatprep.subr.mxu0 0.0
        %685 = vmatpush1.msra.mxu0 0.0
        %686 = vmatprep.subr.mxu0 0.0
        %687 = vmatpush1.msra.mxu0 0.0
        %688 = vmatprep.subr.mxu0 0.0
        %689 = vmatpush1.msra.mxu0 0.0
        %690 = vmatprep.subr.mxu0 0.0
        %691 = vmatpush1.msra.mxu0 0.0
        %692 = vmatprep.subr.mxu0 0.0
        %693 = vmatpush1.msra.mxu0 0.0
        %694 = vmatprep.subr.mxu0 0.0
        %695 = vmatpush1.msra.mxu0 0.0
        %696 = vmatprep.subr.mxu0 0.0
        %697 = vmatpush1.msra.mxu0 0.0
        %698 = vmatprep.subr.mxu0 0.0
        %699 = vmatpush1.msra.mxu0 0.0
        %700 = vmatprep.subr.mxu0 0.0
        %701 = vmatpush1.msra.mxu0 0.0
        %702 = vmatprep.mubr.f32.mxu0 0.0
        %703 = vmatmul.mubr.f32.gmra.mrb[0].mxu0 %v627
        %v704 = vpop.f32.mrb[0].mxu0
        %v705 = vadd.f32 0.0, %v704
        %v706 = vpop.f32.mrb[0].mxu0
        %v707 = vadd.f32 0.0, %v706
        %708 = vmatprep.mubr.f32.mxu0 0.0
        %709 = vmatmul.mubr.f32.gmra.mrb[0].mxu0 %v630
        %v710 = vpop.f32.mrb[0].mxu0
        %v711 = vadd.f32 0.0, %v710
        %v712 = vpop.f32.mrb[0].mxu0
        %v713 = vadd.f32 0.0, %v712
        %714 = vmatprep.mubr.f32.mxu0 0.0
        %715 = vmatmul.mubr.f32.gmra.mrb[0].mxu0 %v633
        %v716 = vpop.f32.mrb[0].mxu0
        %v717 = vadd.f32 0.0, %v716
        %v718 = vpop.f32.mrb[0].mxu0
        %v719 = vadd.f32 0.0, %v718
        %720 = vmatprep.mubr.f32.mxu0 0.0
        %721 = vmatmul.mubr.f32.gmra.mrb[0].mxu0 %v636
        %v722 = vpop.f32.mrb[0].mxu0
        %v723 = vadd.f32 0.0, %v722
        %v724 = vpop.f32.mrb[0].mxu0
        %v725 = vadd.f32 0.0, %v724
        %726 = vdwg.mxu0
        %v728 = vsel %vm625, %v600, 0
        %v731 = vsel %vm625, %v601, 0
        %v734 = vsel %vm625, %v602, 0
        %v737 = vsel %vm625, %v603, 0
        %739 = vmatprep.subr.mxu0 %v605
        %740 = vmatpush1.msra.mxu0 %v604
        %741 = vmatprep.subr.mxu0 %v607
        %742 = vmatpush1.msra.mxu0 %v606
        %743 = vmatprep.subr.mxu0 %v609
        %744 = vmatpush1.msra.mxu0 %v608
        %745 = vmatprep.subr.mxu0 %v611
        %746 = vmatpush1.msra.mxu0 %v610
        %747 = vmatprep.subr.mxu0 0.0
        %748 = vmatpush1.msra.mxu0 0.0
        %749 = vmatprep.subr.mxu0 0.0
        %750 = vmatpush1.msra.mxu0 0.0
        %751 = vmatprep.subr.mxu0 0.0
        %752 = vmatpush1.msra.mxu0 0.0
        %753 = vmatprep.subr.mxu0 0.0
        %754 = vmatpush1.msra.mxu0 0.0
        %755 = vmatprep.subr.mxu0 0.0
        %756 = vmatpush1.msra.mxu0 0.0
        %757 = vmatprep.subr.mxu0 0.0
        %758 = vmatpush1.msra.mxu0 0.0
        %759 = vmatprep.subr.mxu0 0.0
        %760 = vmatpush1.msra.mxu0 0.0
        %761 = vmatprep.subr.mxu0 0.0
        %762 = vmatpush1.msra.mxu0 0.0
        %763 = vmatprep.subr.mxu0 0.0
        %764 = vmatpush1.msra.mxu0 0.0
        %765 = vmatprep.subr.mxu0 0.0
        %766 = vmatpush1.msra.mxu0 0.0
        %767 = vmatprep.subr.mxu0 0.0
        %768 = vmatpush1.msra.mxu0 0.0
        %769 = vmatprep.subr.mxu0 0.0
        %770 = vmatpush1.msra.mxu0 0.0
        %771 = vmatprep.subr.mxu0 0.0
        %772 = vmatpush1.msra.mxu0 0.0
        %773 = vmatprep.subr.mxu0 0.0
        %774 = vmatpush1.msra.mxu0 0.0
        %775 = vmatprep.subr.mxu0 0.0
        %776 = vmatpush1.msra.mxu0 0.0
        %777 = vmatprep.subr.mxu0 0.0
        %778 = vmatpush1.msra.mxu0 0.0
        %779 = vmatprep.subr.mxu0 0.0
        %780 = vmatpush1.msra.mxu0 0.0
        %781 = vmatprep.subr.mxu0 0.0
        %782 = vmatpush1.msra.mxu0 0.0
        %783 = vmatprep.subr.mxu0 0.0
        %784 = vmatpush1.msra.mxu0 0.0
        %785 = vmatprep.subr.mxu0 0.0
        %786 = vmatpush1.msra.mxu0 0.0
        %787 = vmatprep.subr.mxu0 0.0
        %788 = vmatpush1.msra.mxu0 0.0
        %789 = vmatprep.subr.mxu0 0.0
        %790 = vmatpush1.msra.mxu0 0.0
        %791 = vmatprep.subr.mxu0 0.0
        %792 = vmatpush1.msra.mxu0 0.0
        %793 = vmatprep.subr.mxu0 0.0
        %794 = vmatpush1.msra.mxu0 0.0
        %795 = vmatprep.subr.mxu0 0.0
        %796 = vmatpush1.msra.mxu0 0.0
        %797 = vmatprep.subr.mxu0 0.0
        %798 = vmatpush1.msra.mxu0 0.0
        %799 = vmatprep.subr.mxu0 0.0
        %800 = vmatpush1.msra.mxu0 0.0
        %801 = vmatprep.subr.mxu0 0.0
        %802 = vmatpush1.msra.mxu0 0.0
        %803 = vmatprep.mubr.f32.mxu0 0.0
        %804 = vmatmul.mubr.f32.gmra.mrb[0].mxu0 %v728
        %v805 = vpop.f32.mrb[0].mxu0
        %v806 = vadd.f32 %v705, %v805
        %v807 = vpop.f32.mrb[0].mxu0
        %v808 = vadd.f32 %v707, %v807
        %809 = vmatprep.mubr.f32.mxu0 0.0
        %810 = vmatmul.mubr.f32.gmra.mrb[0].mxu0 %v731
        %v811 = vpop.f32.mrb[0].mxu0
        %v812 = vadd.f32 %v711, %v811
        %v813 = vpop.f32.mrb[0].mxu0
        %v814 = vadd.f32 %v713, %v813
        %815 = vmatprep.mubr.f32.mxu0 0.0
        %816 = vmatmul.mubr.f32.gmra.mrb[0].mxu0 %v734
        %v817 = vpop.f32.mrb[0].mxu0
        %v818 = vadd.f32 %v717, %v817
        %v819 = vpop.f32.mrb[0].mxu0
        %v820 = vadd.f32 %v719, %v819
        %821 = vmatprep.mubr.f32.mxu0 0.0
        %822 = vmatmul.mubr.f32.gmra.mrb[0].mxu0 %v737
        %v823 = vpop.f32.mrb[0].mxu0
        %v824 = vadd.f32 %v723, %v823
        %v825 = vpop.f32.mrb[0].mxu0
        %v826 = vadd.f32 %v725, %v825
        %827 = vdwg.mxu0
        %v828 = vld [vmem:[%s599 + $0x2] sm:$0xff]
        %v829 = vld [vmem:[%s599 + $0xa] sm:$0xff]
        %v830 = vld [vmem:[%s599 + $0x12] sm:$0xff]
        %v831 = vld [vmem:[%s599 + $0x1a] sm:$0xf]
        %s832 = scalar_lea.vmem %s1, 128
        %v833 = vld [vmem:[%s832] sm:$0xff]
        %v834 = vld [vmem:[%s832 + $0x8] sm:$0xff]
        %v835 = vld [vmem:[%s832 + $0x10] sm:$0xff]
        %v836 = vld [vmem:[%s832 + $0x18] sm:$0xff]
        %v837 = vld [vmem:[%s832 + $0x20] sm:$0xff]
        %v838 = vld [vmem:[%s832 + $0x28] sm:$0xff]
        %v839 = vld [vmem:[%s832 + $0x30] sm:$0xff]
        %v840 = vld [vmem:[%s832 + $0x38] sm:$0xff]
        %v842 = vsel %vm625, %v828, 0
        %v845 = vsel %vm625, %v829, 0
        %v848 = vsel %vm625, %v830, 0
        %v851 = vsel %vm625, %v831, 0
        %853 = vmatprep.subr.mxu0 %v834
        %854 = vmatpush1.msra.mxu0 %v833
        %855 = vmatprep.subr.mxu0 %v836
        %856 = vmatpush1.msra.mxu0 %v835
        %857 = vmatprep.subr.mxu0 %v838
        %858 = vmatpush1.msra.mxu0 %v837
        %859 = vmatprep.subr.mxu0 %v840
        %860 = vmatpush1.msra.mxu0 %v839
        %861 = vmatprep.subr.mxu0 0.0
        %862 = vmatpush1.msra.mxu0 0.0
        %863 = vmatprep.subr.mxu0 0.0
        %864 = vmatpush1.msra.mxu0 0.0
        %865 = vmatprep.subr.mxu0 0.0
        %866 = vmatpush1.msra.mxu0 0.0
        %867 = vmatprep.subr.mxu0 0.0
        %868 = vmatpush1.msra.mxu0 0.0
        %869 = vmatprep.subr.mxu0 0.0
        %870 = vmatpush1.msra.mxu0 0.0
        %871 = vmatprep.subr.mxu0 0.0
        %872 = vmatpush1.msra.mxu0 0.0
        %873 = vmatprep.subr.mxu0 0.0
        %874 = vmatpush1.msra.mxu0 0.0
        %875 = vmatprep.subr.mxu0 0.0
        %876 = vmatpush1.msra.mxu0 0.0
        %877 = vmatprep.subr.mxu0 0.0
        %878 = vmatpush1.msra.mxu0 0.0
        %879 = vmatprep.subr.mxu0 0.0
        %880 = vmatpush1.msra.mxu0 0.0
        %881 = vmatprep.subr.mxu0 0.0
        %882 = vmatpush1.msra.mxu0 0.0
        %883 = vmatprep.subr.mxu0 0.0
        %884 = vmatpush1.msra.mxu0 0.0
        %885 = vmatprep.subr.mxu0 0.0
        %886 = vmatpush1.msra.mxu0 0.0
        %887 = vmatprep.subr.mxu0 0.0
        %888 = vmatpush1.msra.mxu0 0.0
        %889 = vmatprep.subr.mxu0 0.0
        %890 = vmatpush1.msra.mxu0 0.0
        %891 = vmatprep.subr.mxu0 0.0
        %892 = vmatpush1.msra.mxu0 0.0
        %893 = vmatprep.subr.mxu0 0.0
        %894 = vmatpush1.msra.mxu0 0.0
        %895 = vmatprep.subr.mxu0 0.0
        %896 = vmatpush1.msra.mxu0 0.0
        %897 = vmatprep.subr.mxu0 0.0
        %898 = vmatpush1.msra.mxu0 0.0
        %899 = vmatprep.subr.mxu0 0.0
        %900 = vmatpush1.msra.mxu0 0.0
        %901 = vmatprep.subr.mxu0 0.0
        %902 = vmatpush1.msra.mxu0 0.0
        %903 = vmatprep.subr.mxu0 0.0
        %904 = vmatpush1.msra.mxu0 0.0
        %905 = vmatprep.subr.mxu0 0.0
        %906 = vmatpush1.msra.mxu0 0.0
        %907 = vmatprep.subr.mxu0 0.0
        %908 = vmatpush1.msra.mxu0 0.0
        %909 = vmatprep.subr.mxu0 0.0
        %910 = vmatpush1.msra.mxu0 0.0
        %911 = vmatprep.subr.mxu0 0.0
        %912 = vmatpush1.msra.mxu0 0.0
        %913 = vmatprep.subr.mxu0 0.0
        %914 = vmatpush1.msra.mxu0 0.0
        %915 = vmatprep.subr.mxu0 0.0
        %916 = vmatpush1.msra.mxu0 0.0
        %917 = vmatprep.mubr.f32.mxu0 0.0
        %918 = vmatmul.mubr.f32.gmra.mrb[0].mxu0 %v842
        %v919 = vpop.f32.mrb[0].mxu0
        %v920 = vadd.f32 0.0, %v919
        %v921 = vpop.f32.mrb[0].mxu0
        %v922 = vadd.f32 0.0, %v921
        %923 = vmatprep.mubr.f32.mxu0 0.0
        %924 = vmatmul.mubr.f32.gmra.mrb[0].mxu0 %v845
        %v925 = vpop.f32.mrb[0].mxu0
        %v926 = vadd.f32 0.0, %v925
        %v927 = vpop.f32.mrb[0].mxu0
        %v928 = vadd.f32 0.0, %v927
        %929 = vmatprep.mubr.f32.mxu0 0.0
        %930 = vmatmul.mubr.f32.gmra.mrb[0].mxu0 %v848
        %v931 = vpop.f32.mrb[0].mxu0
        %v932 = vadd.f32 0.0, %v931
        %v933 = vpop.f32.mrb[0].mxu0
        %v934 = vadd.f32 0.0, %v933
        %935 = vmatprep.mubr.f32.mxu0 0.0
        %936 = vmatmul.mubr.f32.gmra.mrb[0].mxu0 %v851
        %v937 = vpop.f32.mrb[0].mxu0
        %v938 = vadd.f32 0.0, %v937
        %v939 = vpop.f32.mrb[0].mxu0
        %v940 = vadd.f32 0.0, %v939
        %941 = vdwg.mxu0
        %v942 = vadd.f32 %v806, %v920
        %v943 = vadd.f32 %v808, %v922
        %v944 = vadd.f32 %v812, %v926
        %v945 = vadd.f32 %v814, %v928
        %v946 = vadd.f32 %v818, %v932
        %v947 = vadd.f32 %v820, %v934
        %v948 = vadd.f32 %v824, %v938
        %v949 = vadd.f32 %v826, %v940
        %v950 = vld [vmem:[%s599 + $0x3] sm:$0xff]
        %v951 = vld [vmem:[%s599 + $0xb] sm:$0xff]
        %v952 = vld [vmem:[%s599 + $0x13] sm:$0xff]
        %v953 = vld [vmem:[%s599 + $0x1b] sm:$0xf]
        %s954 = scalar_lea.vmem %s1, 192
        %v955 = vld [vmem:[%s954] sm:$0xff]
        %v956 = vld [vmem:[%s954 + $0x8] sm:$0xff]
        %v957 = vld [vmem:[%s954 + $0x10] sm:$0xff]
        %v958 = vld [vmem:[%s954 + $0x18] sm:$0xff]
        %v959 = vld [vmem:[%s954 + $0x20] sm:$0xff]
        %v960 = vld [vmem:[%s954 + $0x28] sm:$0xff]
        %v961 = vld [vmem:[%s954 + $0x30] sm:$0xff]
        %v962 = vld [vmem:[%s954 + $0x38] sm:$0xff]
        %v964 = vsel %vm625, %v950, 0
        %v967 = vsel %vm625, %v951, 0
        %v970 = vsel %vm625, %v952, 0
        %v973 = vsel %vm625, %v953, 0
        %975 = vmatprep.subr.mxu0 %v956
        %976 = vmatpush1.msra.mxu0 %v955
        %977 = vmatprep.subr.mxu0 %v958
        %978 = vmatpush1.msra.mxu0 %v957
        %979 = vmatprep.subr.mxu0 %v960
        %980 = vmatpush1.msra.mxu0 %v959
        %981 = vmatprep.subr.mxu0 %v962
        %982 = vmatpush1.msra.mxu0 %v961
        %983 = vmatprep.subr.mxu0 0.0
        %984 = vmatpush1.msra.mxu0 0.0
        %985 = vmatprep.subr.mxu0 0.0
        %986 = vmatpush1.msra.mxu0 0.0
        %987 = vmatprep.subr.mxu0 0.0
        %988 = vmatpush1.msra.mxu0 0.0
        %989 = vmatprep.subr.mxu0 0.0
        %990 = vmatpush1.msra.mxu0 0.0
        %991 = vmatprep.subr.mxu0 0.0
        %992 = vmatpush1.msra.mxu0 0.0
        %993 = vmatprep.subr.mxu0 0.0
        %994 = vmatpush1.msra.mxu0 0.0
        %995 = vmatprep.subr.mxu0 0.0
        %996 = vmatpush1.msra.mxu0 0.0
        %997 = vmatprep.subr.mxu0 0.0
        %998 = vmatpush1.msra.mxu0 0.0
        %999 = vmatprep.subr.mxu0 0.0
        %1000 = vmatpush1.msra.mxu0 0.0
        %1001 = vmatprep.subr.mxu0 0.0
        %1002 = vmatpush1.msra.mxu0 0.0
        %1003 = vmatprep.subr.mxu0 0.0
        %1004 = vmatpush1.msra.mxu0 0.0
        %1005 = vmatprep.subr.mxu0 0.0
        %1006 = vmatpush1.msra.mxu0 0.0
        %1007 = vmatprep.subr.mxu0 0.0
        %1008 = vmatpush1.msra.mxu0 0.0
        %1009 = vmatprep.subr.mxu0 0.0
        %1010 = vmatpush1.msra.mxu0 0.0
        %1011 = vmatprep.subr.mxu0 0.0
        %1012 = vmatpush1.msra.mxu0 0.0
        %1013 = vmatprep.subr.mxu0 0.0
        %1014 = vmatpush1.msra.mxu0 0.0
        %1015 = vmatprep.subr.mxu0 0.0
        %1016 = vmatpush1.msra.mxu0 0.0
        %1017 = vmatprep.subr.mxu0 0.0
        %1018 = vmatpush1.msra.mxu0 0.0
        %1019 = vmatprep.subr.mxu0 0.0
        %1020 = vmatpush1.msra.mxu0 0.0
        %1021 = vmatprep.subr.mxu0 0.0
        %1022 = vmatpush1.msra.mxu0 0.0
        %1023 = vmatprep.subr.mxu0 0.0
        %1024 = vmatpush1.msra.mxu0 0.0
        %1025 = vmatprep.subr.mxu0 0.0
        %1026 = vmatpush1.msra.mxu0 0.0
        %1027 = vmatprep.subr.mxu0 0.0
        %1028 = vmatpush1.msra.mxu0 0.0
        %1029 = vmatprep.subr.mxu0 0.0
        %1030 = vmatpush1.msra.mxu0 0.0
        %1031 = vmatprep.subr.mxu0 0.0
        %1032 = vmatpush1.msra.mxu0 0.0
        %1033 = vmatprep.subr.mxu0 0.0
        %1034 = vmatpush1.msra.mxu0 0.0
        %1035 = vmatprep.subr.mxu0 0.0
        %1036 = vmatpush1.msra.mxu0 0.0
        %1037 = vmatprep.subr.mxu0 0.0
        %1038 = vmatpush1.msra.mxu0 0.0
        %1039 = vmatprep.mubr.f32.mxu0 0.0
        %1040 = vmatmul.mubr.f32.gmra.mrb[0].mxu0 %v964
        %v1041 = vpop.f32.mrb[0].mxu0
        %v1042 = vadd.f32 0.0, %v1041
        %v1043 = vpop.f32.mrb[0].mxu0
        %v1044 = vadd.f32 0.0, %v1043
        %1045 = vmatprep.mubr.f32.mxu0 0.0
        %1046 = vmatmul.mubr.f32.gmra.mrb[0].mxu0 %v967
        %v1047 = vpop.f32.mrb[0].mxu0
        %v1048 = vadd.f32 0.0, %v1047
        %v1049 = vpop.f32.mrb[0].mxu0
        %v1050 = vadd.f32 0.0, %v1049
        %1051 = vmatprep.mubr.f32.mxu0 0.0
        %1052 = vmatmul.mubr.f32.gmra.mrb[0].mxu0 %v970
        %v1053 = vpop.f32.mrb[0].mxu0
        %v1054 = vadd.f32 0.0, %v1053
        %v1055 = vpop.f32.mrb[0].mxu0
        %v1056 = vadd.f32 0.0, %v1055
        %1057 = vmatprep.mubr.f32.mxu0 0.0
        %1058 = vmatmul.mubr.f32.gmra.mrb[0].mxu0 %v973
        %v1059 = vpop.f32.mrb[0].mxu0
        %v1060 = vadd.f32 0.0, %v1059
        %v1061 = vpop.f32.mrb[0].mxu0
        %v1062 = vadd.f32 0.0, %v1061
        %1063 = vdwg.mxu0
        %v1064 = vadd.f32 %v942, %v1042
        %v1065 = vadd.f32 %v943, %v1044
        %v1066 = vadd.f32 %v944, %v1048
        %v1067 = vadd.f32 %v945, %v1050
        %v1068 = vadd.f32 %v946, %v1054
        %v1069 = vadd.f32 %v947, %v1056
        %v1070 = vadd.f32 %v948, %v1060
        %v1071 = vadd.f32 %v949, %v1062
        %v1072 = vld [vmem:[%s599 + $0x4] sm:$0xff]
        %v1073 = vld [vmem:[%s599 + $0xc] sm:$0xff]
        %v1074 = vld [vmem:[%s599 + $0x14] sm:$0xff]
        %v1075 = vld [vmem:[%s599 + $0x1c] sm:$0xf]
        %s1076 = scalar_lea.vmem %s1, 256
        %v1077 = vld [vmem:[%s1076] sm:$0xff]
        %v1078 = vld [vmem:[%s1076 + $0x8] sm:$0xff]
        %v1079 = vld [vmem:[%s1076 + $0x10] sm:$0xff]
        %v1080 = vld [vmem:[%s1076 + $0x18] sm:$0xff]
        %v1081 = vld [vmem:[%s1076 + $0x20] sm:$0xff]
        %v1082 = vld [vmem:[%s1076 + $0x28] sm:$0xff]
        %v1083 = vld [vmem:[%s1076 + $0x30] sm:$0xff]
        %v1084 = vld [vmem:[%s1076 + $0x38] sm:$0xff]
        %v1086 = vsel %vm625, %v1072, 0
        %v1089 = vsel %vm625, %v1073, 0
        %v1092 = vsel %vm625, %v1074, 0
        %v1095 = vsel %vm625, %v1075, 0
        %1097 = vmatprep.subr.mxu0 %v1078
        %1098 = vmatpush1.msra.mxu0 %v1077
        %1099 = vmatprep.subr.mxu0 %v1080
        %1100 = vmatpush1.msra.mxu0 %v1079
        %1101 = vmatprep.subr.mxu0 %v1082
        %1102 = vmatpush1.msra.mxu0 %v1081
        %1103 = vmatprep.subr.mxu0 %v1084
        %1104 = vmatpush1.msra.mxu0 %v1083
        %1105 = vmatprep.subr.mxu0 0.0
        %1106 = vmatpush1.msra.mxu0 0.0
        %1107 = vmatprep.subr.mxu0 0.0
        %1108 = vmatpush1.msra.mxu0 0.0
        %1109 = vmatprep.subr.mxu0 0.0
        %1110 = vmatpush1.msra.mxu0 0.0
        %1111 = vmatprep.subr.mxu0 0.0
        %1112 = vmatpush1.msra.mxu0 0.0
        %1113 = vmatprep.subr.mxu0 0.0
        %1114 = vmatpush1.msra.mxu0 0.0
        %1115 = vmatprep.subr.mxu0 0.0
        %1116 = vmatpush1.msra.mxu0 0.0
        %1117 = vmatprep.subr.mxu0 0.0
        %1118 = vmatpush1.msra.mxu0 0.0
        %1119 = vmatprep.subr.mxu0 0.0
        %1120 = vmatpush1.msra.mxu0 0.0
        %1121 = vmatprep.subr.mxu0 0.0
        %1122 = vmatpush1.msra.mxu0 0.0
        %1123 = vmatprep.subr.mxu0 0.0
        %1124 = vmatpush1.msra.mxu0 0.0
        %1125 = vmatprep.subr.mxu0 0.0
        %1126 = vmatpush1.msra.mxu0 0.0
        %1127 = vmatprep.subr.mxu0 0.0
        %1128 = vmatpush1.msra.mxu0 0.0
        %1129 = vmatprep.subr.mxu0 0.0
        %1130 = vmatpush1.msra.mxu0 0.0
        %1131 = vmatprep.subr.mxu0 0.0
        %1132 = vmatpush1.msra.mxu0 0.0
        %1133 = vmatprep.subr.mxu0 0.0
        %1134 = vmatpush1.msra.mxu0 0.0
        %1135 = vmatprep.subr.mxu0 0.0
        %1136 = vmatpush1.msra.mxu0 0.0
        %1137 = vmatprep.subr.mxu0 0.0
        %1138 = vmatpush1.msra.mxu0 0.0
        %1139 = vmatprep.subr.mxu0 0.0
        %1140 = vmatpush1.msra.mxu0 0.0
        %1141 = vmatprep.subr.mxu0 0.0
        %1142 = vmatpush1.msra.mxu0 0.0
        %1143 = vmatprep.subr.mxu0 0.0
        %1144 = vmatpush1.msra.mxu0 0.0
        %1145 = vmatprep.subr.mxu0 0.0
        %1146 = vmatpush1.msra.mxu0 0.0
        %1147 = vmatprep.subr.mxu0 0.0
        %1148 = vmatpush1.msra.mxu0 0.0
        %1149 = vmatprep.subr.mxu0 0.0
        %1150 = vmatpush1.msra.mxu0 0.0
        %1151 = vmatprep.subr.mxu0 0.0
        %1152 = vmatpush1.msra.mxu0 0.0
        %1153 = vmatprep.subr.mxu0 0.0
        %1154 = vmatpush1.msra.mxu0 0.0
        %1155 = vmatprep.subr.mxu0 0.0
        %1156 = vmatpush1.msra.mxu0 0.0
        %1157 = vmatprep.subr.mxu0 0.0
        %1158 = vmatpush1.msra.mxu0 0.0
        %1159 = vmatprep.subr.mxu0 0.0
        %1160 = vmatpush1.msra.mxu0 0.0
        %1161 = vmatprep.mubr.f32.mxu0 0.0
        %1162 = vmatmul.mubr.f32.gmra.mrb[0].mxu0 %v1086
        %v1163 = vpop.f32.mrb[0].mxu0
        %v1164 = vadd.f32 0.0, %v1163
        %v1165 = vpop.f32.mrb[0].mxu0
        %v1166 = vadd.f32 0.0, %v1165
        %1167 = vmatprep.mubr.f32.mxu0 0.0
        %1168 = vmatmul.mubr.f32.gmra.mrb[0].mxu0 %v1089
        %v1169 = vpop.f32.mrb[0].mxu0
        %v1170 = vadd.f32 0.0, %v1169
        %v1171 = vpop.f32.mrb[0].mxu0
        %v1172 = vadd.f32 0.0, %v1171
        %1173 = vmatprep.mubr.f32.mxu0 0.0
        %1174 = vmatmul.mubr.f32.gmra.mrb[0].mxu0 %v1092
        %v1175 = vpop.f32.mrb[0].mxu0
        %v1176 = vadd.f32 0.0, %v1175
        %v1177 = vpop.f32.mrb[0].mxu0
        %v1178 = vadd.f32 0.0, %v1177
        %1179 = vmatprep.mubr.f32.mxu0 0.0
        %1180 = vmatmul.mubr.f32.gmra.mrb[0].mxu0 %v1095
        %v1181 = vpop.f32.mrb[0].mxu0
        %v1182 = vadd.f32 0.0, %v1181
        %v1183 = vpop.f32.mrb[0].mxu0
        %v1184 = vadd.f32 0.0, %v1183
        %1185 = vdwg.mxu0
        %v1186 = vadd.f32 %v1064, %v1164
        %v1187 = vadd.f32 %v1065, %v1166
        %v1188 = vadd.f32 %v1066, %v1170
        %v1189 = vadd.f32 %v1067, %v1172
        %v1190 = vadd.f32 %v1068, %v1176
        %v1191 = vadd.f32 %v1069, %v1178
        %v1192 = vadd.f32 %v1070, %v1182
        %v1193 = vadd.f32 %v1071, %v1184
        %v1194 = vld [vmem:[%s2] sm:$0x3]
        %v1196 = vlaneseq
        %v1197 = vshrl.u32 %v1196, 7
        %v1198 = vsub.s32 0, %v1197
        %v1199 = vrot.slane %v1194, %v1198
        %v1200 = vlaneseq
        %v1201 = vshrl.u32 %v1200, 7
        %v1202 = vsub.s32 1, %v1201
        %v1203 = vrot.slane %v1194, %v1202
        %v1206 = vadd.f32 %v1186, %v1199
        %v1207 = vadd.f32 %v1187, %v1203
        %v1208 = vadd.f32 %v1188, %v1199
        %v1209 = vadd.f32 %v1189, %v1203
        %v1210 = vadd.f32 %v1190, %v1199
        %v1211 = vadd.f32 %v1191, %v1203
        %v1212 = vadd.f32 %v1192, %v1199
        %v1213 = vadd.f32 %v1193, %v1203
        %v1214 = vmax.f32 %v1206, 0.0
        %v1215 = vmax.f32 %v1207, 0.0
        %v1216 = vmax.f32 %v1208, 0.0
        %v1217 = vmax.f32 %v1209, 0.0
        %v1218 = vmax.f32 %v1210, 0.0
        %v1219 = vmax.f32 %v1211, 0.0
        %v1220 = vmax.f32 %v1212, 0.0
        %v1221 = vmax.f32 %v1213, 0.0
        %v1222 = vld [vmem:[%s3] sm:$0xff]
        %v1223 = vld [vmem:[%s3 + $0x8] sm:$0xff]
        %v1224 = vld [vmem:[%s3 + $0x10] sm:$0xff]
        %v1225 = vld [vmem:[%s3 + $0x18] sm:$0xff]
        %v1226 = vld [vmem:[%s3 + $0x20] sm:$0xff]
        %v1227 = vld [vmem:[%s3 + $0x28] sm:$0xff]
        %v1228 = vld [vmem:[%s3 + $0x30] sm:$0xff]
        %v1229 = vld [vmem:[%s3 + $0x38] sm:$0xff]
        %v1230 = vld [vmem:[%s3 + $0x40] sm:$0xff]
        %v1231 = vld [vmem:[%s3 + $0x48] sm:$0xff]
        %v1232 = vld [vmem:[%s3 + $0x50] sm:$0xff]
        %v1233 = vld [vmem:[%s3 + $0x58] sm:$0xff]
        %v1234 = vld [vmem:[%s3 + $0x60] sm:$0xff]
        %v1235 = vld [vmem:[%s3 + $0x68] sm:$0xff]
        %v1236 = vld [vmem:[%s3 + $0x70] sm:$0xff]
        %v1237 = vld [vmem:[%s3 + $0x78] sm:$0xff]
        %v1238 = vld [vmem:[%s3 + $0x80] sm:$0xff]
        %v1239 = vld [vmem:[%s3 + $0x88] sm:$0xff]
        %v1240 = vld [vmem:[%s3 + $0x90] sm:$0xff]
        %v1241 = vld [vmem:[%s3 + $0x98] sm:$0xff]
        %v1242 = vld [vmem:[%s3 + $0xa0] sm:$0xff]
        %vm1243 = vcmask 326656
        %v1245 = vsel %vm1243, %v1215, 0
        %v1248 = vsel %vm1243, %v1217, 0
        %v1251 = vsel %vm1243, %v1219, 0
        %v1254 = vsel %vm1243, %v1221, 0
        %1256 = vmatprep.subr.mxu0 0.0
        %1257 = vmatpush1.msra.mxu0 %v1222
        %1258 = vmatprep.subr.mxu0 0.0
        %1259 = vmatpush1.msra.mxu0 %v1223
        %1260 = vmatprep.subr.mxu0 0.0
        %1261 = vmatpush1.msra.mxu0 %v1224
        %1262 = vmatprep.subr.mxu0 0.0
        %1263 = vmatpush1.msra.mxu0 %v1225
        %1264 = vmatprep.subr.mxu0 0.0
        %1265 = vmatpush1.msra.mxu0 %v1226
        %1266 = vmatprep.subr.mxu0 0.0
        %1267 = vmatpush1.msra.mxu0 %v1227
        %1268 = vmatprep.subr.mxu0 0.0
        %1269 = vmatpush1.msra.mxu0 %v1228
        %1270 = vmatprep.subr.mxu0 0.0
        %1271 = vmatpush1.msra.mxu0 %v1229
        %1272 = vmatprep.subr.mxu0 0.0
        %1273 = vmatpush1.msra.mxu0 %v1230
        %1274 = vmatprep.subr.mxu0 0.0
        %1275 = vmatpush1.msra.mxu0 %v1231
        %1276 = vmatprep.subr.mxu0 0.0
        %1277 = vmatpush1.msra.mxu0 %v1232
        %1278 = vmatprep.subr.mxu0 0.0
        %1279 = vmatpush1.msra.mxu0 %v1233
        %1280 = vmatprep.subr.mxu0 0.0
        %1281 = vmatpush1.msra.mxu0 %v1234
        %1282 = vmatprep.subr.mxu0 0.0
        %1283 = vmatpush1.msra.mxu0 %v1235
        %1284 = vmatprep.subr.mxu0 0.0
        %1285 = vmatpush1.msra.mxu0 %v1236
        %1286 = vmatprep.subr.mxu0 0.0
        %1287 = vmatpush1.msra.mxu0 %v1237
        %1288 = vmatprep.subr.mxu0 0.0
        %1289 = vmatpush1.msra.mxu0 %v1238
        %1290 = vmatprep.subr.mxu0 0.0
        %1291 = vmatpush1.msra.mxu0 %v1239
        %1292 = vmatprep.subr.mxu0 0.0
        %1293 = vmatpush1.msra.mxu0 %v1240
        %1294 = vmatprep.subr.mxu0 0.0
        %1295 = vmatpush1.msra.mxu0 %v1241
        %1296 = vmatprep.subr.mxu0 0.0
        %1297 = vmatpush1.msra.mxu0 %v1242
        %1298 = vmatprep.subr.mxu0 0.0
        %1299 = vmatpush1.msra.mxu0 0.0
        %1300 = vmatprep.subr.mxu0 0.0
        %1301 = vmatpush1.msra.mxu0 0.0
        %1302 = vmatprep.subr.mxu0 0.0
        %1303 = vmatpush1.msra.mxu0 0.0
        %1304 = vmatprep.subr.mxu0 0.0
        %1305 = vmatpush1.msra.mxu0 0.0
        %1306 = vmatprep.subr.mxu0 0.0
        %1307 = vmatpush1.msra.mxu0 0.0
        %1308 = vmatprep.subr.mxu0 0.0
        %1309 = vmatpush1.msra.mxu0 0.0
        %1310 = vmatprep.subr.mxu0 0.0
        %1311 = vmatpush1.msra.mxu0 0.0
        %1312 = vmatprep.subr.mxu0 0.0
        %1313 = vmatpush1.msra.mxu0 0.0
        %1314 = vmatprep.subr.mxu0 0.0
        %1315 = vmatpush1.msra.mxu0 0.0
        %1316 = vmatprep.subr.mxu0 0.0
        %1317 = vmatpush1.msra.mxu0 0.0
        %1318 = vmatprep.subr.mxu0 0.0
        %1319 = vmatpush1.msra.mxu0 0.0
        %1320 = vmatprep.mubr.f32.mxu0 %v1245
        %1321 = vmatmul.mubr.f32.gmra.mrb[0].mxu0 %v1214
        %v1322 = vpop.f32.mrb[0].mxu0
        %v1323 = vadd.f32 0.0, %v1322
        %v1324 = vpop.f32.mrb[0].mxu0
        %1325 = vmatprep.mubr.f32.mxu0 %v1248
        %1326 = vmatmul.mubr.f32.gmra.mrb[0].mxu0 %v1216
        %v1327 = vpop.f32.mrb[0].mxu0
        %v1328 = vadd.f32 0.0, %v1327
        %v1329 = vpop.f32.mrb[0].mxu0
        %1330 = vmatprep.mubr.f32.mxu0 %v1251
        %1331 = vmatmul.mubr.f32.gmra.mrb[0].mxu0 %v1218
        %v1332 = vpop.f32.mrb[0].mxu0
        %v1333 = vadd.f32 0.0, %v1332
        %v1334 = vpop.f32.mrb[0].mxu0
        %1335 = vmatprep.mubr.f32.mxu0 %v1254
        %1336 = vmatmul.mubr.f32.gmra.mrb[0].mxu0 %v1220
        %v1337 = vpop.f32.mrb[0].mxu0
        %v1338 = vadd.f32 0.0, %v1337
        %v1339 = vpop.f32.mrb[0].mxu0
        %1340 = vdwg.mxu0
        %v1341 = vld [vmem:[%s4] sm:$0xff]
        %v1342 = vld [vmem:[%s4 + $0x8] sm:$0xff]
        %v1343 = vld [vmem:[%s4 + $0x10] sm:$0xff]
        %v1344 = vld [vmem:[%s4 + $0x18] sm:$0xff]
        %v1345 = vld [vmem:[%s4 + $0x20] sm:$0xff]
        %v1346 = vld [vmem:[%s4 + $0x28] sm:$0xff]
        %v1347 = vld [vmem:[%s4 + $0x30] sm:$0xff]
        %v1348 = vld [vmem:[%s4 + $0x38] sm:$0xff]
        %v1349 = vld [vmem:[%s4 + $0x40] sm:$0xff]
        %v1350 = vld [vmem:[%s4 + $0x48] sm:$0xff]
        %v1351 = vld [vmem:[%s4 + $0x50] sm:$0xff]
        %v1352 = vld [vmem:[%s4 + $0x58] sm:$0xff]
        %v1353 = vld [vmem:[%s4 + $0x60] sm:$0xff]
        %v1354 = vld [vmem:[%s4 + $0x68] sm:$0xff]
        %v1355 = vld [vmem:[%s4 + $0x70] sm:$0xff]
        %v1356 = vld [vmem:[%s4 + $0x78] sm:$0xff]
        %v1357 = vld [vmem:[%s4 + $0x80] sm:$0xff]
        %v1358 = vld [vmem:[%s4 + $0x88] sm:$0xff]
        %v1359 = vld [vmem:[%s4 + $0x90] sm:$0xff]
        %v1360 = vld [vmem:[%s4 + $0x98] sm:$0xff]
        %v1361 = vld [vmem:[%s4 + $0xa0] sm:$0xff]
        %1362 = vmatprep.subr.mxu0 0.0
        %1363 = vmatpush1.msra.mxu0 %v1341
        %1364 = vmatprep.subr.mxu0 0.0
        %1365 = vmatpush1.msra.mxu0 %v1342
        %1366 = vmatprep.subr.mxu0 0.0
        %1367 = vmatpush1.msra.mxu0 %v1343
        %1368 = vmatprep.subr.mxu0 0.0
        %1369 = vmatpush1.msra.mxu0 %v1344
        %1370 = vmatprep.subr.mxu0 0.0
        %1371 = vmatpush1.msra.mxu0 %v1345
        %1372 = vmatprep.subr.mxu0 0.0
        %1373 = vmatpush1.msra.mxu0 %v1346
        %1374 = vmatprep.subr.mxu0 0.0
        %1375 = vmatpush1.msra.mxu0 %v1347
        %1376 = vmatprep.subr.mxu0 0.0
        %1377 = vmatpush1.msra.mxu0 %v1348
        %1378 = vmatprep.subr.mxu0 0.0
        %1379 = vmatpush1.msra.mxu0 %v1349
        %1380 = vmatprep.subr.mxu0 0.0
        %1381 = vmatpush1.msra.mxu0 %v1350
        %1382 = vmatprep.subr.mxu0 0.0
        %1383 = vmatpush1.msra.mxu0 %v1351
        %1384 = vmatprep.subr.mxu0 0.0
        %1385 = vmatpush1.msra.mxu0 %v1352
        %1386 = vmatprep.subr.mxu0 0.0
        %1387 = vmatpush1.msra.mxu0 %v1353
        %1388 = vmatprep.subr.mxu0 0.0
        %1389 = vmatpush1.msra.mxu0 %v1354
        %1390 = vmatprep.subr.mxu0 0.0
        %1391 = vmatpush1.msra.mxu0 %v1355
        %1392 = vmatprep.subr.mxu0 0.0
        %1393 = vmatpush1.msra.mxu0 %v1356
        %1394 = vmatprep.subr.mxu0 0.0
        %1395 = vmatpush1.msra.mxu0 %v1357
        %1396 = vmatprep.subr.mxu0 0.0
        %1397 = vmatpush1.msra.mxu0 %v1358
        %1398 = vmatprep.subr.mxu0 0.0
        %1399 = vmatpush1.msra.mxu0 %v1359
        %1400 = vmatprep.subr.mxu0 0.0
        %1401 = vmatpush1.msra.mxu0 %v1360
        %1402 = vmatprep.subr.mxu0 0.0
        %1403 = vmatpush1.msra.mxu0 %v1361
        %1404 = vmatprep.subr.mxu0 0.0
        %1405 = vmatpush1.msra.mxu0 0.0
        %1406 = vmatprep.subr.mxu0 0.0
        %1407 = vmatpush1.msra.mxu0 0.0
        %1408 = vmatprep.subr.mxu0 0.0
        %1409 = vmatpush1.msra.mxu0 0.0
        %1410 = vmatprep.subr.mxu0 0.0
        %1411 = vmatpush1.msra.mxu0 0.0
        %1412 = vmatprep.subr.mxu0 0.0
        %1413 = vmatpush1.msra.mxu0 0.0
        %1414 = vmatprep.subr.mxu0 0.0
        %1415 = vmatpush1.msra.mxu0 0.0
        %1416 = vmatprep.subr.mxu0 0.0
        %1417 = vmatpush1.msra.mxu0 0.0
        %1418 = vmatprep.subr.mxu0 0.0
        %1419 = vmatpush1.msra.mxu0 0.0
        %1420 = vmatprep.subr.mxu0 0.0
        %1421 = vmatpush1.msra.mxu0 0.0
        %1422 = vmatprep.subr.mxu0 0.0
        %1423 = vmatpush1.msra.mxu0 0.0
        %1424 = vmatprep.subr.mxu0 0.0
        %1425 = vmatpush1.msra.mxu0 0.0
        %1426 = vmatprep.mubr.f32.mxu0 %v1245
        %1427 = vmatmul.mubr.f32.gmra.mrb[0].mxu0 %v1214
        %v1428 = vpop.f32.mrb[0].mxu0
        %v1429 = vadd.f32 0.0, %v1428
        %v1430 = vpop.f32.mrb[0].mxu0
        %1431 = vmatprep.mubr.f32.mxu0 %v1248
        %1432 = vmatmul.mubr.f32.gmra.mrb[0].mxu0 %v1216
        %v1433 = vpop.f32.mrb[0].mxu0
        %v1434 = vadd.f32 0.0, %v1433
        %v1435 = vpop.f32.mrb[0].mxu0
        %1436 = vmatprep.mubr.f32.mxu0 %v1251
        %1437 = vmatmul.mubr.f32.gmra.mrb[0].mxu0 %v1218
        %v1438 = vpop.f32.mrb[0].mxu0
        %v1439 = vadd.f32 0.0, %v1438
        %v1440 = vpop.f32.mrb[0].mxu0
        %1441 = vmatprep.mubr.f32.mxu0 %v1254
        %1442 = vmatmul.mubr.f32.gmra.mrb[0].mxu0 %v1220
        %v1443 = vpop.f32.mrb[0].mxu0
        %v1444 = vadd.f32 0.0, %v1443
        %v1445 = vpop.f32.mrb[0].mxu0
        %1446 = vdwg.mxu0
        %v1447 = vmax.f32 %v1323, %v1429
        %v1448 = vmax.f32 %v1328, %v1434
        %v1449 = vmax.f32 %v1333, %v1439
        %v1450 = vmax.f32 %v1338, %v1444
        %v1451 = vld [vmem:[%s5] sm:$0xff]
        %v1452 = vld [vmem:[%s5 + $0x8] sm:$0x3f]
        %vm1453 = vcmask 228352
        %v1455 = vsel %vm1453, %v1451, 0
        %v1458 = vsel %vm1453, %v1452, 0
        %vm1460 = vcmask 1043456
        %v1462 = vsel %vm1460, %v1450, 0
        %1464 = vmatprep.subr.mxu0 0.0
        %1465 = vmatpush1.msra.mxu0 %v1447
        %1466 = vmatprep.subr.mxu0 0.0
        %1467 = vmatpush1.msra.mxu0 %v1448
        %1468 = vmatprep.subr.mxu0 0.0
        %1469 = vmatpush1.msra.mxu0 %v1449
        %1470 = vmatprep.subr.mxu0 0.0
        %1471 = vmatpush1.msra.mxu0 %v1462
        %1472 = vmatprep.subr.mxu0 0.0
        %1473 = vmatpush1.msra.mxu0 0.0
        %1474 = vmatprep.subr.mxu0 0.0
        %1475 = vmatpush1.msra.mxu0 0.0
        %1476 = vmatprep.subr.mxu0 0.0
        %1477 = vmatpush1.msra.mxu0 0.0
        %1478 = vmatprep.subr.mxu0 0.0
        %1479 = vmatpush1.msra.mxu0 0.0
        %1480 = vmatprep.subr.mxu0 0.0
        %1481 = vmatpush1.msra.mxu0 0.0
        %1482 = vmatprep.subr.mxu0 0.0
        %1483 = vmatpush1.msra.mxu0 0.0
        %1484 = vmatprep.subr.mxu0 0.0
        %1485 = vmatpush1.msra.mxu0 0.0
        %1486 = vmatprep.subr.mxu0 0.0
        %1487 = vmatpush1.msra.mxu0 0.0
        %1488 = vmatprep.subr.mxu0 0.0
        %1489 = vmatpush1.msra.mxu0 0.0
        %1490 = vmatprep.subr.mxu0 0.0
        %1491 = vmatpush1.msra.mxu0 0.0
        %1492 = vmatprep.subr.mxu0 0.0
        %1493 = vmatpush1.msra.mxu0 0.0
        %1494 = vmatprep.subr.mxu0 0.0
        %1495 = vmatpush1.msra.mxu0 0.0
        %1496 = vmatprep.subr.mxu0 0.0
        %1497 = vmatpush1.msra.mxu0 0.0
        %1498 = vmatprep.subr.mxu0 0.0
        %1499 = vmatpush1.msra.mxu0 0.0
        %1500 = vmatprep.subr.mxu0 0.0
        %1501 = vmatpush1.msra.mxu0 0.0
        %1502 = vmatprep.subr.mxu0 0.0
        %1503 = vmatpush1.msra.mxu0 0.0
        %1504 = vmatprep.subr.mxu0 0.0
        %1505 = vmatpush1.msra.mxu0 0.0
        %1506 = vmatprep.subr.mxu0 0.0
        %1507 = vmatpush1.msra.mxu0 0.0
        %1508 = vmatprep.subr.mxu0 0.0
        %1509 = vmatpush1.msra.mxu0 0.0
        %1510 = vmatprep.subr.mxu0 0.0
        %1511 = vmatpush1.msra.mxu0 0.0
        %1512 = vmatprep.subr.mxu0 0.0
        %1513 = vmatpush1.msra.mxu0 0.0
        %1514 = vmatprep.subr.mxu0 0.0
        %1515 = vmatpush1.msra.mxu0 0.0
        %1516 = vmatprep.subr.mxu0 0.0
        %1517 = vmatpush1.msra.mxu0 0.0
        %1518 = vmatprep.subr.mxu0 0.0
        %1519 = vmatpush1.msra.mxu0 0.0
        %1520 = vmatprep.subr.mxu0 0.0
        %1521 = vmatpush1.msra.mxu0 0.0
        %1522 = vmatprep.subr.mxu0 0.0
        %1523 = vmatpush1.msra.mxu0 0.0
        %1524 = vmatprep.subr.mxu0 0.0
        %1525 = vmatpush1.msra.mxu0 0.0
        %1526 = vmatprep.subr.mxu0 0.0
        %1527 = vmatpush1.msra.mxu0 0.0
        %1528 = vmatprep.mubr.f32.mxu0 0.0
        %1529 = vmatmul.mubr.f32.gmra.mrb[0].mxu0 %v1455
        %v1530 = vpop.f32.mrb[0].mxu0
        %v1531 = vadd.f32 0.0, %v1530
        %v1532 = vpop.f32.mrb[0].mxu0
        %1533 = vmatprep.mubr.f32.mxu0 0.0
        %1534 = vmatmul.mubr.f32.gmra.mrb[0].mxu0 %v1458
        %v1535 = vpop.f32.mrb[0].mxu0
        %v1536 = vadd.f32 0.0, %v1535
        %v1537 = vpop.f32.mrb[0].mxu0
        %1538 = vdwg.mxu0
        %v1539 = vld [vmem:[%s6] sm:$0xff]
        %v1540 = vld [vmem:[%s6 + $0x8] sm:$0x3f]
        %v1542 = vsel %vm1453, %v1539, 0
        %v1545 = vsel %vm1453, %v1540, 0
        %1547 = vmatprep.subr.mxu0 0.0
        %1548 = vmatpush1.msra.mxu0 %v1447
        %1549 = vmatprep.subr.mxu0 0.0
        %1550 = vmatpush1.msra.mxu0 %v1448
        %1551 = vmatprep.subr.mxu0 0.0
        %1552 = vmatpush1.msra.mxu0 %v1449
        %1553 = vmatprep.subr.mxu0 0.0
        %1554 = vmatpush1.msra.mxu0 %v1462
        %1555 = vmatprep.subr.mxu0 0.0
        %1556 = vmatpush1.msra.mxu0 0.0
        %1557 = vmatprep.subr.mxu0 0.0
        %1558 = vmatpush1.msra.mxu0 0.0
        %1559 = vmatprep.subr.mxu0 0.0
        %1560 = vmatpush1.msra.mxu0 0.0
        %1561 = vmatprep.subr.mxu0 0.0
        %1562 = vmatpush1.msra.mxu0 0.0
        %1563 = vmatprep.subr.mxu0 0.0
        %1564 = vmatpush1.msra.mxu0 0.0
        %1565 = vmatprep.subr.mxu0 0.0
        %1566 = vmatpush1.msra.mxu0 0.0
        %1567 = vmatprep.subr.mxu0 0.0
        %1568 = vmatpush1.msra.mxu0 0.0
        %1569 = vmatprep.subr.mxu0 0.0
        %1570 = vmatpush1.msra.mxu0 0.0
        %1571 = vmatprep.subr.mxu0 0.0
        %1572 = vmatpush1.msra.mxu0 0.0
        %1573 = vmatprep.subr.mxu0 0.0
        %1574 = vmatpush1.msra.mxu0 0.0
        %1575 = vmatprep.subr.mxu0 0.0
        %1576 = vmatpush1.msra.mxu0 0.0
        %1577 = vmatprep.subr.mxu0 0.0
        %1578 = vmatpush1.msra.mxu0 0.0
        %1579 = vmatprep.subr.mxu0 0.0
        %1580 = vmatpush1.msra.mxu0 0.0
        %1581 = vmatprep.subr.mxu0 0.0
        %1582 = vmatpush1.msra.mxu0 0.0
        %1583 = vmatprep.subr.mxu0 0.0
        %1584 = vmatpush1.msra.mxu0 0.0
        %1585 = vmatprep.subr.mxu0 0.0
        %1586 = vmatpush1.msra.mxu0 0.0
        %1587 = vmatprep.subr.mxu0 0.0
        %1588 = vmatpush1.msra.mxu0 0.0
        %1589 = vmatprep.subr.mxu0 0.0
        %1590 = vmatpush1.msra.mxu0 0.0
        %1591 = vmatprep.subr.mxu0 0.0
        %1592 = vmatpush1.msra.mxu0 0.0
        %1593 = vmatprep.subr.mxu0 0.0
        %1594 = vmatpush1.msra.mxu0 0.0
        %1595 = vmatprep.subr.mxu0 0.0
        %1596 = vmatpush1.msra.mxu0 0.0
        %1597 = vmatprep.subr.mxu0 0.0
        %1598 = vmatpush1.msra.mxu0 0.0
        %1599 = vmatprep.subr.mxu0 0.0
        %1600 = vmatpush1.msra.mxu0 0.0
        %1601 = vmatprep.subr.mxu0 0.0
        %1602 = vmatpush1.msra.mxu0 0.0
        %1603 = vmatprep.subr.mxu0 0.0
        %1604 = vmatpush1.msra.mxu0 0.0
        %1605 = vmatprep.subr.mxu0 0.0
        %1606 = vmatpush1.msra.mxu0 0.0
        %1607 = vmatprep.subr.mxu0 0.0
        %1608 = vmatpush1.msra.mxu0 0.0
        %1609 = vmatprep.subr.mxu0 0.0
        %1610 = vmatpush1.msra.mxu0 0.0
        %1611 = vmatprep.mubr.f32.mxu0 0.0
        %1612 = vmatmul.mubr.f32.gmra.mrb[0].mxu0 %v1542
        %v1613 = vpop.f32.mrb[0].mxu0
        %v1614 = vadd.f32 0.0, %v1613
        %v1615 = vpop.f32.mrb[0].mxu0
        %1616 = vmatprep.mubr.f32.mxu0 0.0
        %1617 = vmatmul.mubr.f32.gmra.mrb[0].mxu0 %v1545
        %v1618 = vpop.f32.mrb[0].mxu0
        %v1619 = vadd.f32 0.0, %v1618
        %v1620 = vpop.f32.mrb[0].mxu0
        %1621 = vdwg.mxu0
        %v1622 = vmax.f32 %v1531, %v1614
        %v1623 = vmax.f32 %v1536, %v1619
        %v1624 = vld [vmem:[%s7] sm:$0xff]
        %v1625 = vld [vmem:[%s7 + $0x8] sm:$0xff]
        %v1626 = vld [vmem:[%s7 + $0x10] sm:$0xff]
        %v1627 = vld [vmem:[%s7 + $0x18] sm:$0xff]
        %v1628 = vld [vmem:[%s7 + $0x20] sm:$0xff]
        %v1629 = vld [vmem:[%s7 + $0x28] sm:$0xff]
        %v1630 = vld [vmem:[%s7 + $0x30] sm:$0xff]
        %v1631 = vld [vmem:[%s7 + $0x38] sm:$0xff]
        %v1632 = vld [vmem:[%s7 + $0x40] sm:$0xff]
        %v1633 = vld [vmem:[%s7 + $0x48] sm:$0xff]
        %v1634 = vld [vmem:[%s7 + $0x50] sm:$0xff]
        %v1635 = vld [vmem:[%s7 + $0x58] sm:$0xff]
        %v1636 = vld [vmem:[%s7 + $0x60] sm:$0xff]
        %v1637 = vld [vmem:[%s7 + $0x68] sm:$0xff]
        %v1638 = vld [vmem:[%s7 + $0x70] sm:$0xff]
        %v1639 = vld [vmem:[%s7 + $0x78] sm:$0xff]
        %v1640 = vld [vmem:[%s7 + $0x80] sm:$0xff]
        %v1641 = vld [vmem:[%s7 + $0x88] sm:$0xff]
        %v1642 = vld [vmem:[%s7 + $0x90] sm:$0xff]
        %v1643 = vld [vmem:[%s7 + $0x98] sm:$0xff]
        %v1644 = vld [vmem:[%s7 + $0xa0] sm:$0xf]
        %v1645 = vld [vmem:[%s7 + $0xa8] sm:$0xf]
        %s1646 = scalar_lea.vmem %s7, 176
        %v1647 = vld [vmem:[%s1646] sm:$0xff]
        %v1648 = vld [vmem:[%s1646 + $0x8] sm:$0xff]
        %v1649 = vld [vmem:[%s1646 + $0x10] sm:$0xff]
        %v1650 = vld [vmem:[%s1646 + $0x18] sm:$0xff]
        %v1651 = vld [vmem:[%s1646 + $0x20] sm:$0xff]
        %v1652 = vld [vmem:[%s1646 + $0x28] sm:$0xff]
        %v1653 = vld [vmem:[%s1646 + $0x30] sm:$0xff]
        %v1654 = vld [vmem:[%s1646 + $0x38] sm:$0xff]
        %v1655 = vld [vmem:[%s1646 + $0x40] sm:$0xff]
        %v1656 = vld [vmem:[%s1646 + $0x48] sm:$0xff]
        %v1657 = vld [vmem:[%s1646 + $0x50] sm:$0xff]
        %v1658 = vld [vmem:[%s1646 + $0x58] sm:$0xff]
        %v1659 = vld [vmem:[%s1646 + $0x60] sm:$0xff]
        %v1660 = vld [vmem:[%s1646 + $0x68] sm:$0xff]
        %v1661 = vld [vmem:[%s1646 + $0x70] sm:$0xff]
        %v1662 = vld [vmem:[%s1646 + $0x78] sm:$0xff]
        %v1663 = vld [vmem:[%s1646 + $0x80] sm:$0xff]
        %v1664 = vld [vmem:[%s1646 + $0x88] sm:$0xff]
        %v1665 = vld [vmem:[%s1646 + $0x90] sm:$0xff]
        %v1666 = vld [vmem:[%s1646 + $0x98] sm:$0xff]
        %v1667 = vld [vmem:[%s1646 + $0xa0] sm:$0xf]
        %v1668 = vld [vmem:[%s1646 + $0xa8] sm:$0xf]
        %vm1671 = vcmask 1046528
        %v1672 = vrot.slane %v1622, 1
        %v1673 = vrot.slane %v1623, 1
        %v1674 = vsel %vm1671, %v1672, %v1673
        %vm1675 = vcmask 687104
        %v1676 = vsel %vm1675, %v1674, 0
        %v1678 = vsel %vm1675, %v1673, 0
        %v1681 = vsel %vm1460, %v1667, 0
        %v1684 = vsel %vm1460, %v1668, 0
        %1686 = vmatprep.subr.mxu0 %v1648
        %1687 = vmatpush1.msra.mxu0 %v1647
        %1688 = vmatprep.subr.mxu0 %v1650
        %1689 = vmatpush1.msra.mxu0 %v1649
        %1690 = vmatprep.subr.mxu0 %v1652
        %1691 = vmatpush1.msra.mxu0 %v1651
        %1692 = vmatprep.subr.mxu0 %v1654
        %1693 = vmatpush1.msra.mxu0 %v1653
        %1694 = vmatprep.subr.mxu0 %v1656
        %1695 = vmatpush1.msra.mxu0 %v1655
        %1696 = vmatprep.subr.mxu0 %v1658
        %1697 = vmatpush1.msra.mxu0 %v1657
        %1698 = vmatprep.subr.mxu0 %v1660
        %1699 = vmatpush1.msra.mxu0 %v1659
        %1700 = vmatprep.subr.mxu0 %v1662
        %1701 = vmatpush1.msra.mxu0 %v1661
        %1702 = vmatprep.subr.mxu0 %v1664
        %1703 = vmatpush1.msra.mxu0 %v1663
        %1704 = vmatprep.subr.mxu0 %v1666
        %1705 = vmatpush1.msra.mxu0 %v1665
        %1706 = vmatprep.subr.mxu0 %v1684
        %1707 = vmatpush1.msra.mxu0 %v1681
        %1708 = vmatprep.subr.mxu0 0.0
        %1709 = vmatpush1.msra.mxu0 0.0
        %1710 = vmatprep.subr.mxu0 0.0
        %1711 = vmatpush1.msra.mxu0 0.0
        %1712 = vmatprep.subr.mxu0 0.0
        %1713 = vmatpush1.msra.mxu0 0.0
        %1714 = vmatprep.subr.mxu0 0.0
        %1715 = vmatpush1.msra.mxu0 0.0
        %1716 = vmatprep.subr.mxu0 0.0
        %1717 = vmatpush1.msra.mxu0 0.0
        %1718 = vmatprep.subr.mxu0 0.0
        %1719 = vmatpush1.msra.mxu0 0.0
        %1720 = vmatprep.subr.mxu0 0.0
        %1721 = vmatpush1.msra.mxu0 0.0
        %1722 = vmatprep.subr.mxu0 0.0
        %1723 = vmatpush1.msra.mxu0 0.0
        %1724 = vmatprep.subr.mxu0 0.0
        %1725 = vmatpush1.msra.mxu0 0.0
        %1726 = vmatprep.subr.mxu0 0.0
        %1727 = vmatpush1.msra.mxu0 0.0
        %1728 = vmatprep.subr.mxu0 0.0
        %1729 = vmatpush1.msra.mxu0 0.0
        %1730 = vmatprep.subr.mxu0 0.0
        %1731 = vmatpush1.msra.mxu0 0.0
        %1732 = vmatprep.subr.mxu0 0.0
        %1733 = vmatpush1.msra.mxu0 0.0
        %1734 = vmatprep.subr.mxu0 0.0
        %1735 = vmatpush1.msra.mxu0 0.0
        %1736 = vmatprep.subr.mxu0 0.0
        %1737 = vmatpush1.msra.mxu0 0.0
        %1738 = vmatprep.subr.mxu0 0.0
        %1739 = vmatpush1.msra.mxu0 0.0
        %1740 = vmatprep.subr.mxu0 0.0
        %1741 = vmatpush1.msra.mxu0 0.0
        %1742 = vmatprep.subr.mxu0 0.0
        %1743 = vmatpush1.msra.mxu0 0.0
        %1744 = vmatprep.subr.mxu0 0.0
        %1745 = vmatpush1.msra.mxu0 0.0
        %1746 = vmatprep.subr.mxu0 0.0
        %1747 = vmatpush1.msra.mxu0 0.0
        %1748 = vmatprep.subr.mxu0 0.0
        %1749 = vmatpush1.msra.mxu0 0.0
        %1750 = vmatprep.mubr.f32.mxu0 0.0
        %1751 = vmatmul.mubr.f32.gmra.mrb[0].mxu0 %v1676
        %v1752 = vpop.f32.mrb[0].mxu0
        %v1753 = vadd.f32 0.0, %v1752
        %v1754 = vpop.f32.mrb[0].mxu0
        %v1755 = vadd.f32 0.0, %v1754
        %1756 = vmatprep.mubr.f32.mxu0 0.0
        %1757 = vmatmul.mubr.f32.gmra.mrb[0].mxu0 %v1678
        %v1758 = vpop.f32.mrb[0].mxu0
        %v1759 = vadd.f32 0.0, %v1758
        %v1760 = vpop.f32.mrb[0].mxu0
        %v1761 = vadd.f32 0.0, %v1760
        %1762 = vdwg.mxu0
        %v1763 = vsel %vm1675, %v1622, 0
        %v1765 = vsel %vm1675, %v1623, 0
        %v1768 = vsel %vm1460, %v1644, 0
        %v1771 = vsel %vm1460, %v1645, 0
        %1773 = vmatprep.subr.mxu0 %v1625
        %1774 = vmatpush1.msra.mxu0 %v1624
        %1775 = vmatprep.subr.mxu0 %v1627
        %1776 = vmatpush1.msra.mxu0 %v1626
        %1777 = vmatprep.subr.mxu0 %v1629
        %1778 = vmatpush1.msra.mxu0 %v1628
        %1779 = vmatprep.subr.mxu0 %v1631
        %1780 = vmatpush1.msra.mxu0 %v1630
        %1781 = vmatprep.subr.mxu0 %v1633
        %1782 = vmatpush1.msra.mxu0 %v1632
        %1783 = vmatprep.subr.mxu0 %v1635
        %1784 = vmatpush1.msra.mxu0 %v1634
        %1785 = vmatprep.subr.mxu0 %v1637
        %1786 = vmatpush1.msra.mxu0 %v1636
        %1787 = vmatprep.subr.mxu0 %v1639
        %1788 = vmatpush1.msra.mxu0 %v1638
        %1789 = vmatprep.subr.mxu0 %v1641
        %1790 = vmatpush1.msra.mxu0 %v1640
        %1791 = vmatprep.subr.mxu0 %v1643
        %1792 = vmatpush1.msra.mxu0 %v1642
        %1793 = vmatprep.subr.mxu0 %v1771
        %1794 = vmatpush1.msra.mxu0 %v1768
        %1795 = vmatprep.subr.mxu0 0.0
        %1796 = vmatpush1.msra.mxu0 0.0
        %1797 = vmatprep.subr.mxu0 0.0
        %1798 = vmatpush1.msra.mxu0 0.0
        %1799 = vmatprep.subr.mxu0 0.0
        %1800 = vmatpush1.msra.mxu0 0.0
        %1801 = vmatprep.subr.mxu0 0.0
        %1802 = vmatpush1.msra.mxu0 0.0
        %1803 = vmatprep.subr.mxu0 0.0
        %1804 = vmatpush1.msra.mxu0 0.0
        %1805 = vmatprep.subr.mxu0 0.0
        %1806 = vmatpush1.msra.mxu0 0.0
        %1807 = vmatprep.subr.mxu0 0.0
        %1808 = vmatpush1.msra.mxu0 0.0
        %1809 = vmatprep.subr.mxu0 0.0
        %1810 = vmatpush1.msra.mxu0 0.0
        %1811 = vmatprep.subr.mxu0 0.0
        %1812 = vmatpush1.msra.mxu0 0.0
        %1813 = vmatprep.subr.mxu0 0.0
        %1814 = vmatpush1.msra.mxu0 0.0
        %1815 = vmatprep.subr.mxu0 0.0
        %1816 = vmatpush1.msra.mxu0 0.0
        %1817 = vmatprep.subr.mxu0 0.0
        %1818 = vmatpush1.msra.mxu0 0.0
        %1819 = vmatprep.subr.mxu0 0.0
        %1820 = vmatpush1.msra.mxu0 0.0
        %1821 = vmatprep.subr.mxu0 0.0
        %1822 = vmatpush1.msra.mxu0 0.0
        %1823 = vmatprep.subr.mxu0 0.0
        %1824 = vmatpush1.msra.mxu0 0.0
        %1825 = vmatprep.subr.mxu0 0.0
        %1826 = vmatpush1.msra.mxu0 0.0
        %1827 = vmatprep.subr.mxu0 0.0
        %1828 = vmatpush1.msra.mxu0 0.0
        %1829 = vmatprep.subr.mxu0 0.0
        %1830 = vmatpush1.msra.mxu0 0.0
        %1831 = vmatprep.subr.mxu0 0.0
        %1832 = vmatpush1.msra.mxu0 0.0
        %1833 = vmatprep.subr.mxu0 0.0
        %1834 = vmatpush1.msra.mxu0 0.0
        %1835 = vmatprep.subr.mxu0 0.0
        %1836 = vmatpush1.msra.mxu0 0.0
        %1837 = vmatprep.mubr.f32.mxu0 0.0
        %1838 = vmatmul.mubr.f32.gmra.mrb[0].mxu0 %v1763
        %v1839 = vpop.f32.mrb[0].mxu0
        %v1840 = vadd.f32 %v1753, %v1839
        %v1841 = vpop.f32.mrb[0].mxu0
        %v1842 = vadd.f32 %v1755, %v1841
        %1843 = vmatprep.mubr.f32.mxu0 0.0
        %1844 = vmatmul.mubr.f32.gmra.mrb[0].mxu0 %v1765
        %v1845 = vpop.f32.mrb[0].mxu0
        %v1846 = vadd.f32 %v1759, %v1845
        %v1847 = vpop.f32.mrb[0].mxu0
        %v1848 = vadd.f32 %v1761, %v1847
        %1849 = vdwg.mxu0
        %s1850 = scalar_lea.vmem %s7, 352
        %v1851 = vld [vmem:[%s1850] sm:$0xff]
        %v1852 = vld [vmem:[%s1850 + $0x8] sm:$0xff]
        %v1853 = vld [vmem:[%s1850 + $0x10] sm:$0xff]
        %v1854 = vld [vmem:[%s1850 + $0x18] sm:$0xff]
        %v1855 = vld [vmem:[%s1850 + $0x20] sm:$0xff]
        %v1856 = vld [vmem:[%s1850 + $0x28] sm:$0xff]
        %v1857 = vld [vmem:[%s1850 + $0x30] sm:$0xff]
        %v1858 = vld [vmem:[%s1850 + $0x38] sm:$0xff]
        %v1859 = vld [vmem:[%s1850 + $0x40] sm:$0xff]
        %v1860 = vld [vmem:[%s1850 + $0x48] sm:$0xff]
        %v1861 = vld [vmem:[%s1850 + $0x50] sm:$0xff]
        %v1862 = vld [vmem:[%s1850 + $0x58] sm:$0xff]
        %v1863 = vld [vmem:[%s1850 + $0x60] sm:$0xff]
        %v1864 = vld [vmem:[%s1850 + $0x68] sm:$0xff]
        %v1865 = vld [vmem:[%s1850 + $0x70] sm:$0xff]
        %v1866 = vld [vmem:[%s1850 + $0x78] sm:$0xff]
        %v1867 = vld [vmem:[%s1850 + $0x80] sm:$0xff]
        %v1868 = vld [vmem:[%s1850 + $0x88] sm:$0xff]
        %v1869 = vld [vmem:[%s1850 + $0x90] sm:$0xff]
        %v1870 = vld [vmem:[%s1850 + $0x98] sm:$0xff]
        %v1871 = vld [vmem:[%s1850 + $0xa0] sm:$0xf]
        %v1872 = vld [vmem:[%s1850 + $0xa8] sm:$0xf]
        %vm1873 = vcmask 1045504
        %v1874 = vrot.slane %v1622, 2
        %v1875 = vrot.slane %v1623, 2
        %v1876 = vsel %vm1873, %v1874, %v1875
        %v1877 = vsel %vm1675, %v1876, 0
        %v1879 = vsel %vm1675, %v1875, 0
        %v1882 = vsel %vm1460, %v1871, 0
        %v1885 = vsel %vm1460, %v1872, 0
        %1887 = vmatprep.subr.mxu0 %v1852
        %1888 = vmatpush1.msra.mxu0 %v1851
        %1889 = vmatprep.subr.mxu0 %v1854
        %1890 = vmatpush1.msra.mxu0 %v1853
        %1891 = vmatprep.subr.mxu0 %v1856
        %1892 = vmatpush1.msra.mxu0 %v1855
        %1893 = vmatprep.subr.mxu0 %v1858
        %1894 = vmatpush1.msra.mxu0 %v1857
        %1895 = vmatprep.subr.mxu0 %v1860
        %1896 = vmatpush1.msra.mxu0 %v1859
        %1897 = vmatprep.subr.mxu0 %v1862
        %1898 = vmatpush1.msra.mxu0 %v1861
        %1899 = vmatprep.subr.mxu0 %v1864
        %1900 = vmatpush1.msra.mxu0 %v1863
        %1901 = vmatprep.subr.mxu0 %v1866
        %1902 = vmatpush1.msra.mxu0 %v1865
        %1903 = vmatprep.subr.mxu0 %v1868
        %1904 = vmatpush1.msra.mxu0 %v1867
        %1905 = vmatprep.subr.mxu0 %v1870
        %1906 = vmatpush1.msra.mxu0 %v1869
        %1907 = vmatprep.subr.mxu0 %v1885
        %1908 = vmatpush1.msra.mxu0 %v1882
        %1909 = vmatprep.subr.mxu0 0.0
        %1910 = vmatpush1.msra.mxu0 0.0
        %1911 = vmatprep.subr.mxu0 0.0
        %1912 = vmatpush1.msra.mxu0 0.0
        %1913 = vmatprep.subr.mxu0 0.0
        %1914 = vmatpush1.msra.mxu0 0.0
        %1915 = vmatprep.subr.mxu0 0.0
        %1916 = vmatpush1.msra.mxu0 0.0
        %1917 = vmatprep.subr.mxu0 0.0
        %1918 = vmatpush1.msra.mxu0 0.0
        %1919 = vmatprep.subr.mxu0 0.0
        %1920 = vmatpush1.msra.mxu0 0.0
        %1921 = vmatprep.subr.mxu0 0.0
        %1922 = vmatpush1.msra.mxu0 0.0
        %1923 = vmatprep.subr.mxu0 0.0
        %1924 = vmatpush1.msra.mxu0 0.0
        %1925 = vmatprep.subr.mxu0 0.0
        %1926 = vmatpush1.msra.mxu0 0.0
        %1927 = vmatprep.subr.mxu0 0.0
        %1928 = vmatpush1.msra.mxu0 0.0
        %1929 = vmatprep.subr.mxu0 0.0
        %1930 = vmatpush1.msra.mxu0 0.0
        %1931 = vmatprep.subr.mxu0 0.0
        %1932 = vmatpush1.msra.mxu0 0.0
        %1933 = vmatprep.subr.mxu0 0.0
        %1934 = vmatpush1.msra.mxu0 0.0
        %1935 = vmatprep.subr.mxu0 0.0
        %1936 = vmatpush1.msra.mxu0 0.0
        %1937 = vmatprep.subr.mxu0 0.0
        %1938 = vmatpush1.msra.mxu0 0.0
        %1939 = vmatprep.subr.mxu0 0.0
        %1940 = vmatpush1.msra.mxu0 0.0
        %1941 = vmatprep.subr.mxu0 0.0
        %1942 = vmatpush1.msra.mxu0 0.0
        %1943 = vmatprep.subr.mxu0 0.0
        %1944 = vmatpush1.msra.mxu0 0.0
        %1945 = vmatprep.subr.mxu0 0.0
        %1946 = vmatpush1.msra.mxu0 0.0
        %1947 = vmatprep.subr.mxu0 0.0
        %1948 = vmatpush1.msra.mxu0 0.0
        %1949 = vmatprep.subr.mxu0 0.0
        %1950 = vmatpush1.msra.mxu0 0.0
        %1951 = vmatprep.mubr.f32.mxu0 0.0
        %1952 = vmatmul.mubr.f32.gmra.mrb[0].mxu0 %v1877
        %v1953 = vpop.f32.mrb[0].mxu0
        %v1954 = vadd.f32 0.0, %v1953
        %v1955 = vpop.f32.mrb[0].mxu0
        %v1956 = vadd.f32 0.0, %v1955
        %1957 = vmatprep.mubr.f32.mxu0 0.0
        %1958 = vmatmul.mubr.f32.gmra.mrb[0].mxu0 %v1879
        %v1959 = vpop.f32.mrb[0].mxu0
        %v1960 = vadd.f32 0.0, %v1959
        %v1961 = vpop.f32.mrb[0].mxu0
        %v1962 = vadd.f32 0.0, %v1961
        %1963 = vdwg.mxu0
        %v1964 = vadd.f32 %v1840, %v1954
        %v1965 = vadd.f32 %v1842, %v1956
        %v1966 = vadd.f32 %v1846, %v1960
        %v1967 = vadd.f32 %v1848, %v1962
        %s1968 = scalar_lea.vmem %s7, 528
        %v1969 = vld [vmem:[%s1968] sm:$0xff]
        %v1970 = vld [vmem:[%s1968 + $0x8] sm:$0xff]
        %v1971 = vld [vmem:[%s1968 + $0x10] sm:$0xff]
        %v1972 = vld [vmem:[%s1968 + $0x18] sm:$0xff]
        %v1973 = vld [vmem:[%s1968 + $0x20] sm:$0xff]
        %v1974 = vld [vmem:[%s1968 + $0x28] sm:$0xff]
        %v1975 = vld [vmem:[%s1968 + $0x30] sm:$0xff]
        %v1976 = vld [vmem:[%s1968 + $0x38] sm:$0xff]
        %v1977 = vld [vmem:[%s1968 + $0x40] sm:$0xff]
        %v1978 = vld [vmem:[%s1968 + $0x48] sm:$0xff]
        %v1979 = vld [vmem:[%s1968 + $0x50] sm:$0xff]
        %v1980 = vld [vmem:[%s1968 + $0x58] sm:$0xff]
        %v1981 = vld [vmem:[%s1968 + $0x60] sm:$0xff]
        %v1982 = vld [vmem:[%s1968 + $0x68] sm:$0xff]
        %v1983 = vld [vmem:[%s1968 + $0x70] sm:$0xff]
        %v1984 = vld [vmem:[%s1968 + $0x78] sm:$0xff]
        %v1985 = vld [vmem:[%s1968 + $0x80] sm:$0xff]
        %v1986 = vld [vmem:[%s1968 + $0x88] sm:$0xff]
        %v1987 = vld [vmem:[%s1968 + $0x90] sm:$0xff]
        %v1988 = vld [vmem:[%s1968 + $0x98] sm:$0xff]
        %v1989 = vld [vmem:[%s1968 + $0xa0] sm:$0xf]
        %v1990 = vld [vmem:[%s1968 + $0xa8] sm:$0xf]
        %vm1991 = vcmask 1044480
        %v1992 = vrot.slane %v1622, 3
        %v1993 = vrot.slane %v1623, 3
        %v1994 = vsel %vm1991, %v1992, %v1993
        %v1995 = vsel %vm1675, %v1994, 0
        %v1997 = vsel %vm1675, %v1993, 0
        %v2000 = vsel %vm1460, %v1989, 0
        %v2003 = vsel %vm1460, %v1990, 0
        %2005 = vmatprep.subr.mxu0 %v1970
        %2006 = vmatpush1.msra.mxu0 %v1969
        %2007 = vmatprep.subr.mxu0 %v1972
        %2008 = vmatpush1.msra.mxu0 %v1971
        %2009 = vmatprep.subr.mxu0 %v1974
        %2010 = vmatpush1.msra.mxu0 %v1973
        %2011 = vmatprep.subr.mxu0 %v1976
        %2012 = vmatpush1.msra.mxu0 %v1975
        %2013 = vmatprep.subr.mxu0 %v1978
        %2014 = vmatpush1.msra.mxu0 %v1977
        %2015 = vmatprep.subr.mxu0 %v1980
        %2016 = vmatpush1.msra.mxu0 %v1979
        %2017 = vmatprep.subr.mxu0 %v1982
        %2018 = vmatpush1.msra.mxu0 %v1981
        %2019 = vmatprep.subr.mxu0 %v1984
        %2020 = vmatpush1.msra.mxu0 %v1983
        %2021 = vmatprep.subr.mxu0 %v1986
        %2022 = vmatpush1.msra.mxu0 %v1985
        %2023 = vmatprep.subr.mxu0 %v1988
        %2024 = vmatpush1.msra.mxu0 %v1987
        %2025 = vmatprep.subr.mxu0 %v2003
        %2026 = vmatpush1.msra.mxu0 %v2000
        %2027 = vmatprep.subr.mxu0 0.0
        %2028 = vmatpush1.msra.mxu0 0.0
        %2029 = vmatprep.subr.mxu0 0.0
        %2030 = vmatpush1.msra.mxu0 0.0
        %2031 = vmatprep.subr.mxu0 0.0
        %2032 = vmatpush1.msra.mxu0 0.0
        %2033 = vmatprep.subr.mxu0 0.0
        %2034 = vmatpush1.msra.mxu0 0.0
        %2035 = vmatprep.subr.mxu0 0.0
        %2036 = vmatpush1.msra.mxu0 0.0
        %2037 = vmatprep.subr.mxu0 0.0
        %2038 = vmatpush1.msra.mxu0 0.0
        %2039 = vmatprep.subr.mxu0 0.0
        %2040 = vmatpush1.msra.mxu0 0.0
        %2041 = vmatprep.subr.mxu0 0.0
        %2042 = vmatpush1.msra.mxu0 0.0
        %2043 = vmatprep.subr.mxu0 0.0
        %2044 = vmatpush1.msra.mxu0 0.0
        %2045 = vmatprep.subr.mxu0 0.0
        %2046 = vmatpush1.msra.mxu0 0.0
        %2047 = vmatprep.subr.mxu0 0.0
        %2048 = vmatpush1.msra.mxu0 0.0
        %2049 = vmatprep.subr.mxu0 0.0
        %2050 = vmatpush1.msra.mxu0 0.0
        %2051 = vmatprep.subr.mxu0 0.0
        %2052 = vmatpush1.msra.mxu0 0.0
        %2053 = vmatprep.subr.mxu0 0.0
        %2054 = vmatpush1.msra.mxu0 0.0
        %2055 = vmatprep.subr.mxu0 0.0
        %2056 = vmatpush1.msra.mxu0 0.0
        %2057 = vmatprep.subr.mxu0 0.0
        %2058 = vmatpush1.msra.mxu0 0.0
        %2059 = vmatprep.subr.mxu0 0.0
        %2060 = vmatpush1.msra.mxu0 0.0
        %2061 = vmatprep.subr.mxu0 0.0
        %2062 = vmatpush1.msra.mxu0 0.0
        %2063 = vmatprep.subr.mxu0 0.0
        %2064 = vmatpush1.msra.mxu0 0.0
        %2065 = vmatprep.subr.mxu0 0.0
        %2066 = vmatpush1.msra.mxu0 0.0
        %2067 = vmatprep.subr.mxu0 0.0
        %2068 = vmatpush1.msra.mxu0 0.0
        %2069 = vmatprep.mubr.f32.mxu0 0.0
        %2070 = vmatmul.mubr.f32.gmra.mrb[0].mxu0 %v1995
        %v2071 = vpop.f32.mrb[0].mxu0
        %v2072 = vadd.f32 0.0, %v2071
        %v2073 = vpop.f32.mrb[0].mxu0
        %v2074 = vadd.f32 0.0, %v2073
        %2075 = vmatprep.mubr.f32.mxu0 0.0
        %2076 = vmatmul.mubr.f32.gmra.mrb[0].mxu0 %v1997
        %v2077 = vpop.f32.mrb[0].mxu0
        %v2078 = vadd.f32 0.0, %v2077
        %v2079 = vpop.f32.mrb[0].mxu0
        %v2080 = vadd.f32 0.0, %v2079
        %2081 = vdwg.mxu0
        %v2082 = vadd.f32 %v1964, %v2072
        %v2083 = vadd.f32 %v1965, %v2074
        %v2084 = vadd.f32 %v1966, %v2078
        %v2085 = vadd.f32 %v1967, %v2080
        %s2086 = scalar_lea.vmem %s7, 704
        %v2087 = vld [vmem:[%s2086] sm:$0xff]
        %v2088 = vld [vmem:[%s2086 + $0x8] sm:$0xff]
        %v2089 = vld [vmem:[%s2086 + $0x10] sm:$0xff]
        %v2090 = vld [vmem:[%s2086 + $0x18] sm:$0xff]
        %v2091 = vld [vmem:[%s2086 + $0x20] sm:$0xff]
        %v2092 = vld [vmem:[%s2086 + $0x28] sm:$0xff]
        %v2093 = vld [vmem:[%s2086 + $0x30] sm:$0xff]
        %v2094 = vld [vmem:[%s2086 + $0x38] sm:$0xff]
        %v2095 = vld [vmem:[%s2086 + $0x40] sm:$0xff]
        %v2096 = vld [vmem:[%s2086 + $0x48] sm:$0xff]
        %v2097 = vld [vmem:[%s2086 + $0x50] sm:$0xff]
        %v2098 = vld [vmem:[%s2086 + $0x58] sm:$0xff]
        %v2099 = vld [vmem:[%s2086 + $0x60] sm:$0xff]
        %v2100 = vld [vmem:[%s2086 + $0x68] sm:$0xff]
        %v2101 = vld [vmem:[%s2086 + $0x70] sm:$0xff]
        %v2102 = vld [vmem:[%s2086 + $0x78] sm:$0xff]
        %v2103 = vld [vmem:[%s2086 + $0x80] sm:$0xff]
        %v2104 = vld [vmem:[%s2086 + $0x88] sm:$0xff]
        %v2105 = vld [vmem:[%s2086 + $0x90] sm:$0xff]
        %v2106 = vld [vmem:[%s2086 + $0x98] sm:$0xff]
        %v2107 = vld [vmem:[%s2086 + $0xa0] sm:$0xf]
        %v2108 = vld [vmem:[%s2086 + $0xa8] sm:$0xf]
        %v2109 = vrot.slane %v1622, 4
        %v2110 = vrot.slane %v1623, 4
        %v2111 = vsel %vm1460, %v2109, %v2110
        %v2112 = vsel %vm1675, %v2111, 0
        %v2114 = vsel %vm1675, %v2110, 0
        %v2117 = vsel %vm1460, %v2107, 0
        %v2120 = vsel %vm1460, %v2108, 0
        %2122 = vmatprep.subr.mxu0 %v2088
        %2123 = vmatpush1.msra.mxu0 %v2087
        %2124 = vmatprep.subr.mxu0 %v2090
        %2125 = vmatpush1.msra.mxu0 %v2089
        %2126 = vmatprep.subr.mxu0 %v2092
        %2127 = vmatpush1.msra.mxu0 %v2091
        %2128 = vmatprep.subr.mxu0 %v2094
        %2129 = vmatpush1.msra.mxu0 %v2093
        %2130 = vmatprep.subr.mxu0 %v2096
        %2131 = vmatpush1.msra.mxu0 %v2095
        %2132 = vmatprep.subr.mxu0 %v2098
        %2133 = vmatpush1.msra.mxu0 %v2097
        %2134 = vmatprep.subr.mxu0 %v2100
        %2135 = vmatpush1.msra.mxu0 %v2099
        %2136 = vmatprep.subr.mxu0 %v2102
        %2137 = vmatpush1.msra.mxu0 %v2101
        %2138 = vmatprep.subr.mxu0 %v2104
        %2139 = vmatpush1.msra.mxu0 %v2103
        %2140 = vmatprep.subr.mxu0 %v2106
        %2141 = vmatpush1.msra.mxu0 %v2105
        %2142 = vmatprep.subr.mxu0 %v2120
        %2143 = vmatpush1.msra.mxu0 %v2117
        %2144 = vmatprep.subr.mxu0 0.0
        %2145 = vmatpush1.msra.mxu0 0.0
        %2146 = vmatprep.subr.mxu0 0.0
        %2147 = vmatpush1.msra.mxu0 0.0
        %2148 = vmatprep.subr.mxu0 0.0
        %2149 = vmatpush1.msra.mxu0 0.0
        %2150 = vmatprep.subr.mxu0 0.0
        %2151 = vmatpush1.msra.mxu0 0.0
        %2152 = vmatprep.subr.mxu0 0.0
        %2153 = vmatpush1.msra.mxu0 0.0
        %2154 = vmatprep.subr.mxu0 0.0
        %2155 = vmatpush1.msra.mxu0 0.0
        %2156 = vmatprep.subr.mxu0 0.0
        %2157 = vmatpush1.msra.mxu0 0.0
        %2158 = vmatprep.subr.mxu0 0.0
        %2159 = vmatpush1.msra.mxu0 0.0
        %2160 = vmatprep.subr.mxu0 0.0
        %2161 = vmatpush1.msra.mxu0 0.0
        %2162 = vmatprep.subr.mxu0 0.0
        %2163 = vmatpush1.msra.mxu0 0.0
        %2164 = vmatprep.subr.mxu0 0.0
        %2165 = vmatpush1.msra.mxu0 0.0
        %2166 = vmatprep.subr.mxu0 0.0
        %2167 = vmatpush1.msra.mxu0 0.0
        %2168 = vmatprep.subr.mxu0 0.0
        %2169 = vmatpush1.msra.mxu0 0.0
        %2170 = vmatprep.subr.mxu0 0.0
        %2171 = vmatpush1.msra.mxu0 0.0
        %2172 = vmatprep.subr.mxu0 0.0
        %2173 = vmatpush1.msra.mxu0 0.0
        %2174 = vmatprep.subr.mxu0 0.0
        %2175 = vmatpush1.msra.mxu0 0.0
        %2176 = vmatprep.subr.mxu0 0.0
        %2177 = vmatpush1.msra.mxu0 0.0
        %2178 = vmatprep.subr.mxu0 0.0
        %2179 = vmatpush1.msra.mxu0 0.0
        %2180 = vmatprep.subr.mxu0 0.0
        %2181 = vmatpush1.msra.mxu0 0.0
        %2182 = vmatprep.subr.mxu0 0.0
        %2183 = vmatpush1.msra.mxu0 0.0
        %2184 = vmatprep.subr.mxu0 0.0
        %2185 = vmatpush1.msra.mxu0 0.0
        %2186 = vmatprep.mubr.f32.mxu0 0.0
        %2187 = vmatmul.mubr.f32.gmra.mrb[0].mxu0 %v2112
        %v2188 = vpop.f32.mrb[0].mxu0
        %v2189 = vadd.f32 0.0, %v2188
        %v2190 = vpop.f32.mrb[0].mxu0
        %v2191 = vadd.f32 0.0, %v2190
        %2192 = vmatprep.mubr.f32.mxu0 0.0
        %2193 = vmatmul.mubr.f32.gmra.mrb[0].mxu0 %v2114
        %v2194 = vpop.f32.mrb[0].mxu0
        %v2195 = vadd.f32 0.0, %v2194
        %v2196 = vpop.f32.mrb[0].mxu0
        %v2197 = vadd.f32 0.0, %v2196
        %2198 = vdwg.mxu0
        %v2199 = vadd.f32 %v2082, %v2189
        %v2200 = vadd.f32 %v2083, %v2191
        %v2201 = vadd.f32 %v2084, %v2195
        %v2202 = vadd.f32 %v2085, %v2197
        %v2203 = vld [vmem:[%s8] sm:$0x3]
        %v2205 = vlaneseq
        %v2206 = vshrl.u32 %v2205, 7
        %v2207 = vsub.s32 0, %v2206
        %v2208 = vrot.slane %v2203, %v2207
        %v2209 = vlaneseq
        %v2210 = vshrl.u32 %v2209, 7
        %v2211 = vsub.s32 1, %v2210
        %v2212 = vrot.slane %v2203, %v2211
        %v2215 = vadd.f32 %v2199, %v2208
        %v2216 = vadd.f32 %v2200, %v2212
        %v2217 = vadd.f32 %v2201, %v2208
        %v2218 = vadd.f32 %v2202, %v2212
        %v2219 = vmax.f32 %v2215, 0.0
        %v2220 = vmax.f32 %v2216, 0.0
        %v2221 = vmax.f32 %v2217, 0.0
        %v2222 = vmax.f32 %v2218, 0.0
        %v2223 = vld [vmem:[%s9] sm:$0xff]
        %v2224 = vld [vmem:[%s9 + $0x8] sm:$0xff]
        %v2225 = vld [vmem:[%s9 + $0x10] sm:$0xff]
        %v2226 = vld [vmem:[%s9 + $0x18] sm:$0xff]
        %v2227 = vld [vmem:[%s9 + $0x20] sm:$0xff]
        %v2228 = vld [vmem:[%s9 + $0x28] sm:$0xff]
        %v2229 = vld [vmem:[%s9 + $0x30] sm:$0xff]
        %v2230 = vld [vmem:[%s9 + $0x38] sm:$0xff]
        %v2231 = vld [vmem:[%s9 + $0x40] sm:$0xff]
        %v2232 = vld [vmem:[%s9 + $0x48] sm:$0xff]
        %v2233 = vld [vmem:[%s9 + $0x50] sm:$0xff]
        %v2234 = vld [vmem:[%s9 + $0x58] sm:$0xff]
        %v2235 = vld [vmem:[%s9 + $0x60] sm:$0xff]
        %v2236 = vld [vmem:[%s9 + $0x68] sm:$0xff]
        %v2237 = vld [vmem:[%s9 + $0x70] sm:$0xff]
        %v2238 = vld [vmem:[%s9 + $0x78] sm:$0xff]
        %v2239 = vld [vmem:[%s9 + $0x80] sm:$0xff]
        %v2240 = vld [vmem:[%s9 + $0x88] sm:$0xff]
        %v2241 = vld [vmem:[%s9 + $0x90] sm:$0xff]
        %v2242 = vld [vmem:[%s9 + $0x98] sm:$0xff]
        %v2244 = vsel %vm625, %v2220, 0
        %v2247 = vsel %vm625, %v2222, 0
        %2249 = vmatprep.subr.mxu0 0.0
        %2250 = vmatpush1.msra.mxu0 %v2223
        %2251 = vmatprep.subr.mxu0 0.0
        %2252 = vmatpush1.msra.mxu0 %v2224
        %2253 = vmatprep.subr.mxu0 0.0
        %2254 = vmatpush1.msra.mxu0 %v2225
        %2255 = vmatprep.subr.mxu0 0.0
        %2256 = vmatpush1.msra.mxu0 %v2226
        %2257 = vmatprep.subr.mxu0 0.0
        %2258 = vmatpush1.msra.mxu0 %v2227
        %2259 = vmatprep.subr.mxu0 0.0
        %2260 = vmatpush1.msra.mxu0 %v2228
        %2261 = vmatprep.subr.mxu0 0.0
        %2262 = vmatpush1.msra.mxu0 %v2229
        %2263 = vmatprep.subr.mxu0 0.0
        %2264 = vmatpush1.msra.mxu0 %v2230
        %2265 = vmatprep.subr.mxu0 0.0
        %2266 = vmatpush1.msra.mxu0 %v2231
        %2267 = vmatprep.subr.mxu0 0.0
        %2268 = vmatpush1.msra.mxu0 %v2232
        %2269 = vmatprep.subr.mxu0 0.0
        %2270 = vmatpush1.msra.mxu0 %v2233
        %2271 = vmatprep.subr.mxu0 0.0
        %2272 = vmatpush1.msra.mxu0 %v2234
        %2273 = vmatprep.subr.mxu0 0.0
        %2274 = vmatpush1.msra.mxu0 %v2235
        %2275 = vmatprep.subr.mxu0 0.0
        %2276 = vmatpush1.msra.mxu0 %v2236
        %2277 = vmatprep.subr.mxu0 0.0
        %2278 = vmatpush1.msra.mxu0 %v2237
        %2279 = vmatprep.subr.mxu0 0.0
        %2280 = vmatpush1.msra.mxu0 %v2238
        %2281 = vmatprep.subr.mxu0 0.0
        %2282 = vmatpush1.msra.mxu0 %v2239
        %2283 = vmatprep.subr.mxu0 0.0
        %2284 = vmatpush1.msra.mxu0 %v2240
        %2285 = vmatprep.subr.mxu0 0.0
        %2286 = vmatpush1.msra.mxu0 %v2241
        %2287 = vmatprep.subr.mxu0 0.0
        %2288 = vmatpush1.msra.mxu0 %v2242
        %2289 = vmatprep.subr.mxu0 0.0
        %2290 = vmatpush1.msra.mxu0 0.0
        %2291 = vmatprep.subr.mxu0 0.0
        %2292 = vmatpush1.msra.mxu0 0.0
        %2293 = vmatprep.subr.mxu0 0.0
        %2294 = vmatpush1.msra.mxu0 0.0
        %2295 = vmatprep.subr.mxu0 0.0
        %2296 = vmatpush1.msra.mxu0 0.0
        %2297 = vmatprep.subr.mxu0 0.0
        %2298 = vmatpush1.msra.mxu0 0.0
        %2299 = vmatprep.subr.mxu0 0.0
        %2300 = vmatpush1.msra.mxu0 0.0
        %2301 = vmatprep.subr.mxu0 0.0
        %2302 = vmatpush1.msra.mxu0 0.0
        %2303 = vmatprep.subr.mxu0 0.0
        %2304 = vmatpush1.msra.mxu0 0.0
        %2305 = vmatprep.subr.mxu0 0.0
        %2306 = vmatpush1.msra.mxu0 0.0
        %2307 = vmatprep.subr.mxu0 0.0
        %2308 = vmatpush1.msra.mxu0 0.0
        %2309 = vmatprep.subr.mxu0 0.0
        %2310 = vmatpush1.msra.mxu0 0.0
        %2311 = vmatprep.subr.mxu0 0.0
        %2312 = vmatpush1.msra.mxu0 0.0
        %2313 = vmatprep.mubr.f32.mxu0 %v2244
        %2314 = vmatmul.mubr.f32.gmra.mrb[0].mxu0 %v2219
        %v2315 = vpop.f32.mrb[0].mxu0
        %v2316 = vadd.f32 0.0, %v2315
        %v2317 = vpop.f32.mrb[0].mxu0
        %2318 = vmatprep.mubr.f32.mxu0 %v2247
        %2319 = vmatmul.mubr.f32.gmra.mrb[0].mxu0 %v2221
        %v2320 = vpop.f32.mrb[0].mxu0
        %v2321 = vadd.f32 0.0, %v2320
        %v2322 = vpop.f32.mrb[0].mxu0
        %2323 = vdwg.mxu0
        %v2324 = vld [vmem:[%s10] sm:$0xff]
        %v2325 = vld [vmem:[%s10 + $0x8] sm:$0xff]
        %v2326 = vld [vmem:[%s10 + $0x10] sm:$0xff]
        %v2327 = vld [vmem:[%s10 + $0x18] sm:$0xff]
        %v2328 = vld [vmem:[%s10 + $0x20] sm:$0xff]
        %v2329 = vld [vmem:[%s10 + $0x28] sm:$0xff]
        %v2330 = vld [vmem:[%s10 + $0x30] sm:$0xff]
        %v2331 = vld [vmem:[%s10 + $0x38] sm:$0xff]
        %v2332 = vld [vmem:[%s10 + $0x40] sm:$0xff]
        %v2333 = vld [vmem:[%s10 + $0x48] sm:$0xff]
        %v2334 = vld [vmem:[%s10 + $0x50] sm:$0xff]
        %v2335 = vld [vmem:[%s10 + $0x58] sm:$0xff]
        %v2336 = vld [vmem:[%s10 + $0x60] sm:$0xff]
        %v2337 = vld [vmem:[%s10 + $0x68] sm:$0xff]
        %v2338 = vld [vmem:[%s10 + $0x70] sm:$0xff]
        %v2339 = vld [vmem:[%s10 + $0x78] sm:$0xff]
        %v2340 = vld [vmem:[%s10 + $0x80] sm:$0xff]
        %v2341 = vld [vmem:[%s10 + $0x88] sm:$0xff]
        %v2342 = vld [vmem:[%s10 + $0x90] sm:$0xff]
        %v2343 = vld [vmem:[%s10 + $0x98] sm:$0xff]
        %2344 = vmatprep.subr.mxu0 0.0
        %2345 = vmatpush1.msra.mxu0 %v2324
        %2346 = vmatprep.subr.mxu0 0.0
        %2347 = vmatpush1.msra.mxu0 %v2325
        %2348 = vmatprep.subr.mxu0 0.0
        %2349 = vmatpush1.msra.mxu0 %v2326
        %2350 = vmatprep.subr.mxu0 0.0
        %2351 = vmatpush1.msra.mxu0 %v2327
        %2352 = vmatprep.subr.mxu0 0.0
        %2353 = vmatpush1.msra.mxu0 %v2328
        %2354 = vmatprep.subr.mxu0 0.0
        %2355 = vmatpush1.msra.mxu0 %v2329
        %2356 = vmatprep.subr.mxu0 0.0
        %2357 = vmatpush1.msra.mxu0 %v2330
        %2358 = vmatprep.subr.mxu0 0.0
        %2359 = vmatpush1.msra.mxu0 %v2331
        %2360 = vmatprep.subr.mxu0 0.0
        %2361 = vmatpush1.msra.mxu0 %v2332
        %2362 = vmatprep.subr.mxu0 0.0
        %2363 = vmatpush1.msra.mxu0 %v2333
        %2364 = vmatprep.subr.mxu0 0.0
        %2365 = vmatpush1.msra.mxu0 %v2334
        %2366 = vmatprep.subr.mxu0 0.0
        %2367 = vmatpush1.msra.mxu0 %v2335
        %2368 = vmatprep.subr.mxu0 0.0
        %2369 = vmatpush1.msra.mxu0 %v2336
        %2370 = vmatprep.subr.mxu0 0.0
        %2371 = vmatpush1.msra.mxu0 %v2337
        %2372 = vmatprep.subr.mxu0 0.0
        %2373 = vmatpush1.msra.mxu0 %v2338
        %2374 = vmatprep.subr.mxu0 0.0
        %2375 = vmatpush1.msra.mxu0 %v2339
        %2376 = vmatprep.subr.mxu0 0.0
        %2377 = vmatpush1.msra.mxu0 %v2340
        %2378 = vmatprep.subr.mxu0 0.0
        %2379 = vmatpush1.msra.mxu0 %v2341
        %2380 = vmatprep.subr.mxu0 0.0
        %2381 = vmatpush1.msra.mxu0 %v2342
        %2382 = vmatprep.subr.mxu0 0.0
        %2383 = vmatpush1.msra.mxu0 %v2343
        %2384 = vmatprep.subr.mxu0 0.0
        %2385 = vmatpush1.msra.mxu0 0.0
        %2386 = vmatprep.subr.mxu0 0.0
        %2387 = vmatpush1.msra.mxu0 0.0
        %2388 = vmatprep.subr.mxu0 0.0
        %2389 = vmatpush1.msra.mxu0 0.0
        %2390 = vmatprep.subr.mxu0 0.0
        %2391 = vmatpush1.msra.mxu0 0.0
        %2392 = vmatprep.subr.mxu0 0.0
        %2393 = vmatpush1.msra.mxu0 0.0
        %2394 = vmatprep.subr.mxu0 0.0
        %2395 = vmatpush1.msra.mxu0 0.0
        %2396 = vmatprep.subr.mxu0 0.0
        %2397 = vmatpush1.msra.mxu0 0.0
        %2398 = vmatprep.subr.mxu0 0.0
        %2399 = vmatpush1.msra.mxu0 0.0
        %2400 = vmatprep.subr.mxu0 0.0
        %2401 = vmatpush1.msra.mxu0 0.0
        %2402 = vmatprep.subr.mxu0 0.0
        %2403 = vmatpush1.msra.mxu0 0.0
        %2404 = vmatprep.subr.mxu0 0.0
        %2405 = vmatpush1.msra.mxu0 0.0
        %2406 = vmatprep.subr.mxu0 0.0
        %2407 = vmatpush1.msra.mxu0 0.0
        %2408 = vmatprep.mubr.f32.mxu0 %v2244
        %2409 = vmatmul.mubr.f32.gmra.mrb[0].mxu0 %v2219
        %v2410 = vpop.f32.mrb[0].mxu0
        %v2411 = vadd.f32 0.0, %v2410
        %v2412 = vpop.f32.mrb[0].mxu0
        %2413 = vmatprep.mubr.f32.mxu0 %v2247
        %2414 = vmatmul.mubr.f32.gmra.mrb[0].mxu0 %v2221
        %v2415 = vpop.f32.mrb[0].mxu0
        %v2416 = vadd.f32 0.0, %v2415
        %v2417 = vpop.f32.mrb[0].mxu0
        %2418 = vdwg.mxu0
        %v2419 = vmax.f32 %v2316, %v2411
        %v2420 = vmax.f32 %v2321, %v2416
        %v2421 = vld [vmem:[%s11] sm:$0x1f]
        %vm2422 = vcmask 80896
        %v2424 = vsel %vm2422, %v2421, 0
        %vm2426 = vcmask 1041408
        %v2428 = vsel %vm2426, %v2420, 0
        %2430 = vmatprep.subr.mxu0 0.0
        %2431 = vmatpush1.msra.mxu0 %v2419
        %2432 = vmatprep.subr.mxu0 0.0
        %2433 = vmatpush1.msra.mxu0 %v2428
        %2434 = vmatprep.subr.mxu0 0.0
        %2435 = vmatpush1.msra.mxu0 0.0
        %2436 = vmatprep.subr.mxu0 0.0
        %2437 = vmatpush1.msra.mxu0 0.0
        %2438 = vmatprep.subr.mxu0 0.0
        %2439 = vmatpush1.msra.mxu0 0.0
        %2440 = vmatprep.subr.mxu0 0.0
        %2441 = vmatpush1.msra.mxu0 0.0
        %2442 = vmatprep.subr.mxu0 0.0
        %2443 = vmatpush1.msra.mxu0 0.0
        %2444 = vmatprep.subr.mxu0 0.0
        %2445 = vmatpush1.msra.mxu0 0.0
        %2446 = vmatprep.subr.mxu0 0.0
        %2447 = vmatpush1.msra.mxu0 0.0
        %2448 = vmatprep.subr.mxu0 0.0
        %2449 = vmatpush1.msra.mxu0 0.0
        %2450 = vmatprep.subr.mxu0 0.0
        %2451 = vmatpush1.msra.mxu0 0.0
        %2452 = vmatprep.subr.mxu0 0.0
        %2453 = vmatpush1.msra.mxu0 0.0
        %2454 = vmatprep.subr.mxu0 0.0
        %2455 = vmatpush1.msra.mxu0 0.0
        %2456 = vmatprep.subr.mxu0 0.0
        %2457 = vmatpush1.msra.mxu0 0.0
        %2458 = vmatprep.subr.mxu0 0.0
        %2459 = vmatpush1.msra.mxu0 0.0
        %2460 = vmatprep.subr.mxu0 0.0
        %2461 = vmatpush1.msra.mxu0 0.0
        %2462 = vmatprep.subr.mxu0 0.0
        %2463 = vmatpush1.msra.mxu0 0.0
        %2464 = vmatprep.subr.mxu0 0.0
        %2465 = vmatpush1.msra.mxu0 0.0
        %2466 = vmatprep.subr.mxu0 0.0
        %2467 = vmatpush1.msra.mxu0 0.0
        %2468 = vmatprep.subr.mxu0 0.0
        %2469 = vmatpush1.msra.mxu0 0.0
        %2470 = vmatprep.subr.mxu0 0.0
        %2471 = vmatpush1.msra.mxu0 0.0
        %2472 = vmatprep.subr.mxu0 0.0
        %2473 = vmatpush1.msra.mxu0 0.0
        %2474 = vmatprep.subr.mxu0 0.0
        %2475 = vmatpush1.msra.mxu0 0.0
        %2476 = vmatprep.subr.mxu0 0.0
        %2477 = vmatpush1.msra.mxu0 0.0
        %2478 = vmatprep.subr.mxu0 0.0
        %2479 = vmatpush1.msra.mxu0 0.0
        %2480 = vmatprep.subr.mxu0 0.0
        %2481 = vmatpush1.msra.mxu0 0.0
        %2482 = vmatprep.subr.mxu0 0.0
        %2483 = vmatpush1.msra.mxu0 0.0
        %2484 = vmatprep.subr.mxu0 0.0
        %2485 = vmatpush1.msra.mxu0 0.0
        %2486 = vmatprep.subr.mxu0 0.0
        %2487 = vmatpush1.msra.mxu0 0.0
        %2488 = vmatprep.subr.mxu0 0.0
        %2489 = vmatpush1.msra.mxu0 0.0
        %2490 = vmatprep.subr.mxu0 0.0
        %2491 = vmatpush1.msra.mxu0 0.0
        %2492 = vmatprep.subr.mxu0 0.0
        %2493 = vmatpush1.msra.mxu0 0.0
        %2494 = vmatprep.mubr.f32.mxu0 0.0
        %2495 = vmatmul.mubr.f32.gmra.mrb[0].mxu0 %v2424
        %v2496 = vpop.f32.mrb[0].mxu0
        %v2497 = vadd.f32 0.0, %v2496
        %v2498 = vpop.f32.mrb[0].mxu0
        %2499 = vdwg.mxu0
        %v2500 = vld [vmem:[%s12] sm:$0x1f]
        %v2502 = vsel %vm2422, %v2500, 0
        %2504 = vmatprep.subr.mxu0 0.0
        %2505 = vmatpush1.msra.mxu0 %v2419
        %2506 = vmatprep.subr.mxu0 0.0
        %2507 = vmatpush1.msra.mxu0 %v2428
        %2508 = vmatprep.subr.mxu0 0.0
        %2509 = vmatpush1.msra.mxu0 0.0
        %2510 = vmatprep.subr.mxu0 0.0
        %2511 = vmatpush1.msra.mxu0 0.0
        %2512 = vmatprep.subr.mxu0 0.0
        %2513 = vmatpush1.msra.mxu0 0.0
        %2514 = vmatprep.subr.mxu0 0.0
        %2515 = vmatpush1.msra.mxu0 0.0
        %2516 = vmatprep.subr.mxu0 0.0
        %2517 = vmatpush1.msra.mxu0 0.0
        %2518 = vmatprep.subr.mxu0 0.0
        %2519 = vmatpush1.msra.mxu0 0.0
        %2520 = vmatprep.subr.mxu0 0.0
        %2521 = vmatpush1.msra.mxu0 0.0
        %2522 = vmatprep.subr.mxu0 0.0
        %2523 = vmatpush1.msra.mxu0 0.0
        %2524 = vmatprep.subr.mxu0 0.0
        %2525 = vmatpush1.msra.mxu0 0.0
        %2526 = vmatprep.subr.mxu0 0.0
        %2527 = vmatpush1.msra.mxu0 0.0
        %2528 = vmatprep.subr.mxu0 0.0
        %2529 = vmatpush1.msra.mxu0 0.0
        %2530 = vmatprep.subr.mxu0 0.0
        %2531 = vmatpush1.msra.mxu0 0.0
        %2532 = vmatprep.subr.mxu0 0.0
        %2533 = vmatpush1.msra.mxu0 0.0
        %2534 = vmatprep.subr.mxu0 0.0
        %2535 = vmatpush1.msra.mxu0 0.0
        %2536 = vmatprep.subr.mxu0 0.0
        %2537 = vmatpush1.msra.mxu0 0.0
        %2538 = vmatprep.subr.mxu0 0.0
        %2539 = vmatpush1.msra.mxu0 0.0
        %2540 = vmatprep.subr.mxu0 0.0
        %2541 = vmatpush1.msra.mxu0 0.0
        %2542 = vmatprep.subr.mxu0 0.0
        %2543 = vmatpush1.msra.mxu0 0.0
        %2544 = vmatprep.subr.mxu0 0.0
        %2545 = vmatpush1.msra.mxu0 0.0
        %2546 = vmatprep.subr.mxu0 0.0
        %2547 = vmatpush1.msra.mxu0 0.0
        %2548 = vmatprep.subr.mxu0 0.0
        %2549 = vmatpush1.msra.mxu0 0.0
        %2550 = vmatprep.subr.mxu0 0.0
        %2551 = vmatpush1.msra.mxu0 0.0
        %2552 = vmatprep.subr.mxu0 0.0
        %2553 = vmatpush1.msra.mxu0 0.0
        %2554 = vmatprep.subr.mxu0 0.0
        %2555 = vmatpush1.msra.mxu0 0.0
        %2556 = vmatprep.subr.mxu0 0.0
        %2557 = vmatpush1.msra.mxu0 0.0
        %2558 = vmatprep.subr.mxu0 0.0
        %2559 = vmatpush1.msra.mxu0 0.0
        %2560 = vmatprep.subr.mxu0 0.0
        %2561 = vmatpush1.msra.mxu0 0.0
        %2562 = vmatprep.subr.mxu0 0.0
        %2563 = vmatpush1.msra.mxu0 0.0
        %2564 = vmatprep.subr.mxu0 0.0
        %2565 = vmatpush1.msra.mxu0 0.0
        %2566 = vmatprep.subr.mxu0 0.0
        %2567 = vmatpush1.msra.mxu0 0.0
        %2568 = vmatprep.mubr.f32.mxu0 0.0
        %2569 = vmatmul.mubr.f32.gmra.mrb[0].mxu0 %v2502
        %v2570 = vpop.f32.mrb[0].mxu0
        %v2571 = vadd.f32 0.0, %v2570
        %v2572 = vpop.f32.mrb[0].mxu0
        %2573 = vdwg.mxu0
        %v2574 = vmax.f32 %v2497, %v2571
        %v2575 = vld [vmem:[%s13] sm:$0xff]
        %v2576 = vld [vmem:[%s13 + $0x8] sm:$0xff]
        %v2577 = vld [vmem:[%s13 + $0x10] sm:$0xff]
        %v2578 = vld [vmem:[%s13 + $0x18] sm:$0xff]
        %v2579 = vld [vmem:[%s13 + $0x20] sm:$0xff]
        %v2580 = vld [vmem:[%s13 + $0x28] sm:$0xff]
        %v2581 = vld [vmem:[%s13 + $0x30] sm:$0xff]
        %v2582 = vld [vmem:[%s13 + $0x38] sm:$0xff]
        %v2583 = vld [vmem:[%s13 + $0x40] sm:$0xff]
        %v2584 = vld [vmem:[%s13 + $0x48] sm:$0xff]
        %s2585 = scalar_lea.vmem %s13, 80
        %v2586 = vld [vmem:[%s2585] sm:$0xff]
        %v2587 = vld [vmem:[%s2585 + $0x8] sm:$0xff]
        %v2588 = vld [vmem:[%s2585 + $0x10] sm:$0xff]
        %v2589 = vld [vmem:[%s2585 + $0x18] sm:$0xff]
        %v2590 = vld [vmem:[%s2585 + $0x20] sm:$0xff]
        %v2591 = vld [vmem:[%s2585 + $0x28] sm:$0xff]
        %v2592 = vld [vmem:[%s2585 + $0x30] sm:$0xff]
        %v2593 = vld [vmem:[%s2585 + $0x38] sm:$0xff]
        %v2594 = vld [vmem:[%s2585 + $0x40] sm:$0xff]
        %v2595 = vld [vmem:[%s2585 + $0x48] sm:$0xff]
        %v2597 = vrot.slane %v2574, 1
        %vm2598 = vcmask 654336
        %v2599 = vsel %vm2598, %v2597, 0
        %2601 = vmatprep.subr.mxu0 0.0
        %2602 = vmatpush1.msra.mxu0 %v2586
        %2603 = vmatprep.subr.mxu0 0.0
        %2604 = vmatpush1.msra.mxu0 %v2587
        %2605 = vmatprep.subr.mxu0 0.0
        %2606 = vmatpush1.msra.mxu0 %v2588
        %2607 = vmatprep.subr.mxu0 0.0
        %2608 = vmatpush1.msra.mxu0 %v2589
        %2609 = vmatprep.subr.mxu0 0.0
        %2610 = vmatpush1.msra.mxu0 %v2590
        %2611 = vmatprep.subr.mxu0 0.0
        %2612 = vmatpush1.msra.mxu0 %v2591
        %2613 = vmatprep.subr.mxu0 0.0
        %2614 = vmatpush1.msra.mxu0 %v2592
        %2615 = vmatprep.subr.mxu0 0.0
        %2616 = vmatpush1.msra.mxu0 %v2593
        %2617 = vmatprep.subr.mxu0 0.0
        %2618 = vmatpush1.msra.mxu0 %v2594
        %2619 = vmatprep.subr.mxu0 0.0
        %2620 = vmatpush1.msra.mxu0 %v2595
        %2621 = vmatprep.subr.mxu0 0.0
        %2622 = vmatpush1.msra.mxu0 0.0
        %2623 = vmatprep.subr.mxu0 0.0
        %2624 = vmatpush1.msra.mxu0 0.0
        %2625 = vmatprep.subr.mxu0 0.0
        %2626 = vmatpush1.msra.mxu0 0.0
        %2627 = vmatprep.subr.mxu0 0.0
        %2628 = vmatpush1.msra.mxu0 0.0
        %2629 = vmatprep.subr.mxu0 0.0
        %2630 = vmatpush1.msra.mxu0 0.0
        %2631 = vmatprep.subr.mxu0 0.0
        %2632 = vmatpush1.msra.mxu0 0.0
        %2633 = vmatprep.subr.mxu0 0.0
        %2634 = vmatpush1.msra.mxu0 0.0
        %2635 = vmatprep.subr.mxu0 0.0
        %2636 = vmatpush1.msra.mxu0 0.0
        %2637 = vmatprep.subr.mxu0 0.0
        %2638 = vmatpush1.msra.mxu0 0.0
        %2639 = vmatprep.subr.mxu0 0.0
        %2640 = vmatpush1.msra.mxu0 0.0
        %2641 = vmatprep.subr.mxu0 0.0
        %2642 = vmatpush1.msra.mxu0 0.0
        %2643 = vmatprep.subr.mxu0 0.0
        %2644 = vmatpush1.msra.mxu0 0.0
        %2645 = vmatprep.subr.mxu0 0.0
        %2646 = vmatpush1.msra.mxu0 0.0
        %2647 = vmatprep.subr.mxu0 0.0
        %2648 = vmatpush1.msra.mxu0 0.0
        %2649 = vmatprep.subr.mxu0 0.0
        %2650 = vmatpush1.msra.mxu0 0.0
        %2651 = vmatprep.subr.mxu0 0.0
        %2652 = vmatpush1.msra.mxu0 0.0
        %2653 = vmatprep.subr.mxu0 0.0
        %2654 = vmatpush1.msra.mxu0 0.0
        %2655 = vmatprep.subr.mxu0 0.0
        %2656 = vmatpush1.msra.mxu0 0.0
        %2657 = vmatprep.subr.mxu0 0.0
        %2658 = vmatpush1.msra.mxu0 0.0
        %2659 = vmatprep.subr.mxu0 0.0
        %2660 = vmatpush1.msra.mxu0 0.0
        %2661 = vmatprep.subr.mxu0 0.0
        %2662 = vmatpush1.msra.mxu0 0.0
        %2663 = vmatprep.subr.mxu0 0.0
        %2664 = vmatpush1.msra.mxu0 0.0
        %2665 = vmatprep.mubr.f32.mxu0 0.0
        %2666 = vmatmul.mubr.f32.gmra.mrb[0].mxu0 %v2599
        %v2667 = vpop.f32.mrb[0].mxu0
        %v2668 = vadd.f32 0.0, %v2667
        %v2669 = vpop.f32.mrb[0].mxu0
        %2670 = vdwg.mxu0
        %v2671 = vsel %vm2598, %v2574, 0
        %2673 = vmatprep.subr.mxu0 0.0
        %2674 = vmatpush1.msra.mxu0 %v2575
        %2675 = vmatprep.subr.mxu0 0.0
        %2676 = vmatpush1.msra.mxu0 %v2576
        %2677 = vmatprep.subr.mxu0 0.0
        %2678 = vmatpush1.msra.mxu0 %v2577
        %2679 = vmatprep.subr.mxu0 0.0
        %2680 = vmatpush1.msra.mxu0 %v2578
        %2681 = vmatprep.subr.mxu0 0.0
        %2682 = vmatpush1.msra.mxu0 %v2579
        %2683 = vmatprep.subr.mxu0 0.0
        %2684 = vmatpush1.msra.mxu0 %v2580
        %2685 = vmatprep.subr.mxu0 0.0
        %2686 = vmatpush1.msra.mxu0 %v2581
        %2687 = vmatprep.subr.mxu0 0.0
        %2688 = vmatpush1.msra.mxu0 %v2582
        %2689 = vmatprep.subr.mxu0 0.0
        %2690 = vmatpush1.msra.mxu0 %v2583
        %2691 = vmatprep.subr.mxu0 0.0
        %2692 = vmatpush1.msra.mxu0 %v2584
        %2693 = vmatprep.subr.mxu0 0.0
        %2694 = vmatpush1.msra.mxu0 0.0
        %2695 = vmatprep.subr.mxu0 0.0
        %2696 = vmatpush1.msra.mxu0 0.0
        %2697 = vmatprep.subr.mxu0 0.0
        %2698 = vmatpush1.msra.mxu0 0.0
        %2699 = vmatprep.subr.mxu0 0.0
        %2700 = vmatpush1.msra.mxu0 0.0
        %2701 = vmatprep.subr.mxu0 0.0
        %2702 = vmatpush1.msra.mxu0 0.0
        %2703 = vmatprep.subr.mxu0 0.0
        %2704 = vmatpush1.msra.mxu0 0.0
        %2705 = vmatprep.subr.mxu0 0.0
        %2706 = vmatpush1.msra.mxu0 0.0
        %2707 = vmatprep.subr.mxu0 0.0
        %2708 = vmatpush1.msra.mxu0 0.0
        %2709 = vmatprep.subr.mxu0 0.0
        %2710 = vmatpush1.msra.mxu0 0.0
        %2711 = vmatprep.subr.mxu0 0.0
        %2712 = vmatpush1.msra.mxu0 0.0
        %2713 = vmatprep.subr.mxu0 0.0
        %2714 = vmatpush1.msra.mxu0 0.0
        %2715 = vmatprep.subr.mxu0 0.0
        %2716 = vmatpush1.msra.mxu0 0.0
        %2717 = vmatprep.subr.mxu0 0.0
        %2718 = vmatpush1.msra.mxu0 0.0
        %2719 = vmatprep.subr.mxu0 0.0
        %2720 = vmatpush1.msra.mxu0 0.0
        %2721 = vmatprep.subr.mxu0 0.0
        %2722 = vmatpush1.msra.mxu0 0.0
        %2723 = vmatprep.subr.mxu0 0.0
        %2724 = vmatpush1.msra.mxu0 0.0
        %2725 = vmatprep.subr.mxu0 0.0
        %2726 = vmatpush1.msra.mxu0 0.0
        %2727 = vmatprep.subr.mxu0 0.0
        %2728 = vmatpush1.msra.mxu0 0.0
        %2729 = vmatprep.subr.mxu0 0.0
        %2730 = vmatpush1.msra.mxu0 0.0
        %2731 = vmatprep.subr.mxu0 0.0
        %2732 = vmatpush1.msra.mxu0 0.0
        %2733 = vmatprep.subr.mxu0 0.0
        %2734 = vmatpush1.msra.mxu0 0.0
        %2735 = vmatprep.subr.mxu0 0.0
        %2736 = vmatpush1.msra.mxu0 0.0
        %2737 = vmatprep.mubr.f32.mxu0 0.0
        %2738 = vmatmul.mubr.f32.gmra.mrb[0].mxu0 %v2671
        %v2739 = vpop.f32.mrb[0].mxu0
        %v2740 = vadd.f32 %v2668, %v2739
        %v2741 = vpop.f32.mrb[0].mxu0
        %2742 = vdwg.mxu0
        %s2743 = scalar_lea.vmem %s13, 160
        %v2744 = vld [vmem:[%s2743] sm:$0xff]
        %v2745 = vld [vmem:[%s2743 + $0x8] sm:$0xff]
        %v2746 = vld [vmem:[%s2743 + $0x10] sm:$0xff]
        %v2747 = vld [vmem:[%s2743 + $0x18] sm:$0xff]
        %v2748 = vld [vmem:[%s2743 + $0x20] sm:$0xff]
        %v2749 = vld [vmem:[%s2743 + $0x28] sm:$0xff]
        %v2750 = vld [vmem:[%s2743 + $0x30] sm:$0xff]
        %v2751 = vld [vmem:[%s2743 + $0x38] sm:$0xff]
        %v2752 = vld [vmem:[%s2743 + $0x40] sm:$0xff]
        %v2753 = vld [vmem:[%s2743 + $0x48] sm:$0xff]
        %v2754 = vrot.slane %v2574, 2
        %v2755 = vsel %vm2598, %v2754, 0
        %2757 = vmatprep.subr.mxu0 0.0
        %2758 = vmatpush1.msra.mxu0 %v2744
        %2759 = vmatprep.subr.mxu0 0.0
        %2760 = vmatpush1.msra.mxu0 %v2745
        %2761 = vmatprep.subr.mxu0 0.0
        %2762 = vmatpush1.msra.mxu0 %v2746
        %2763 = vmatprep.subr.mxu0 0.0
        %2764 = vmatpush1.msra.mxu0 %v2747
        %2765 = vmatprep.subr.mxu0 0.0
        %2766 = vmatpush1.msra.mxu0 %v2748
        %2767 = vmatprep.subr.mxu0 0.0
        %2768 = vmatpush1.msra.mxu0 %v2749
        %2769 = vmatprep.subr.mxu0 0.0
        %2770 = vmatpush1.msra.mxu0 %v2750
        %2771 = vmatprep.subr.mxu0 0.0
        %2772 = vmatpush1.msra.mxu0 %v2751
        %2773 = vmatprep.subr.mxu0 0.0
        %2774 = vmatpush1.msra.mxu0 %v2752
        %2775 = vmatprep.subr.mxu0 0.0
        %2776 = vmatpush1.msra.mxu0 %v2753
        %2777 = vmatprep.subr.mxu0 0.0
        %2778 = vmatpush1.msra.mxu0 0.0
        %2779 = vmatprep.subr.mxu0 0.0
        %2780 = vmatpush1.msra.mxu0 0.0
        %2781 = vmatprep.subr.mxu0 0.0
        %2782 = vmatpush1.msra.mxu0 0.0
        %2783 = vmatprep.subr.mxu0 0.0
        %2784 = vmatpush1.msra.mxu0 0.0
        %2785 = vmatprep.subr.mxu0 0.0
        %2786 = vmatpush1.msra.mxu0 0.0
        %2787 = vmatprep.subr.mxu0 0.0
        %2788 = vmatpush1.msra.mxu0 0.0
        %2789 = vmatprep.subr.mxu0 0.0
        %2790 = vmatpush1.msra.mxu0 0.0
        %2791 = vmatprep.subr.mxu0 0.0
        %2792 = vmatpush1.msra.mxu0 0.0
        %2793 = vmatprep.subr.mxu0 0.0
        %2794 = vmatpush1.msra.mxu0 0.0
        %2795 = vmatprep.subr.mxu0 0.0
        %2796 = vmatpush1.msra.mxu0 0.0
        %2797 = vmatprep.subr.mxu0 0.0
        %2798 = vmatpush1.msra.mxu0 0.0
        %2799 = vmatprep.subr.mxu0 0.0
        %2800 = vmatpush1.msra.mxu0 0.0
        %2801 = vmatprep.subr.mxu0 0.0
        %2802 = vmatpush1.msra.mxu0 0.0
        %2803 = vmatprep.subr.mxu0 0.0
        %2804 = vmatpush1.msra.mxu0 0.0
        %2805 = vmatprep.subr.mxu0 0.0
        %2806 = vmatpush1.msra.mxu0 0.0
        %2807 = vmatprep.subr.mxu0 0.0
        %2808 = vmatpush1.msra.mxu0 0.0
        %2809 = vmatprep.subr.mxu0 0.0
        %2810 = vmatpush1.msra.mxu0 0.0
        %2811 = vmatprep.subr.mxu0 0.0
        %2812 = vmatpush1.msra.mxu0 0.0
        %2813 = vmatprep.subr.mxu0 0.0
        %2814 = vmatpush1.msra.mxu0 0.0
        %2815 = vmatprep.subr.mxu0 0.0
        %2816 = vmatpush1.msra.mxu0 0.0
        %2817 = vmatprep.subr.mxu0 0.0
        %2818 = vmatpush1.msra.mxu0 0.0
        %2819 = vmatprep.subr.mxu0 0.0
        %2820 = vmatpush1.msra.mxu0 0.0
        %2821 = vmatprep.mubr.f32.mxu0 0.0
        %2822 = vmatmul.mubr.f32.gmra.mrb[0].mxu0 %v2755
        %v2823 = vpop.f32.mrb[0].mxu0
        %v2824 = vadd.f32 0.0, %v2823
        %v2825 = vpop.f32.mrb[0].mxu0
        %2826 = vdwg.mxu0
        %v2827 = vadd.f32 %v2740, %v2824
        %s2828 = scalar_lea.vmem %s13, 240
        %v2829 = vld [vmem:[%s2828] sm:$0xff]
        %v2830 = vld [vmem:[%s2828 + $0x8] sm:$0xff]
        %v2831 = vld [vmem:[%s2828 + $0x10] sm:$0xff]
        %v2832 = vld [vmem:[%s2828 + $0x18] sm:$0xff]
        %v2833 = vld [vmem:[%s2828 + $0x20] sm:$0xff]
        %v2834 = vld [vmem:[%s2828 + $0x28] sm:$0xff]
        %v2835 = vld [vmem:[%s2828 + $0x30] sm:$0xff]
        %v2836 = vld [vmem:[%s2828 + $0x38] sm:$0xff]
        %v2837 = vld [vmem:[%s2828 + $0x40] sm:$0xff]
        %v2838 = vld [vmem:[%s2828 + $0x48] sm:$0xff]
        %v2839 = vrot.slane %v2574, 3
        %v2840 = vsel %vm2598, %v2839, 0
        %2842 = vmatprep.subr.mxu0 0.0
        %2843 = vmatpush1.msra.mxu0 %v2829
        %2844 = vmatprep.subr.mxu0 0.0
        %2845 = vmatpush1.msra.mxu0 %v2830
        %2846 = vmatprep.subr.mxu0 0.0
        %2847 = vmatpush1.msra.mxu0 %v2831
        %2848 = vmatprep.subr.mxu0 0.0
        %2849 = vmatpush1.msra.mxu0 %v2832
        %2850 = vmatprep.subr.mxu0 0.0
        %2851 = vmatpush1.msra.mxu0 %v2833
        %2852 = vmatprep.subr.mxu0 0.0
        %2853 = vmatpush1.msra.mxu0 %v2834
        %2854 = vmatprep.subr.mxu0 0.0
        %2855 = vmatpush1.msra.mxu0 %v2835
        %2856 = vmatprep.subr.mxu0 0.0
        %2857 = vmatpush1.msra.mxu0 %v2836
        %2858 = vmatprep.subr.mxu0 0.0
        %2859 = vmatpush1.msra.mxu0 %v2837
        %2860 = vmatprep.subr.mxu0 0.0
        %2861 = vmatpush1.msra.mxu0 %v2838
        %2862 = vmatprep.subr.mxu0 0.0
        %2863 = vmatpush1.msra.mxu0 0.0
        %2864 = vmatprep.subr.mxu0 0.0
        %2865 = vmatpush1.msra.mxu0 0.0
        %2866 = vmatprep.subr.mxu0 0.0
        %2867 = vmatpush1.msra.mxu0 0.0
        %2868 = vmatprep.subr.mxu0 0.0
        %2869 = vmatpush1.msra.mxu0 0.0
        %2870 = vmatprep.subr.mxu0 0.0
        %2871 = vmatpush1.msra.mxu0 0.0
        %2872 = vmatprep.subr.mxu0 0.0
        %2873 = vmatpush1.msra.mxu0 0.0
        %2874 = vmatprep.subr.mxu0 0.0
        %2875 = vmatpush1.msra.mxu0 0.0
        %2876 = vmatprep.subr.mxu0 0.0
        %2877 = vmatpush1.msra.mxu0 0.0
        %2878 = vmatprep.subr.mxu0 0.0
        %2879 = vmatpush1.msra.mxu0 0.0
        %2880 = vmatprep.subr.mxu0 0.0
        %2881 = vmatpush1.msra.mxu0 0.0
        %2882 = vmatprep.subr.mxu0 0.0
        %2883 = vmatpush1.msra.mxu0 0.0
        %2884 = vmatprep.subr.mxu0 0.0
        %2885 = vmatpush1.msra.mxu0 0.0
        %2886 = vmatprep.subr.mxu0 0.0
        %2887 = vmatpush1.msra.mxu0 0.0
        %2888 = vmatprep.subr.mxu0 0.0
        %2889 = vmatpush1.msra.mxu0 0.0
        %2890 = vmatprep.subr.mxu0 0.0
        %2891 = vmatpush1.msra.mxu0 0.0
        %2892 = vmatprep.subr.mxu0 0.0
        %2893 = vmatpush1.msra.mxu0 0.0
        %2894 = vmatprep.subr.mxu0 0.0
        %2895 = vmatpush1.msra.mxu0 0.0
        %2896 = vmatprep.subr.mxu0 0.0
        %2897 = vmatpush1.msra.mxu0 0.0
        %2898 = vmatprep.subr.mxu0 0.0
        %2899 = vmatpush1.msra.mxu0 0.0
        %2900 = vmatprep.subr.mxu0 0.0
        %2901 = vmatpush1.msra.mxu0 0.0
        %2902 = vmatprep.subr.mxu0 0.0
        %2903 = vmatpush1.msra.mxu0 0.0
        %2904 = vmatprep.subr.mxu0 0.0
        %2905 = vmatpush1.msra.mxu0 0.0
        %2906 = vmatprep.mubr.f32.mxu0 0.0
        %2907 = vmatmul.mubr.f32.gmra.mrb[0].mxu0 %v2840
        %v2908 = vpop.f32.mrb[0].mxu0
        %v2909 = vadd.f32 0.0, %v2908
        %v2910 = vpop.f32.mrb[0].mxu0
        %2911 = vdwg.mxu0
        %v2912 = vadd.f32 %v2827, %v2909
        %s2913 = scalar_lea.vmem %s13, 320
        %v2914 = vld [vmem:[%s2913] sm:$0xff]
        %v2915 = vld [vmem:[%s2913 + $0x8] sm:$0xff]
        %v2916 = vld [vmem:[%s2913 + $0x10] sm:$0xff]
        %v2917 = vld [vmem:[%s2913 + $0x18] sm:$0xff]
        %v2918 = vld [vmem:[%s2913 + $0x20] sm:$0xff]
        %v2919 = vld [vmem:[%s2913 + $0x28] sm:$0xff]
        %v2920 = vld [vmem:[%s2913 + $0x30] sm:$0xff]
        %v2921 = vld [vmem:[%s2913 + $0x38] sm:$0xff]
        %v2922 = vld [vmem:[%s2913 + $0x40] sm:$0xff]
        %v2923 = vld [vmem:[%s2913 + $0x48] sm:$0xff]
        %v2924 = vrot.slane %v2574, 4
        %v2925 = vsel %vm2598, %v2924, 0
        %2927 = vmatprep.subr.mxu0 0.0
        %2928 = vmatpush1.msra.mxu0 %v2914
        %2929 = vmatprep.subr.mxu0 0.0
        %2930 = vmatpush1.msra.mxu0 %v2915
        %2931 = vmatprep.subr.mxu0 0.0
        %2932 = vmatpush1.msra.mxu0 %v2916
        %2933 = vmatprep.subr.mxu0 0.0
        %2934 = vmatpush1.msra.mxu0 %v2917
        %2935 = vmatprep.subr.mxu0 0.0
        %2936 = vmatpush1.msra.mxu0 %v2918
        %2937 = vmatprep.subr.mxu0 0.0
        %2938 = vmatpush1.msra.mxu0 %v2919
        %2939 = vmatprep.subr.mxu0 0.0
        %2940 = vmatpush1.msra.mxu0 %v2920
        %2941 = vmatprep.subr.mxu0 0.0
        %2942 = vmatpush1.msra.mxu0 %v2921
        %2943 = vmatprep.subr.mxu0 0.0
        %2944 = vmatpush1.msra.mxu0 %v2922
        %2945 = vmatprep.subr.mxu0 0.0
        %2946 = vmatpush1.msra.mxu0 %v2923
        %2947 = vmatprep.subr.mxu0 0.0
        %2948 = vmatpush1.msra.mxu0 0.0
        %2949 = vmatprep.subr.mxu0 0.0
        %2950 = vmatpush1.msra.mxu0 0.0
        %2951 = vmatprep.subr.mxu0 0.0
        %2952 = vmatpush1.msra.mxu0 0.0
        %2953 = vmatprep.subr.mxu0 0.0
        %2954 = vmatpush1.msra.mxu0 0.0
        %2955 = vmatprep.subr.mxu0 0.0
        %2956 = vmatpush1.msra.mxu0 0.0
        %2957 = vmatprep.subr.mxu0 0.0
        %2958 = vmatpush1.msra.mxu0 0.0
        %2959 = vmatprep.subr.mxu0 0.0
        %2960 = vmatpush1.msra.mxu0 0.0
        %2961 = vmatprep.subr.mxu0 0.0
        %2962 = vmatpush1.msra.mxu0 0.0
        %2963 = vmatprep.subr.mxu0 0.0
        %2964 = vmatpush1.msra.mxu0 0.0
        %2965 = vmatprep.subr.mxu0 0.0
        %2966 = vmatpush1.msra.mxu0 0.0
        %2967 = vmatprep.subr.mxu0 0.0
        %2968 = vmatpush1.msra.mxu0 0.0
        %2969 = vmatprep.subr.mxu0 0.0
        %2970 = vmatpush1.msra.mxu0 0.0
        %2971 = vmatprep.subr.mxu0 0.0
        %2972 = vmatpush1.msra.mxu0 0.0
        %2973 = vmatprep.subr.mxu0 0.0
        %2974 = vmatpush1.msra.mxu0 0.0
        %2975 = vmatprep.subr.mxu0 0.0
        %2976 = vmatpush1.msra.mxu0 0.0
        %2977 = vmatprep.subr.mxu0 0.0
        %2978 = vmatpush1.msra.mxu0 0.0
        %2979 = vmatprep.subr.mxu0 0.0
        %2980 = vmatpush1.msra.mxu0 0.0
        %2981 = vmatprep.subr.mxu0 0.0
        %2982 = vmatpush1.msra.mxu0 0.0
        %2983 = vmatprep.subr.mxu0 0.0
        %2984 = vmatpush1.msra.mxu0 0.0
        %2985 = vmatprep.subr.mxu0 0.0
        %2986 = vmatpush1.msra.mxu0 0.0
        %2987 = vmatprep.subr.mxu0 0.0
        %2988 = vmatpush1.msra.mxu0 0.0
        %2989 = vmatprep.subr.mxu0 0.0
        %2990 = vmatpush1.msra.mxu0 0.0
        %2991 = vmatprep.mubr.f32.mxu0 0.0
        %2992 = vmatmul.mubr.f32.gmra.mrb[0].mxu0 %v2925
        %v2993 = vpop.f32.mrb[0].mxu0
        %v2994 = vadd.f32 0.0, %v2993
        %v2995 = vpop.f32.mrb[0].mxu0
        %2996 = vdwg.mxu0
        %v2997 = vadd.f32 %v2912, %v2994
        %v2998 = vld [vmem:[%s14] sm:$0x1]
        %v2999 = vadd.f32 %v2997, %v2998
        %v3000 = vmax.f32 %v2999, 0.0
        %v3001 = vld [vmem:[%s15] sm:$0xff]
        %v3002 = vld [vmem:[%s15 + $0x8] sm:$0xff]
        %v3003 = vld [vmem:[%s15 + $0x10] sm:$0xff]
        %v3004 = vld [vmem:[%s15 + $0x18] sm:$0xff]
        %v3005 = vld [vmem:[%s15 + $0x20] sm:$0xff]
        %v3006 = vld [vmem:[%s15 + $0x28] sm:$0xff]
        %v3007 = vld [vmem:[%s15 + $0x30] sm:$0xff]
        %v3008 = vld [vmem:[%s15 + $0x38] sm:$0xff]
        %v3009 = vld [vmem:[%s15 + $0x40] sm:$0xff]
        %v3010 = vld [vmem:[%s15 + $0x48] sm:$0xff]
        %v3011 = vld [vmem:[%s15 + $0x50] sm:$0xff]
        %v3012 = vld [vmem:[%s15 + $0x58] sm:$0xff]
        %v3013 = vld [vmem:[%s15 + $0x60] sm:$0xff]
        %v3014 = vld [vmem:[%s15 + $0x68] sm:$0xff]
        %v3015 = vld [vmem:[%s15 + $0x70] sm:$0xff]
        %v3016 = vld [vmem:[%s16] sm:$0x1]
        %vm3017 = vcmask 982016
        %v3019 = vsel %vm3017, %v3000, 0
        %3021 = vmatprep.subr.mxu0 0.0
        %3022 = vmatpush1.msra.mxu0 %v3001
        %3023 = vmatprep.subr.mxu0 0.0
        %3024 = vmatpush1.msra.mxu0 %v3002
        %3025 = vmatprep.subr.mxu0 0.0
        %3026 = vmatpush1.msra.mxu0 %v3003
        %3027 = vmatprep.subr.mxu0 0.0
        %3028 = vmatpush1.msra.mxu0 %v3004
        %3029 = vmatprep.subr.mxu0 0.0
        %3030 = vmatpush1.msra.mxu0 %v3005
        %3031 = vmatprep.subr.mxu0 0.0
        %3032 = vmatpush1.msra.mxu0 %v3006
        %3033 = vmatprep.subr.mxu0 0.0
        %3034 = vmatpush1.msra.mxu0 %v3007
        %3035 = vmatprep.subr.mxu0 0.0
        %3036 = vmatpush1.msra.mxu0 %v3008
        %3037 = vmatprep.subr.mxu0 0.0
        %3038 = vmatpush1.msra.mxu0 %v3009
        %3039 = vmatprep.subr.mxu0 0.0
        %3040 = vmatpush1.msra.mxu0 %v3010
        %3041 = vmatprep.subr.mxu0 0.0
        %3042 = vmatpush1.msra.mxu0 %v3011
        %3043 = vmatprep.subr.mxu0 0.0
        %3044 = vmatpush1.msra.mxu0 %v3012
        %3045 = vmatprep.subr.mxu0 0.0
        %3046 = vmatpush1.msra.mxu0 %v3013
        %3047 = vmatprep.subr.mxu0 0.0
        %3048 = vmatpush1.msra.mxu0 %v3014
        %3049 = vmatprep.subr.mxu0 0.0
        %3050 = vmatpush1.msra.mxu0 %v3015
        %3051 = vmatprep.subr.mxu0 0.0
        %3052 = vmatpush1.msra.mxu0 0.0
        %3053 = vmatprep.subr.mxu0 0.0
        %3054 = vmatpush1.msra.mxu0 0.0
        %3055 = vmatprep.subr.mxu0 0.0
        %3056 = vmatpush1.msra.mxu0 0.0
        %3057 = vmatprep.subr.mxu0 0.0
        %3058 = vmatpush1.msra.mxu0 0.0
        %3059 = vmatprep.subr.mxu0 0.0
        %3060 = vmatpush1.msra.mxu0 0.0
        %3061 = vmatprep.subr.mxu0 0.0
        %3062 = vmatpush1.msra.mxu0 0.0
        %3063 = vmatprep.subr.mxu0 0.0
        %3064 = vmatpush1.msra.mxu0 0.0
        %3065 = vmatprep.subr.mxu0 0.0
        %3066 = vmatpush1.msra.mxu0 0.0
        %3067 = vmatprep.subr.mxu0 0.0
        %3068 = vmatpush1.msra.mxu0 0.0
        %3069 = vmatprep.subr.mxu0 0.0
        %3070 = vmatpush1.msra.mxu0 0.0
        %3071 = vmatprep.subr.mxu0 0.0
        %3072 = vmatpush1.msra.mxu0 0.0
        %3073 = vmatprep.subr.mxu0 0.0
        %3074 = vmatpush1.msra.mxu0 0.0
        %3075 = vmatprep.subr.mxu0 0.0
        %3076 = vmatpush1.msra.mxu0 0.0
        %3077 = vmatprep.subr.mxu0 0.0
        %3078 = vmatpush1.msra.mxu0 0.0
        %3079 = vmatprep.subr.mxu0 0.0
        %3080 = vmatpush1.msra.mxu0 0.0
        %3081 = vmatprep.subr.mxu0 0.0
        %3082 = vmatpush1.msra.mxu0 0.0
        %3083 = vmatprep.subr.mxu0 0.0
        %3084 = vmatpush1.msra.mxu0 0.0
        %3085 = vmatprep.mubr.f32.mxu0 0.0
        %3086 = vmatmul.mubr.f32.gmra.mrb[0].mxu0 %v3019
        %v3087 = vpop.f32.mrb[0].mxu0
        %v3088 = vadd.f32 %v3016, %v3087
        %v3089 = vpop.f32.mrb[0].mxu0
        %3090 = vdwg.mxu0
        %v3091 = vmax.f32 %v3088, 0.0
        %v3092 = vld [vmem:[%s17] sm:$0xff]
        %v3093 = vld [vmem:[%s17 + $0x8] sm:$0xff]
        %v3094 = vld [vmem:[%s17 + $0x10] sm:$0xff]
        %v3095 = vld [vmem:[%s17 + $0x18] sm:$0xff]
        %v3096 = vld [vmem:[%s17 + $0x20] sm:$0xff]
        %v3097 = vld [vmem:[%s17 + $0x28] sm:$0xff]
        %v3098 = vld [vmem:[%s17 + $0x30] sm:$0xff]
        %v3099 = vld [vmem:[%s17 + $0x38] sm:$0xff]
        %v3100 = vld [vmem:[%s17 + $0x40] sm:$0xff]
        %v3101 = vld [vmem:[%s17 + $0x48] sm:$0xff]
        %v3102 = vld [vmem:[%s17 + $0x50] sm:$0xf]
        %v3103 = vld [vmem:[%s18] sm:$0x1]
        %v3105 = vsel %vm1675, %v3091, 0
        %v3108 = vsel %vm1460, %v3102, 0
        %3110 = vmatprep.subr.mxu0 0.0
        %3111 = vmatpush1.msra.mxu0 %v3092
        %3112 = vmatprep.subr.mxu0 0.0
        %3113 = vmatpush1.msra.mxu0 %v3093
        %3114 = vmatprep.subr.mxu0 0.0
        %3115 = vmatpush1.msra.mxu0 %v3094
        %3116 = vmatprep.subr.mxu0 0.0
        %3117 = vmatpush1.msra.mxu0 %v3095
        %3118 = vmatprep.subr.mxu0 0.0
        %3119 = vmatpush1.msra.mxu0 %v3096
        %3120 = vmatprep.subr.mxu0 0.0
        %3121 = vmatpush1.msra.mxu0 %v3097
        %3122 = vmatprep.subr.mxu0 0.0
        %3123 = vmatpush1.msra.mxu0 %v3098
        %3124 = vmatprep.subr.mxu0 0.0
        %3125 = vmatpush1.msra.mxu0 %v3099
        %3126 = vmatprep.subr.mxu0 0.0
        %3127 = vmatpush1.msra.mxu0 %v3100
        %3128 = vmatprep.subr.mxu0 0.0
        %3129 = vmatpush1.msra.mxu0 %v3101
        %3130 = vmatprep.subr.mxu0 0.0
        %3131 = vmatpush1.msra.mxu0 %v3108
        %3132 = vmatprep.subr.mxu0 0.0
        %3133 = vmatpush1.msra.mxu0 0.0
        %3134 = vmatprep.subr.mxu0 0.0
        %3135 = vmatpush1.msra.mxu0 0.0
        %3136 = vmatprep.subr.mxu0 0.0
        %3137 = vmatpush1.msra.mxu0 0.0
        %3138 = vmatprep.subr.mxu0 0.0
        %3139 = vmatpush1.msra.mxu0 0.0
        %3140 = vmatprep.subr.mxu0 0.0
        %3141 = vmatpush1.msra.mxu0 0.0
        %3142 = vmatprep.subr.mxu0 0.0
        %3143 = vmatpush1.msra.mxu0 0.0
        %3144 = vmatprep.subr.mxu0 0.0
        %3145 = vmatpush1.msra.mxu0 0.0
        %3146 = vmatprep.subr.mxu0 0.0
        %3147 = vmatpush1.msra.mxu0 0.0
        %3148 = vmatprep.subr.mxu0 0.0
        %3149 = vmatpush1.msra.mxu0 0.0
        %3150 = vmatprep.subr.mxu0 0.0
        %3151 = vmatpush1.msra.mxu0 0.0
        %3152 = vmatprep.subr.mxu0 0.0
        %3153 = vmatpush1.msra.mxu0 0.0
        %3154 = vmatprep.subr.mxu0 0.0
        %3155 = vmatpush1.msra.mxu0 0.0
        %3156 = vmatprep.subr.mxu0 0.0
        %3157 = vmatpush1.msra.mxu0 0.0
        %3158 = vmatprep.subr.mxu0 0.0
        %3159 = vmatpush1.msra.mxu0 0.0
        %3160 = vmatprep.subr.mxu0 0.0
        %3161 = vmatpush1.msra.mxu0 0.0
        %3162 = vmatprep.subr.mxu0 0.0
        %3163 = vmatpush1.msra.mxu0 0.0
        %3164 = vmatprep.subr.mxu0 0.0
        %3165 = vmatpush1.msra.mxu0 0.0
        %3166 = vmatprep.subr.mxu0 0.0
        %3167 = vmatpush1.msra.mxu0 0.0
        %3168 = vmatprep.subr.mxu0 0.0
        %3169 = vmatpush1.msra.mxu0 0.0
        %3170 = vmatprep.subr.mxu0 0.0
        %3171 = vmatpush1.msra.mxu0 0.0
        %3172 = vmatprep.subr.mxu0 0.0
        %3173 = vmatpush1.msra.mxu0 0.0
        %3174 = vmatprep.mubr.f32.mxu0 0.0
        %3175 = vmatmul.mubr.f32.gmra.mrb[0].mxu0 %v3105
        %v3176 = vpop.f32.mrb[0].mxu0
        %v3177 = vadd.f32 %v3103, %v3176
        %v3178 = vpop.f32.mrb[0].mxu0
        %3179 = vdwg.mxu0
        %3180 = vst [vmem:[%s594] sm:$0x1] %v3177
        %s3181 = sand.u32 %s445, 1
        %s3182 = scalar_lea.sflag [#allocation3], %s3181
        %s3183 = sand.u32 %s445, 1
        %s3184 = scalar_lea.vmem [#allocation2], %s3183
        // Predicated region
        $region97: #{net_forward.1} parent=95 // pred_check
          %p3185 = pneg %p455
        $region98: #{net_forward.1} parent=95 // pred_check_branch
          %3187 = sbr.rel (%p3185) target = $region100
        $region99: #{net_forward.1} parent=95 // pred_region
          %s3189 = ssub.s32 16, 16
          %3190 = vsyncadd %s3182, %s3189
          %s3191 = smul.addr %s33, 16
          %s3192 = scalar_lea.hbm %s19, %s3191
          %s3194 = sshll.u32 %s3184, 4
          %s3195 = int_to_ptr.vmem [resolvable:$true] %s3194
          %3197 = dma.vmem_to_hbm [thread:$0]  %s3195, 16, %s3192, %s3182
        $region100: #{net_forward.1} parent=95 // pred_fallthru
          _
      $region96: #{net_forward.1} parent=5 // pred_fallthru
        _
      %p3198 = scmp.le.s32.totalorder 2, %s28
      // Predicated region
      $region101: #{net_forward.1} parent=5 // pred_check
        %p3199 = pneg %p3198
      $region102: #{net_forward.1} parent=5 // pred_check_branch
        %3201 = sbr.rel (%p3199) target = $region104
      $region103: #{net_forward.1} parent=5 // pred_region
        %s3202 = ssub.s32 %s28, 2
        // Predicated region
        $region105: #{net_forward.1} parent=103 // pred_check
          %p3203 = pneg %p461
        $region106: #{net_forward.1} parent=103 // pred_check_branch
          %3205 = sbr.rel (%p3203) target = $region108
        $region107: #{net_forward.1} parent=103 // pred_region
          %s3206 = sand.u32 %s446, 1
          %s3207 = scalar_lea.sflag [#allocation3], %s3206
          %s3208 = sand.u32 %s446, 1
          %s3209 = scalar_lea.vmem [#allocation2], %s3208
          %3210 = dma.done %s3207, 16
        $region108: #{net_forward.1} parent=103 // pred_fallthru
          _
      $region104: #{net_forward.1} parent=5 // pred_fallthru
        _
    $region6: #{net_forward.1} parent=1 // loop_footer
      %s32 = sadd.s32 1, %s28
    $region7: #{net_forward.1} parent=1 // loop_footer_branch
      %27 = sbr.rel target = $region3
    $region8: #{net_forward.1} parent=1 // loop_exit
      _
    %3211 = vsyncpa [#allocation3], 1
    %s3212 = scalar_lea.sflag [#allocation3], 1
    %3213 = vsyncpa %s3212, 1

</llo_original>
